<compile_context>
chip_gen: v7x
topology: tpu7x:2x2x1
jax: 0.10.0
libtpu: 0.0.40
codegen_flags: <defaults>
</compile_context>

<pallas_src>
import math

import jax
import jax.numpy as jnp
from jax.experimental import pallas as pl
from jax.experimental.pallas import tpu as pltpu

# ---------------- model config (matches the PyTorch module instantiation) ----
IMG_SIZE = 16
PATCH_SIZE = 4
IN_CHANNELS = 4
NUM_CLASSES = 10
EMBED_DIM = 32
DEPTH = 2
NUM_HEADS = 4
MLP_DIM = 64
DROPOUT = 0.0                                    # inference: nn.Dropout = identity

NUM_PATCHES = (IMG_SIZE // PATCH_SIZE) ** 2      # 16
SEQ = NUM_PATCHES + 1                            # 17 (16 patches + cls)
SEQ_PAD = 24                                     # 17 -> multiple of 8 sublanes
CLS_ROW = NUM_PATCHES                            # cls-token row inside a chunk (16)
HEAD_DIM = EMBED_DIM // NUM_HEADS                # 8
CPP = IN_CHANNELS * PATCH_SIZE * PATCH_SIZE      # 64 flattened patch length
LN_EPS = 1e-5
ATTN_SCALE = 1.0 / math.sqrt(HEAD_DIM)
LANES = 128
MXU_DTYPE = jnp.bfloat16                         # MXU-native; accumulation is f32
BATCH_TILE = 8                                   # batch rows per grid step

# ---------------- packed-slab layout -----------------------------------------
# wvec (f32, (VEC_ROWS, 128)): one bias / LN vector / mask per row.
LNF_W_ROW, LNF_B_ROW, FCB_ROW, KMASK_ROW, HMASK_ROW = 0, 1, 2, 3, 4
VEC_LAYER0 = HMASK_ROW + NUM_HEADS               # 8
VEC_PER_LAYER = 8                                # ln1w ln1b bqkv bo ln2w ln2b b1 b2
VEC_ROWS = VEC_LAYER0 + DEPTH * VEC_PER_LAYER    # 24

# wmat (bf16, (MAT_ROWS, 128)): weight matrices stacked along sublanes.
MAT_PW_ROW = 0                                   # patch_w    rows [0, 64)
MAT_FC_ROW = CPP                                 # fc_w (pad) rows [64, 96)
MAT_LAYER0 = CPP + EMBED_DIM                     # 96
MAT_PER_LAYER = 5 * EMBED_DIM                    # qkv 32 + wo 32 + w1 32 + w2 64
MAT_ROWS = MAT_LAYER0 + DEPTH * MAT_PER_LAYER    # 416


# ---------------- in-kernel helpers -------------------------------------------
def _layernorm(v, w, b):
    mu = jnp.mean(v, axis=-1, keepdims=True)
    var = jnp.mean(jnp.square(v - mu), axis=-1, keepdims=True)
    return (v - mu) * jax.lax.rsqrt(var + LN_EPS) * w + b


def _gelu_exact(x):
    # F.gelu default = exact (erf-based) gelu
    return 0.5 * x * (1.0 + jax.lax.erf(x * 0.7071067811865476))


# ---------------- fused whole-model kernel ------------------------------------
def _make_vit_kernel(tb):
    rows = tb * SEQ_PAD
    D, H = EMBED_DIM, NUM_HEADS

    def vit_kernel(patch_ref, add_ref, vec_ref, mat_ref, o_ref):
        def vrow(r, n):                       # (1, n) f32 bias / LN row
            return vec_ref[r:r + 1, :n]

        # ---- patch embedding: Conv2d(k=stride=p) == one flattened matmul.
        # Pad rows of patch_ref are zero; pos/cls/conv-bias folded into add_ref.
        pw = mat_ref[MAT_PW_ROW:MAT_PW_ROW + CPP, :D]
        x = jnp.dot(patch_ref[...], pw, preferred_element_type=jnp.float32)
        x = x + add_ref[...]                                  # (rows, D) f32

        # Loop-invariant masks (hoisted out of the layer loop).
        hmask = jnp.broadcast_to(
            vec_ref[HMASK_ROW:HMASK_ROW + H, :D].reshape(1, H, 1, D),
            (1, H, SEQ_PAD, D))                               # head lane-mask
        kmask = jnp.broadcast_to(
            vec_ref[KMASK_ROW:KMASK_ROW + 1, :SEQ_PAD].reshape(1, 1, SEQ_PAD),
            (1, SEQ_PAD, SEQ_PAD))                            # pad keys -> -1e30

        # ---- transformer encoder layers (statically unrolled) ---------------
        for layer in range(DEPTH):
            vb = VEC_LAYER0 + layer * VEC_PER_LAYER
            mb = MAT_LAYER0 + layer * MAT_PER_LAYER
            w_qkv = mat_ref[mb:mb + D, :3 * D]
            w_o = mat_ref[mb + D:mb + 2 * D, :D]
            w_1 = mat_ref[mb + 2 * D:mb + 3 * D, :MLP_DIM]
            w_2 = mat_ref[mb + 3 * D:mb + 5 * D, :D]

            # -- multi-head self-attention, batched over (batch, head) --
            xn = _layernorm(x, vrow(vb, D), vrow(vb + 1, D))
            qkv = (jnp.dot(xn.astype(MXU_DTYPE), w_qkv,
                           preferred_element_type=jnp.float32)
                   + vrow(vb + 2, 3 * D))                     # (rows, 3D) f32
            q4 = qkv[:, 0 * D:1 * D].reshape(tb, 1, SEQ_PAD, D)
            k4 = qkv[:, 1 * D:2 * D].reshape(tb, 1, SEQ_PAD, D)
            v4 = qkv[:, 2 * D:3 * D].reshape(tb, 1, SEQ_PAD, D)
            # Head selection = lane mask; no per-head slicing / stacking.
            qm = (q4 * hmask).reshape(tb * H, SEQ_PAD, D)
            vm = (v4 * hmask).reshape(tb * H, SEQ_PAD, D)
            kr = jnp.broadcast_to(k4, (tb, H, SEQ_PAD, D)).reshape(tb * H, SEQ_PAD, D)

            s = jnp.einsum('nqd,nkd->nqk', qm.astype(MXU_DTYPE),
                           kr.astype(MXU_DTYPE),
                           preferred_element_type=jnp.float32) * ATTN_SCALE
            s = s + kmask                                     # mask pad keys
            s = s - jnp.max(s, axis=-1, keepdims=True)
            p = jnp.exp(s)
            p = p * pl.reciprocal(jnp.sum(p, axis=-1, keepdims=True), approx=True)
            o = jnp.einsum('nqk,nkd->nqd', p.astype(MXU_DTYPE),
                           vm.astype(MXU_DTYPE),
                           preferred_element_type=jnp.float32)  # (tb*H, SEQ_PAD, D)
            # Heads occupy disjoint lanes of o (vm was masked): merge = sum_h.
            om = jnp.sum(o.reshape(tb, H, SEQ_PAD, D), axis=1).reshape(rows, D)
            attn = (jnp.dot(om.astype(MXU_DTYPE), w_o,
                            preferred_element_type=jnp.float32) + vrow(vb + 3, D))
            x = x + attn                                      # dropout = identity

            # -- MLP branch --
            xn2 = _layernorm(x, vrow(vb + 4, D), vrow(vb + 5, D))
            h1 = _gelu_exact(jnp.dot(xn2.astype(MXU_DTYPE), w_1,
                                     preferred_element_type=jnp.float32)
                             + vrow(vb + 6, MLP_DIM))
            x = x + jnp.dot(h1.astype(MXU_DTYPE), w_2,
                            preferred_element_type=jnp.float32) + vrow(vb + 7, D)

        # ---- final LayerNorm + classifier on the cls rows (strided view) ----
        cls_rows = x.reshape(tb, SEQ_PAD, D)[:, CLS_ROW, :]   # (tb, D)
        cls_n = _layernorm(cls_rows, vrow(LNF_W_ROW, D), vrow(LNF_B_ROW, D))
        fc_w = mat_ref[MAT_FC_ROW:MAT_FC_ROW + D, :]          # (D, 128), zero-padded
        logits = (jnp.dot(cls_n.astype(MXU_DTYPE), fc_w,
                          preferred_element_type=jnp.float32)
                  + vec_ref[FCB_ROW:FCB_ROW + 1, :])
        o_ref[...] = logits.astype(o_ref.dtype)               # lane-dense (tb, 128)

    return vit_kernel


# ---------------- wrapper: parameter packing (run once) -----------------------
def pack_params(params):
    def vrow(v):
        v = jnp.asarray(v, jnp.float32).reshape(1, -1)
        return jnp.pad(v, ((0, 0), (0, LANES - v.shape[1])))

    def vmat(m):
        m = jnp.asarray(m, jnp.float32)
        return jnp.pad(m, ((0, 0), (0, LANES - m.shape[1])))

    head_mask = (jnp.arange(EMBED_DIM)[None, :] // HEAD_DIM
                 == jnp.arange(NUM_HEADS)[:, None]).astype(jnp.float32)
    head_mask = jnp.pad(head_mask, ((0, 0), (0, LANES - EMBED_DIM)))
    key_mask = jnp.where(jnp.arange(LANES) < SEQ, 0.0, -1e30
                         ).astype(jnp.float32)[None, :]

    vec_rows = [vrow(params["ln_w"]), vrow(params["ln_b"]), vrow(params["fc_b"]),
                key_mask, head_mask]
    mat_rows = [vmat(params["patch_w"]), vmat(params["fc_w"])]
    for lp in params["layers"]:
        vec_rows += [vrow(lp["ln1_w"]), vrow(lp["ln1_b"]), vrow(lp["b_qkv"]),
                     vrow(lp["b_o"]), vrow(lp["ln2_w"]), vrow(lp["ln2_b"]),
                     vrow(lp["b1"]), vrow(lp["b2"])]
        mat_rows += [vmat(lp["w_qkv"]), vmat(lp["w_o"]), vmat(lp["w1"]), vmat(lp["w2"])]
    wvec = jnp.concatenate(vec_rows, axis=0)
    wmat = jnp.concatenate(mat_rows, axis=0).astype(MXU_DTYPE)
    assert wvec.shape == (VEC_ROWS, LANES) and wmat.shape == (MAT_ROWS, LANES)

    # Additive token rows (SEQ_PAD, D): [pos[1:]+conv_b | cls+pos[0] | zeros].
    conv_b = params["patch_b"].reshape(1, EMBED_DIM)
    tok_add = jnp.concatenate(
        [params["pos"][1:, :] + conv_b,
         params["cls"].reshape(1, EMBED_DIM) + params["pos"][0:1, :],
         jnp.zeros((SEQ_PAD - SEQ, EMBED_DIM), jnp.float32)], axis=0)
    return {"wvec": wvec, "wmat": wmat, "tok_add": tok_add}


# ---------------- pallas_call wrapper ------------------------------------------
@jax.jit
def vit_forward(x, packed):
    # x is NCHW (B, C, H, W), like the PyTorch module.
    B = x.shape[0]
    p = PATCH_SIZE
    # Patch extraction (pure layout, stays in XLA inside this same jit):
    # matches Conv2d(kernel=stride=p) + flatten(2).transpose(1, 2).
    patches = x.reshape(B, IN_CHANNELS, IMG_SIZE // p, p, IMG_SIZE // p, p)
    patches = patches.transpose(0, 2, 4, 1, 3, 5).reshape(B, NUM_PATCHES, CPP)

    tb = min(BATCH_TILE, B)
    bp = pl.cdiv(B, tb) * tb
    patches = jnp.pad(patches, ((0, bp - B), (0, SEQ_PAD - NUM_PATCHES), (0, 0)))
    patches = patches.reshape(bp * SEQ_PAD, CPP).astype(MXU_DTYPE)
    tok_add = jnp.tile(packed["tok_add"], (bp, 1))             # (bp*SEQ_PAD, D)

    rows = tb * SEQ_PAD
    out = pl.pallas_call(
        _make_vit_kernel(tb),
        out_shape=jax.ShapeDtypeStruct((bp, LANES), jnp.float32),
        grid=(bp // tb,),
        in_specs=[
            pl.BlockSpec((rows, CPP), lambda i: (i, 0)),
            pl.BlockSpec((rows, EMBED_DIM), lambda i: (i, 0)),
            pl.BlockSpec((VEC_ROWS, LANES), lambda i: (0, 0)),   # VMEM-resident
            pl.BlockSpec((MAT_ROWS, LANES), lambda i: (0, 0)),   # VMEM-resident
        ],
        out_specs=pl.BlockSpec((tb, LANES), lambda i: (i, 0)),
        compiler_params=pltpu.CompilerParams(
            dimension_semantics=("parallel",)),                  # v7x: both TCs
    )(patches, tok_add, packed["wvec"], packed["wmat"])
    return out[:B, :NUM_CLASSES]


# ---------------- parameters ----------------------------------------------------
def init_params(key):
    keys = iter(jax.random.split(key, 64))

    def nrm(shape, scale=0.02):
        return scale * jax.random.normal(next(keys), shape, dtype=jnp.float32)

    params = {
        # Conv2d weight (E, C, p, p) pre-flattened & transposed -> (C*p*p, E)
        "patch_w": nrm((CPP, EMBED_DIM)),
        "patch_b": jnp.zeros((EMBED_DIM,), jnp.float32),
        "cls": nrm((EMBED_DIM,), 1.0),               # torch.randn
        "pos": nrm((SEQ, EMBED_DIM), 1.0),           # torch.randn
        "ln_w": jnp.ones((EMBED_DIM,), jnp.float32),
        "ln_b": jnp.zeros((EMBED_DIM,), jnp.float32),
        "fc_w": nrm((EMBED_DIM, NUM_CLASSES)),       # fc.weight.T
        "fc_b": jnp.zeros((NUM_CLASSES,), jnp.float32),
        "layers": [],
    }
    for _ in range(DEPTH):
        params["layers"].append(dict(
            ln1_w=jnp.ones((EMBED_DIM,), jnp.float32),
            ln1_b=jnp.zeros((EMBED_DIM,), jnp.float32),
            w_qkv=nrm((EMBED_DIM, 3 * EMBED_DIM)),   # in_proj_weight.T
            b_qkv=jnp.zeros((3 * EMBED_DIM,), jnp.float32),
            w_o=nrm((EMBED_DIM, EMBED_DIM)),         # out_proj.weight.T
            b_o=jnp.zeros((EMBED_DIM,), jnp.float32),
            ln2_w=jnp.ones((EMBED_DIM,), jnp.float32),
            ln2_b=jnp.zeros((EMBED_DIM,), jnp.float32),
            w1=nrm((EMBED_DIM, MLP_DIM)),            # fc1.weight.T
            b1=jnp.zeros((MLP_DIM,), jnp.float32),
            w2=nrm((MLP_DIM, EMBED_DIM)),            # fc2.weight.T
            b2=jnp.zeros((EMBED_DIM,), jnp.float32),
        ))
    return params


if __name__ == "__main__":
    key = jax.random.PRNGKey(0)
    k_x, k_p = jax.random.split(key)
    x = jax.random.normal(k_x, (2, IN_CHANNELS, IMG_SIZE, IMG_SIZE), dtype=jnp.float32)
    params = init_params(k_p)
    packed = pack_params(params)

    logits = vit_forward(x, packed)
    jax.block_until_ready(logits)
    assert logits.shape == (2, NUM_CLASSES)
    assert bool(jnp.all(jnp.isfinite(logits)))
    print("KERNEL_OK")
</pallas_src>

<mosaic_0001>
module attributes {stable_mosaic.version = 11 : i64} {
  func.func @vit_kernel(%arg0: i32, %arg1: memref<48x64xbf16, #tpu.memory_space<vmem>>, %arg2: memref<48x32xf32, #tpu.memory_space<vmem>>, %arg3: memref<24x128xf32, #tpu.memory_space<vmem>>, %arg4: memref<416x128xbf16, #tpu.memory_space<vmem>>, %arg5: memref<2x128xf32, #tpu.memory_space<vmem>>) attributes {dimension_semantics = [#tpu.dimension_semantics<parallel>], iteration_bounds = array<i64: 1>, scalar_prefetch = 0 : i64, scratch_operands = 0 : i64, tpu.core_type = #tpu.core_type<tc>, window_params = [{transform_indices = @transform_0, window_bounds = array<i64: 48, 64>}, {transform_indices = @transform_1, window_bounds = array<i64: 48, 32>}, {pipeline_mode = #tpu.pipeline_mode<synchronous>, transform_indices = @transform_2, window_bounds = array<i64: 24, 128>}, {pipeline_mode = #tpu.pipeline_mode<synchronous>, transform_indices = @transform_3, window_bounds = array<i64: 416, 128>}, {transform_indices = @transform_4, window_bounds = array<i64: 2, 128>}]} {
    %c0 = arith.constant 0 : index
    %c0_0 = arith.constant 0 : index
    %0 = vector.load %arg4[%c0, %c0_0] : memref<416x128xbf16, #tpu.memory_space<vmem>>, vector<64x32xbf16>
    %c0_1 = arith.constant 0 : index
    %c0_2 = arith.constant 0 : index
    %1 = vector.load %arg1[%c0_1, %c0_2] : memref<48x64xbf16, #tpu.memory_space<vmem>>, vector<48x64xbf16>
    %cst = arith.constant dense<0.000000e+00> : vector<48x32xf32>
    %2 = tpu.matmul %1, %0, %cst {dimension_numbers = #tpu.dot_dimension_numbers<[1], [0], [0], [1], [0, 0, 1, 1], [], []>} : vector<48x64xbf16>, vector<64x32xbf16>, vector<48x32xf32> -> vector<48x32xf32>
    %c0_3 = arith.constant 0 : index
    %c0_4 = arith.constant 0 : index
    %3 = vector.load %arg2[%c0_3, %c0_4] : memref<48x32xf32, #tpu.memory_space<vmem>>, vector<48x32xf32>
    %4 = arith.addf %2, %3 : vector<48x32xf32>
    %c4 = arith.constant 4 : index
    %c0_5 = arith.constant 0 : index
    %5 = vector.load %arg3[%c4, %c0_5] : memref<24x128xf32, #tpu.memory_space<vmem>>, vector<4x32xf32>
    %6 = vector.shape_cast %5 : vector<4x32xf32> to vector<1x4x1x32xf32>
    %7 = vector.shape_cast %6 : vector<1x4x1x32xf32> to vector<1x4x1x32xf32>
    %8 = vector.broadcast %7 : vector<1x4x1x32xf32> to vector<1x4x24x32xf32>
    %c3 = arith.constant 3 : index
    %c0_6 = arith.constant 0 : index
    %9 = vector.load %arg3[%c3, %c0_6] : memref<24x128xf32, #tpu.memory_space<vmem>>, vector<1x24xf32>
    %10 = vector.shape_cast %9 : vector<1x24xf32> to vector<1x1x24xf32>
    %11 = vector.shape_cast %10 : vector<1x1x24xf32> to vector<1x1x24xf32>
    %12 = vector.broadcast %11 : vector<1x1x24xf32> to vector<1x24x24xf32>
    %c96 = arith.constant 96 : index
    %c0_7 = arith.constant 0 : index
    %13 = vector.load %arg4[%c96, %c0_7] : memref<416x128xbf16, #tpu.memory_space<vmem>>, vector<32x96xbf16>
    %c128 = arith.constant 128 : index
    %c0_8 = arith.constant 0 : index
    %14 = vector.load %arg4[%c128, %c0_8] : memref<416x128xbf16, #tpu.memory_space<vmem>>, vector<32x32xbf16>
    %c160 = arith.constant 160 : index
    %c0_9 = arith.constant 0 : index
    %15 = vector.load %arg4[%c160, %c0_9] : memref<416x128xbf16, #tpu.memory_space<vmem>>, vector<32x64xbf16>
    %c192 = arith.constant 192 : index
    %c0_10 = arith.constant 0 : index
    %16 = vector.load %arg4[%c192, %c0_10] : memref<416x128xbf16, #tpu.memory_space<vmem>>, vector<64x32xbf16>
    %c8 = arith.constant 8 : index
    %c0_11 = arith.constant 0 : index
    %17 = vector.load %arg3[%c8, %c0_11] : memref<24x128xf32, #tpu.memory_space<vmem>>, vector<1x32xf32>
    %c9 = arith.constant 9 : index
    %c0_12 = arith.constant 0 : index
    %18 = vector.load %arg3[%c9, %c0_12] : memref<24x128xf32, #tpu.memory_space<vmem>>, vector<1x32xf32>
    %cst_13 = arith.constant dense<0.000000e+00> : vector<48xf32>
    %19 = vector.multi_reduction <add>, %4, %cst_13 [1] : vector<48x32xf32> to vector<48xf32>
    %20 = vector.shape_cast %19 : vector<48xf32> to vector<48x1xf32>
    %cst_14 = arith.constant 3.200000e+01 : f32
    %21 = vector.broadcast %cst_14 : f32 to vector<48x1xf32>
    %22 = arith.divf %20, %21 : vector<48x1xf32>
    %23 = vector.broadcast %22 : vector<48x1xf32> to vector<48x32xf32>
    %24 = arith.subf %4, %23 : vector<48x32xf32>
    %25 = arith.mulf %24, %24 : vector<48x32xf32>
    %cst_15 = arith.constant dense<0.000000e+00> : vector<48xf32>
    %26 = vector.multi_reduction <add>, %25, %cst_15 [1] : vector<48x32xf32> to vector<48xf32>
    %27 = vector.shape_cast %26 : vector<48xf32> to vector<48x1xf32>
    %cst_16 = arith.constant 3.200000e+01 : f32
    %28 = vector.broadcast %cst_16 : f32 to vector<48x1xf32>
    %29 = arith.divf %27, %28 : vector<48x1xf32>
    %30 = vector.broadcast %22 : vector<48x1xf32> to vector<48x32xf32>
    %31 = arith.subf %4, %30 : vector<48x32xf32>
    %cst_17 = arith.constant 9.99999974E-6 : f32
    %32 = vector.broadcast %cst_17 : f32 to vector<48x1xf32>
    %33 = arith.addf %29, %32 : vector<48x1xf32>
    %34 = math.rsqrt %33 : vector<48x1xf32>
    %35 = vector.broadcast %34 : vector<48x1xf32> to vector<48x32xf32>
    %36 = arith.mulf %31, %35 : vector<48x32xf32>
    %37 = vector.broadcast %17 : vector<1x32xf32> to vector<48x32xf32>
    %38 = arith.mulf %36, %37 : vector<48x32xf32>
    %39 = vector.broadcast %18 : vector<1x32xf32> to vector<48x32xf32>
    %40 = arith.addf %38, %39 : vector<48x32xf32>
    %41 = arith.truncf %40 : vector<48x32xf32> to vector<48x32xbf16>
    %cst_18 = arith.constant dense<0.000000e+00> : vector<48x96xf32>
    %42 = tpu.matmul %41, %13, %cst_18 {dimension_numbers = #tpu.dot_dimension_numbers<[1], [0], [0], [1], [0, 0, 1, 1], [], []>} : vector<48x32xbf16>, vector<32x96xbf16>, vector<48x96xf32> -> vector<48x96xf32>
    %c10 = arith.constant 10 : index
    %c0_19 = arith.constant 0 : index
    %43 = vector.load %arg3[%c10, %c0_19] : memref<24x128xf32, #tpu.memory_space<vmem>>, vector<1x96xf32>
    %44 = vector.broadcast %43 : vector<1x96xf32> to vector<48x96xf32>
    %45 = arith.addf %42, %44 : vector<48x96xf32>
    %46 = vector.extract_strided_slice %45 {offsets = [0, 0], sizes = [48, 32], strides = [1, 1]} : vector<48x96xf32> to vector<48x32xf32>
    %47 = vector.shape_cast %46 : vector<48x32xf32> to vector<2x1x24x32xf32>
    %48 = vector.extract_strided_slice %45 {offsets = [0, 32], sizes = [48, 32], strides = [1, 1]} : vector<48x96xf32> to vector<48x32xf32>
    %49 = vector.shape_cast %48 : vector<48x32xf32> to vector<2x1x24x32xf32>
    %50 = vector.extract_strided_slice %45 {offsets = [0, 64], sizes = [48, 32], strides = [1, 1]} : vector<48x96xf32> to vector<48x32xf32>
    %51 = vector.shape_cast %50 : vector<48x32xf32> to vector<2x1x24x32xf32>
    %52 = vector.broadcast %47 : vector<2x1x24x32xf32> to vector<2x4x24x32xf32>
    %53 = vector.broadcast %8 : vector<1x4x24x32xf32> to vector<2x4x24x32xf32>
    %54 = arith.mulf %52, %53 : vector<2x4x24x32xf32>
    %55 = vector.shape_cast %54 : vector<2x4x24x32xf32> to vector<8x24x32xf32>
    %56 = vector.broadcast %51 : vector<2x1x24x32xf32> to vector<2x4x24x32xf32>
    %57 = vector.broadcast %8 : vector<1x4x24x32xf32> to vector<2x4x24x32xf32>
    %58 = arith.mulf %56, %57 : vector<2x4x24x32xf32>
    %59 = vector.shape_cast %58 : vector<2x4x24x32xf32> to vector<8x24x32xf32>
    %60 = vector.shape_cast %49 : vector<2x1x24x32xf32> to vector<2x1x24x32xf32>
    %61 = vector.broadcast %60 : vector<2x1x24x32xf32> to vector<2x4x24x32xf32>
    %62 = vector.shape_cast %61 : vector<2x4x24x32xf32> to vector<8x24x32xf32>
    %63 = arith.truncf %55 : vector<8x24x32xf32> to vector<8x24x32xbf16>
    %64 = arith.truncf %62 : vector<8x24x32xf32> to vector<8x24x32xbf16>
    "tpu.trace_start"() <{level = 10 : i32, message = "nqd,nkd->nqk"}> : () -> ()
    %cst_20 = arith.constant dense<0.000000e+00> : vector<8x24x24xf32>
    %65 = tpu.matmul %63, %64, %cst_20 {dimension_numbers = #tpu.dot_dimension_numbers<[2], [2], [1], [1], [0, 0, 0, 1, 1, 1], [0], [0]>} : vector<8x24x32xbf16>, vector<8x24x32xbf16>, vector<8x24x24xf32> -> vector<8x24x24xf32>
    "tpu.trace_stop"() : () -> ()
    %cst_21 = arith.constant 0.353553385 : f32
    %66 = vector.broadcast %cst_21 : f32 to vector<8x24x24xf32>
    %67 = arith.mulf %65, %66 : vector<8x24x24xf32>
    %68 = vector.broadcast %12 : vector<1x24x24xf32> to vector<8x24x24xf32>
    %69 = arith.addf %67, %68 : vector<8x24x24xf32>
    %cst_22 = arith.constant dense<0xFF800000> : vector<8x24xf32>
    %70 = vector.multi_reduction <maximumf>, %69, %cst_22 [2] : vector<8x24x24xf32> to vector<8x24xf32>
    %71 = vector.shape_cast %70 : vector<8x24xf32> to vector<8x24x1xf32>
    %72 = vector.broadcast %71 : vector<8x24x1xf32> to vector<8x24x24xf32>
    %73 = arith.subf %69, %72 : vector<8x24x24xf32>
    %74 = math.exp %73 : vector<8x24x24xf32>
    %cst_23 = arith.constant dense<0.000000e+00> : vector<8x24xf32>
    %75 = vector.multi_reduction <add>, %74, %cst_23 [2] : vector<8x24x24xf32> to vector<8x24xf32>
    %76 = vector.shape_cast %75 : vector<8x24xf32> to vector<8x24x1xf32>
    %77 = tpu.reciprocal %76 {approx = true} : vector<8x24x1xf32> -> vector<8x24x1xf32>
    %78 = vector.broadcast %77 : vector<8x24x1xf32> to vector<8x24x24xf32>
    %79 = arith.mulf %74, %78 : vector<8x24x24xf32>
    %80 = arith.truncf %79 : vector<8x24x24xf32> to vector<8x24x24xbf16>
    %81 = arith.truncf %59 : vector<8x24x32xf32> to vector<8x24x32xbf16>
    "tpu.trace_start"() <{level = 10 : i32, message = "nqk,nkd->nqd"}> : () -> ()
    %cst_24 = arith.constant dense<0.000000e+00> : vector<8x24x32xf32>
    %82 = tpu.matmul %80, %81, %cst_24 {dimension_numbers = #tpu.dot_dimension_numbers<[2], [1], [1], [2], [0, 0, 0, 1, 1, 2], [0], [0]>} : vector<8x24x24xbf16>, vector<8x24x32xbf16>, vector<8x24x32xf32> -> vector<8x24x32xf32>
    "tpu.trace_stop"() : () -> ()
    %83 = vector.shape_cast %82 : vector<8x24x32xf32> to vector<2x4x24x32xf32>
    %cst_25 = arith.constant dense<0.000000e+00> : vector<2x24x32xf32>
    %84 = vector.multi_reduction <add>, %83, %cst_25 [1] : vector<2x4x24x32xf32> to vector<2x24x32xf32>
    %85 = vector.shape_cast %84 : vector<2x24x32xf32> to vector<48x32xf32>
    %86 = arith.truncf %85 : vector<48x32xf32> to vector<48x32xbf16>
    %cst_26 = arith.constant dense<0.000000e+00> : vector<48x32xf32>
    %87 = tpu.matmul %86, %14, %cst_26 {dimension_numbers = #tpu.dot_dimension_numbers<[1], [0], [0], [1], [0, 0, 1, 1], [], []>} : vector<48x32xbf16>, vector<32x32xbf16>, vector<48x32xf32> -> vector<48x32xf32>
    %c11 = arith.constant 11 : index
    %c0_27 = arith.constant 0 : index
    %88 = vector.load %arg3[%c11, %c0_27] : memref<24x128xf32, #tpu.memory_space<vmem>>, vector<1x32xf32>
    %89 = vector.broadcast %88 : vector<1x32xf32> to vector<48x32xf32>
    %90 = arith.addf %87, %89 : vector<48x32xf32>
    %91 = arith.addf %4, %90 : vector<48x32xf32>
    %c12 = arith.constant 12 : index
    %c0_28 = arith.constant 0 : index
    %92 = vector.load %arg3[%c12, %c0_28] : memref<24x128xf32, #tpu.memory_space<vmem>>, vector<1x32xf32>
    %c13 = arith.constant 13 : index
    %c0_29 = arith.constant 0 : index
    %93 = vector.load %arg3[%c13, %c0_29] : memref<24x128xf32, #tpu.memory_space<vmem>>, vector<1x32xf32>
    %cst_30 = arith.constant dense<0.000000e+00> : vector<48xf32>
    %94 = vector.multi_reduction <add>, %91, %cst_30 [1] : vector<48x32xf32> to vector<48xf32>
    %95 = vector.shape_cast %94 : vector<48xf32> to vector<48x1xf32>
    %cst_31 = arith.constant 3.200000e+01 : f32
    %96 = vector.broadcast %cst_31 : f32 to vector<48x1xf32>
    %97 = arith.divf %95, %96 : vector<48x1xf32>
    %98 = vector.broadcast %97 : vector<48x1xf32> to vector<48x32xf32>
    %99 = arith.subf %91, %98 : vector<48x32xf32>
    %100 = arith.mulf %99, %99 : vector<48x32xf32>
    %cst_32 = arith.constant dense<0.000000e+00> : vector<48xf32>
    %101 = vector.multi_reduction <add>, %100, %cst_32 [1] : vector<48x32xf32> to vector<48xf32>
    %102 = vector.shape_cast %101 : vector<48xf32> to vector<48x1xf32>
    %cst_33 = arith.constant 3.200000e+01 : f32
    %103 = vector.broadcast %cst_33 : f32 to vector<48x1xf32>
    %104 = arith.divf %102, %103 : vector<48x1xf32>
    %105 = vector.broadcast %97 : vector<48x1xf32> to vector<48x32xf32>
    %106 = arith.subf %91, %105 : vector<48x32xf32>
    %cst_34 = arith.constant 9.99999974E-6 : f32
    %107 = vector.broadcast %cst_34 : f32 to vector<48x1xf32>
    %108 = arith.addf %104, %107 : vector<48x1xf32>
    %109 = math.rsqrt %108 : vector<48x1xf32>
    %110 = vector.broadcast %109 : vector<48x1xf32> to vector<48x32xf32>
    %111 = arith.mulf %106, %110 : vector<48x32xf32>
    %112 = vector.broadcast %92 : vector<1x32xf32> to vector<48x32xf32>
    %113 = arith.mulf %111, %112 : vector<48x32xf32>
    %114 = vector.broadcast %93 : vector<1x32xf32> to vector<48x32xf32>
    %115 = arith.addf %113, %114 : vector<48x32xf32>
    %116 = arith.truncf %115 : vector<48x32xf32> to vector<48x32xbf16>
    %cst_35 = arith.constant dense<0.000000e+00> : vector<48x64xf32>
    %117 = tpu.matmul %116, %15, %cst_35 {dimension_numbers = #tpu.dot_dimension_numbers<[1], [0], [0], [1], [0, 0, 1, 1], [], []>} : vector<48x32xbf16>, vector<32x64xbf16>, vector<48x64xf32> -> vector<48x64xf32>
    %c14 = arith.constant 14 : index
    %c0_36 = arith.constant 0 : index
    %118 = vector.load %arg3[%c14, %c0_36] : memref<24x128xf32, #tpu.memory_space<vmem>>, vector<1x64xf32>
    %119 = vector.broadcast %118 : vector<1x64xf32> to vector<48x64xf32>
    %120 = arith.addf %117, %119 : vector<48x64xf32>
    %cst_37 = arith.constant 5.000000e-01 : f32
    %121 = vector.broadcast %cst_37 : f32 to vector<48x64xf32>
    %122 = arith.mulf %121, %120 : vector<48x64xf32>
    %cst_38 = arith.constant 0.707106769 : f32
    %123 = vector.broadcast %cst_38 : f32 to vector<48x64xf32>
    %124 = arith.mulf %120, %123 : vector<48x64xf32>
    %125 = math.erf %124 : vector<48x64xf32>
    %cst_39 = arith.constant 1.000000e+00 : f32
    %126 = vector.broadcast %cst_39 : f32 to vector<48x64xf32>
    %127 = arith.addf %126, %125 : vector<48x64xf32>
    %128 = arith.mulf %122, %127 : vector<48x64xf32>
    %129 = arith.truncf %128 : vector<48x64xf32> to vector<48x64xbf16>
    %cst_40 = arith.constant dense<0.000000e+00> : vector<48x32xf32>
    %130 = tpu.matmul %129, %16, %cst_40 {dimension_numbers = #tpu.dot_dimension_numbers<[1], [0], [0], [1], [0, 0, 1, 1], [], []>} : vector<48x64xbf16>, vector<64x32xbf16>, vector<48x32xf32> -> vector<48x32xf32>
    %131 = arith.addf %91, %130 : vector<48x32xf32>
    %c15 = arith.constant 15 : index
    %c0_41 = arith.constant 0 : index
    %132 = vector.load %arg3[%c15, %c0_41] : memref<24x128xf32, #tpu.memory_space<vmem>>, vector<1x32xf32>
    %133 = vector.broadcast %132 : vector<1x32xf32> to vector<48x32xf32>
    %134 = arith.addf %131, %133 : vector<48x32xf32>
    %c256 = arith.constant 256 : index
    %c0_42 = arith.constant 0 : index
    %135 = vector.load %arg4[%c256, %c0_42] : memref<416x128xbf16, #tpu.memory_space<vmem>>, vector<32x96xbf16>
    %c288 = arith.constant 288 : index
    %c0_43 = arith.constant 0 : index
    %136 = vector.load %arg4[%c288, %c0_43] : memref<416x128xbf16, #tpu.memory_space<vmem>>, vector<32x32xbf16>
    %c320 = arith.constant 320 : index
    %c0_44 = arith.constant 0 : index
    %137 = vector.load %arg4[%c320, %c0_44] : memref<416x128xbf16, #tpu.memory_space<vmem>>, vector<32x64xbf16>
    %c352 = arith.constant 352 : index
    %c0_45 = arith.constant 0 : index
    %138 = vector.load %arg4[%c352, %c0_45] : memref<416x128xbf16, #tpu.memory_space<vmem>>, vector<64x32xbf16>
    %c16 = arith.constant 16 : index
    %c0_46 = arith.constant 0 : index
    %139 = vector.load %arg3[%c16, %c0_46] : memref<24x128xf32, #tpu.memory_space<vmem>>, vector<1x32xf32>
    %c17 = arith.constant 17 : index
    %c0_47 = arith.constant 0 : index
    %140 = vector.load %arg3[%c17, %c0_47] : memref<24x128xf32, #tpu.memory_space<vmem>>, vector<1x32xf32>
    %cst_48 = arith.constant dense<0.000000e+00> : vector<48xf32>
    %141 = vector.multi_reduction <add>, %134, %cst_48 [1] : vector<48x32xf32> to vector<48xf32>
    %142 = vector.shape_cast %141 : vector<48xf32> to vector<48x1xf32>
    %cst_49 = arith.constant 3.200000e+01 : f32
    %143 = vector.broadcast %cst_49 : f32 to vector<48x1xf32>
    %144 = arith.divf %142, %143 : vector<48x1xf32>
    %145 = vector.broadcast %144 : vector<48x1xf32> to vector<48x32xf32>
    %146 = arith.subf %134, %145 : vector<48x32xf32>
    %147 = arith.mulf %146, %146 : vector<48x32xf32>
    %cst_50 = arith.constant dense<0.000000e+00> : vector<48xf32>
    %148 = vector.multi_reduction <add>, %147, %cst_50 [1] : vector<48x32xf32> to vector<48xf32>
    %149 = vector.shape_cast %148 : vector<48xf32> to vector<48x1xf32>
    %cst_51 = arith.constant 3.200000e+01 : f32
    %150 = vector.broadcast %cst_51 : f32 to vector<48x1xf32>
    %151 = arith.divf %149, %150 : vector<48x1xf32>
    %152 = vector.broadcast %144 : vector<48x1xf32> to vector<48x32xf32>
    %153 = arith.subf %134, %152 : vector<48x32xf32>
    %cst_52 = arith.constant 9.99999974E-6 : f32
    %154 = vector.broadcast %cst_52 : f32 to vector<48x1xf32>
    %155 = arith.addf %151, %154 : vector<48x1xf32>
    %156 = math.rsqrt %155 : vector<48x1xf32>
    %157 = vector.broadcast %156 : vector<48x1xf32> to vector<48x32xf32>
    %158 = arith.mulf %153, %157 : vector<48x32xf32>
    %159 = vector.broadcast %139 : vector<1x32xf32> to vector<48x32xf32>
    %160 = arith.mulf %158, %159 : vector<48x32xf32>
    %161 = vector.broadcast %140 : vector<1x32xf32> to vector<48x32xf32>
    %162 = arith.addf %160, %161 : vector<48x32xf32>
    %163 = arith.truncf %162 : vector<48x32xf32> to vector<48x32xbf16>
    %cst_53 = arith.constant dense<0.000000e+00> : vector<48x96xf32>
    %164 = tpu.matmul %163, %135, %cst_53 {dimension_numbers = #tpu.dot_dimension_numbers<[1], [0], [0], [1], [0, 0, 1, 1], [], []>} : vector<48x32xbf16>, vector<32x96xbf16>, vector<48x96xf32> -> vector<48x96xf32>
    %c18 = arith.constant 18 : index
    %c0_54 = arith.constant 0 : index
    %165 = vector.load %arg3[%c18, %c0_54] : memref<24x128xf32, #tpu.memory_space<vmem>>, vector<1x96xf32>
    %166 = vector.broadcast %165 : vector<1x96xf32> to vector<48x96xf32>
    %167 = arith.addf %164, %166 : vector<48x96xf32>
    %168 = vector.extract_strided_slice %167 {offsets = [0, 0], sizes = [48, 32], strides = [1, 1]} : vector<48x96xf32> to vector<48x32xf32>
    %169 = vector.shape_cast %168 : vector<48x32xf32> to vector<2x1x24x32xf32>
    %170 = vector.extract_strided_slice %167 {offsets = [0, 32], sizes = [48, 32], strides = [1, 1]} : vector<48x96xf32> to vector<48x32xf32>
    %171 = vector.shape_cast %170 : vector<48x32xf32> to vector<2x1x24x32xf32>
    %172 = vector.extract_strided_slice %167 {offsets = [0, 64], sizes = [48, 32], strides = [1, 1]} : vector<48x96xf32> to vector<48x32xf32>
    %173 = vector.shape_cast %172 : vector<48x32xf32> to vector<2x1x24x32xf32>
    %174 = vector.broadcast %169 : vector<2x1x24x32xf32> to vector<2x4x24x32xf32>
    %175 = vector.broadcast %8 : vector<1x4x24x32xf32> to vector<2x4x24x32xf32>
    %176 = arith.mulf %174, %175 : vector<2x4x24x32xf32>
    %177 = vector.shape_cast %176 : vector<2x4x24x32xf32> to vector<8x24x32xf32>
    %178 = vector.broadcast %173 : vector<2x1x24x32xf32> to vector<2x4x24x32xf32>
    %179 = vector.broadcast %8 : vector<1x4x24x32xf32> to vector<2x4x24x32xf32>
    %180 = arith.mulf %178, %179 : vector<2x4x24x32xf32>
    %181 = vector.shape_cast %180 : vector<2x4x24x32xf32> to vector<8x24x32xf32>
    %182 = vector.shape_cast %171 : vector<2x1x24x32xf32> to vector<2x1x24x32xf32>
    %183 = vector.broadcast %182 : vector<2x1x24x32xf32> to vector<2x4x24x32xf32>
    %184 = vector.shape_cast %183 : vector<2x4x24x32xf32> to vector<8x24x32xf32>
    %185 = arith.truncf %177 : vector<8x24x32xf32> to vector<8x24x32xbf16>
    %186 = arith.truncf %184 : vector<8x24x32xf32> to vector<8x24x32xbf16>
    "tpu.trace_start"() <{level = 10 : i32, message = "nqd,nkd->nqk"}> : () -> ()
    %cst_55 = arith.constant dense<0.000000e+00> : vector<8x24x24xf32>
    %187 = tpu.matmul %185, %186, %cst_55 {dimension_numbers = #tpu.dot_dimension_numbers<[2], [2], [1], [1], [0, 0, 0, 1, 1, 1], [0], [0]>} : vector<8x24x32xbf16>, vector<8x24x32xbf16>, vector<8x24x24xf32> -> vector<8x24x24xf32>
    "tpu.trace_stop"() : () -> ()
    %cst_56 = arith.constant 0.353553385 : f32
    %188 = vector.broadcast %cst_56 : f32 to vector<8x24x24xf32>
    %189 = arith.mulf %187, %188 : vector<8x24x24xf32>
    %190 = vector.broadcast %12 : vector<1x24x24xf32> to vector<8x24x24xf32>
    %191 = arith.addf %189, %190 : vector<8x24x24xf32>
    %cst_57 = arith.constant dense<0xFF800000> : vector<8x24xf32>
    %192 = vector.multi_reduction <maximumf>, %191, %cst_57 [2] : vector<8x24x24xf32> to vector<8x24xf32>
    %193 = vector.shape_cast %192 : vector<8x24xf32> to vector<8x24x1xf32>
    %194 = vector.broadcast %193 : vector<8x24x1xf32> to vector<8x24x24xf32>
    %195 = arith.subf %191, %194 : vector<8x24x24xf32>
    %196 = math.exp %195 : vector<8x24x24xf32>
    %cst_58 = arith.constant dense<0.000000e+00> : vector<8x24xf32>
    %197 = vector.multi_reduction <add>, %196, %cst_58 [2] : vector<8x24x24xf32> to vector<8x24xf32>
    %198 = vector.shape_cast %197 : vector<8x24xf32> to vector<8x24x1xf32>
    %199 = tpu.reciprocal %198 {approx = true} : vector<8x24x1xf32> -> vector<8x24x1xf32>
    %200 = vector.broadcast %199 : vector<8x24x1xf32> to vector<8x24x24xf32>
    %201 = arith.mulf %196, %200 : vector<8x24x24xf32>
    %202 = arith.truncf %201 : vector<8x24x24xf32> to vector<8x24x24xbf16>
    %203 = arith.truncf %181 : vector<8x24x32xf32> to vector<8x24x32xbf16>
    "tpu.trace_start"() <{level = 10 : i32, message = "nqk,nkd->nqd"}> : () -> ()
    %cst_59 = arith.constant dense<0.000000e+00> : vector<8x24x32xf32>
    %204 = tpu.matmul %202, %203, %cst_59 {dimension_numbers = #tpu.dot_dimension_numbers<[2], [1], [1], [2], [0, 0, 0, 1, 1, 2], [0], [0]>} : vector<8x24x24xbf16>, vector<8x24x32xbf16>, vector<8x24x32xf32> -> vector<8x24x32xf32>
    "tpu.trace_stop"() : () -> ()
    %205 = vector.shape_cast %204 : vector<8x24x32xf32> to vector<2x4x24x32xf32>
    %cst_60 = arith.constant dense<0.000000e+00> : vector<2x24x32xf32>
    %206 = vector.multi_reduction <add>, %205, %cst_60 [1] : vector<2x4x24x32xf32> to vector<2x24x32xf32>
    %207 = vector.shape_cast %206 : vector<2x24x32xf32> to vector<48x32xf32>
    %208 = arith.truncf %207 : vector<48x32xf32> to vector<48x32xbf16>
    %cst_61 = arith.constant dense<0.000000e+00> : vector<48x32xf32>
    %209 = tpu.matmul %208, %136, %cst_61 {dimension_numbers = #tpu.dot_dimension_numbers<[1], [0], [0], [1], [0, 0, 1, 1], [], []>} : vector<48x32xbf16>, vector<32x32xbf16>, vector<48x32xf32> -> vector<48x32xf32>
    %c19 = arith.constant 19 : index
    %c0_62 = arith.constant 0 : index
    %210 = vector.load %arg3[%c19, %c0_62] : memref<24x128xf32, #tpu.memory_space<vmem>>, vector<1x32xf32>
    %211 = vector.broadcast %210 : vector<1x32xf32> to vector<48x32xf32>
    %212 = arith.addf %209, %211 : vector<48x32xf32>
    %213 = arith.addf %134, %212 : vector<48x32xf32>
    %c20 = arith.constant 20 : index
    %c0_63 = arith.constant 0 : index
    %214 = vector.load %arg3[%c20, %c0_63] : memref<24x128xf32, #tpu.memory_space<vmem>>, vector<1x32xf32>
    %c21 = arith.constant 21 : index
    %c0_64 = arith.constant 0 : index
    %215 = vector.load %arg3[%c21, %c0_64] : memref<24x128xf32, #tpu.memory_space<vmem>>, vector<1x32xf32>
    %cst_65 = arith.constant dense<0.000000e+00> : vector<48xf32>
    %216 = vector.multi_reduction <add>, %213, %cst_65 [1] : vector<48x32xf32> to vector<48xf32>
    %217 = vector.shape_cast %216 : vector<48xf32> to vector<48x1xf32>
    %cst_66 = arith.constant 3.200000e+01 : f32
    %218 = vector.broadcast %cst_66 : f32 to vector<48x1xf32>
    %219 = arith.divf %217, %218 : vector<48x1xf32>
    %220 = vector.broadcast %219 : vector<48x1xf32> to vector<48x32xf32>
    %221 = arith.subf %213, %220 : vector<48x32xf32>
    %222 = arith.mulf %221, %221 : vector<48x32xf32>
    %cst_67 = arith.constant dense<0.000000e+00> : vector<48xf32>
    %223 = vector.multi_reduction <add>, %222, %cst_67 [1] : vector<48x32xf32> to vector<48xf32>
    %224 = vector.shape_cast %223 : vector<48xf32> to vector<48x1xf32>
    %cst_68 = arith.constant 3.200000e+01 : f32
    %225 = vector.broadcast %cst_68 : f32 to vector<48x1xf32>
    %226 = arith.divf %224, %225 : vector<48x1xf32>
    %227 = vector.broadcast %219 : vector<48x1xf32> to vector<48x32xf32>
    %228 = arith.subf %213, %227 : vector<48x32xf32>
    %cst_69 = arith.constant 9.99999974E-6 : f32
    %229 = vector.broadcast %cst_69 : f32 to vector<48x1xf32>
    %230 = arith.addf %226, %229 : vector<48x1xf32>
    %231 = math.rsqrt %230 : vector<48x1xf32>
    %232 = vector.broadcast %231 : vector<48x1xf32> to vector<48x32xf32>
    %233 = arith.mulf %228, %232 : vector<48x32xf32>
    %234 = vector.broadcast %214 : vector<1x32xf32> to vector<48x32xf32>
    %235 = arith.mulf %233, %234 : vector<48x32xf32>
    %236 = vector.broadcast %215 : vector<1x32xf32> to vector<48x32xf32>
    %237 = arith.addf %235, %236 : vector<48x32xf32>
    %238 = arith.truncf %237 : vector<48x32xf32> to vector<48x32xbf16>
    %cst_70 = arith.constant dense<0.000000e+00> : vector<48x64xf32>
    %239 = tpu.matmul %238, %137, %cst_70 {dimension_numbers = #tpu.dot_dimension_numbers<[1], [0], [0], [1], [0, 0, 1, 1], [], []>} : vector<48x32xbf16>, vector<32x64xbf16>, vector<48x64xf32> -> vector<48x64xf32>
    %c22 = arith.constant 22 : index
    %c0_71 = arith.constant 0 : index
    %240 = vector.load %arg3[%c22, %c0_71] : memref<24x128xf32, #tpu.memory_space<vmem>>, vector<1x64xf32>
    %241 = vector.broadcast %240 : vector<1x64xf32> to vector<48x64xf32>
    %242 = arith.addf %239, %241 : vector<48x64xf32>
    %cst_72 = arith.constant 5.000000e-01 : f32
    %243 = vector.broadcast %cst_72 : f32 to vector<48x64xf32>
    %244 = arith.mulf %243, %242 : vector<48x64xf32>
    %cst_73 = arith.constant 0.707106769 : f32
    %245 = vector.broadcast %cst_73 : f32 to vector<48x64xf32>
    %246 = arith.mulf %242, %245 : vector<48x64xf32>
    %247 = math.erf %246 : vector<48x64xf32>
    %cst_74 = arith.constant 1.000000e+00 : f32
    %248 = vector.broadcast %cst_74 : f32 to vector<48x64xf32>
    %249 = arith.addf %248, %247 : vector<48x64xf32>
    %250 = arith.mulf %244, %249 : vector<48x64xf32>
    %251 = arith.truncf %250 : vector<48x64xf32> to vector<48x64xbf16>
    %cst_75 = arith.constant dense<0.000000e+00> : vector<48x32xf32>
    %252 = tpu.matmul %251, %138, %cst_75 {dimension_numbers = #tpu.dot_dimension_numbers<[1], [0], [0], [1], [0, 0, 1, 1], [], []>} : vector<48x64xbf16>, vector<64x32xbf16>, vector<48x32xf32> -> vector<48x32xf32>
    %253 = arith.addf %213, %252 : vector<48x32xf32>
    %c23 = arith.constant 23 : index
    %c0_76 = arith.constant 0 : index
    %254 = vector.load %arg3[%c23, %c0_76] : memref<24x128xf32, #tpu.memory_space<vmem>>, vector<1x32xf32>
    %255 = vector.broadcast %254 : vector<1x32xf32> to vector<48x32xf32>
    %256 = arith.addf %253, %255 : vector<48x32xf32>
    %257 = vector.shape_cast %256 : vector<48x32xf32> to vector<2x24x32xf32>
    %258 = vector.extract_strided_slice %257 {offsets = [0, 16, 0], sizes = [2, 1, 32], strides = [1, 1, 1]} : vector<2x24x32xf32> to vector<2x1x32xf32>
    %259 = vector.shape_cast %258 : vector<2x1x32xf32> to vector<2x32xf32>
    %c0_77 = arith.constant 0 : index
    %c0_78 = arith.constant 0 : index
    %260 = vector.load %arg3[%c0_77, %c0_78] : memref<24x128xf32, #tpu.memory_space<vmem>>, vector<1x32xf32>
    %c1 = arith.constant 1 : index
    %c0_79 = arith.constant 0 : index
    %261 = vector.load %arg3[%c1, %c0_79] : memref<24x128xf32, #tpu.memory_space<vmem>>, vector<1x32xf32>
    %cst_80 = arith.constant dense<0.000000e+00> : vector<2xf32>
    %262 = vector.multi_reduction <add>, %259, %cst_80 [1] : vector<2x32xf32> to vector<2xf32>
    %263 = vector.shape_cast %262 : vector<2xf32> to vector<2x1xf32>
    %cst_81 = arith.constant 3.200000e+01 : f32
    %264 = vector.broadcast %cst_81 : f32 to vector<2x1xf32>
    %265 = arith.divf %263, %264 : vector<2x1xf32>
    %266 = vector.broadcast %265 : vector<2x1xf32> to vector<2x32xf32>
    %267 = arith.subf %259, %266 : vector<2x32xf32>
    %268 = arith.mulf %267, %267 : vector<2x32xf32>
    %cst_82 = arith.constant dense<0.000000e+00> : vector<2xf32>
    %269 = vector.multi_reduction <add>, %268, %cst_82 [1] : vector<2x32xf32> to vector<2xf32>
    %270 = vector.shape_cast %269 : vector<2xf32> to vector<2x1xf32>
    %cst_83 = arith.constant 3.200000e+01 : f32
    %271 = vector.broadcast %cst_83 : f32 to vector<2x1xf32>
    %272 = arith.divf %270, %271 : vector<2x1xf32>
    %273 = vector.broadcast %265 : vector<2x1xf32> to vector<2x32xf32>
    %274 = arith.subf %259, %273 : vector<2x32xf32>
    %cst_84 = arith.constant 9.99999974E-6 : f32
    %275 = vector.broadcast %cst_84 : f32 to vector<2x1xf32>
    %276 = arith.addf %272, %275 : vector<2x1xf32>
    %277 = math.rsqrt %276 : vector<2x1xf32>
    %278 = vector.broadcast %277 : vector<2x1xf32> to vector<2x32xf32>
    %279 = arith.mulf %274, %278 : vector<2x32xf32>
    %280 = vector.broadcast %260 : vector<1x32xf32> to vector<2x32xf32>
    %281 = arith.mulf %279, %280 : vector<2x32xf32>
    %282 = vector.broadcast %261 : vector<1x32xf32> to vector<2x32xf32>
    %283 = arith.addf %281, %282 : vector<2x32xf32>
    %c64 = arith.constant 64 : index
    %c0_85 = arith.constant 0 : index
    %284 = vector.load %arg4[%c64, %c0_85] : memref<416x128xbf16, #tpu.memory_space<vmem>>, vector<32x128xbf16>
    %285 = arith.truncf %283 : vector<2x32xf32> to vector<2x32xbf16>
    %cst_86 = arith.constant dense<0.000000e+00> : vector<2x128xf32>
    %286 = tpu.matmul %285, %284, %cst_86 {dimension_numbers = #tpu.dot_dimension_numbers<[1], [0], [0], [1], [0, 0, 1, 1], [], []>} : vector<2x32xbf16>, vector<32x128xbf16>, vector<2x128xf32> -> vector<2x128xf32>
    %c2 = arith.constant 2 : index
    %c0_87 = arith.constant 0 : index
    %287 = vector.load %arg3[%c2, %c0_87] : memref<24x128xf32, #tpu.memory_space<vmem>>, vector<1x128xf32>
    %288 = vector.broadcast %287 : vector<1x128xf32> to vector<2x128xf32>
    %289 = arith.addf %286, %288 : vector<2x128xf32>
    %c0_88 = arith.constant 0 : index
    %c0_89 = arith.constant 0 : index
    %290 = vector.load %arg5[%c0_88, %c0_89] : memref<2x128xf32, #tpu.memory_space<vmem>>, vector<2x128xf32>
    tpu.vector_store %arg5[%c0_88, %c0_89], %289 {strides = array<i32>} : memref<2x128xf32, #tpu.memory_space<vmem>>, vector<2x128xf32>,
    return
  }
  func.func @transform_0(%arg0: i32) -> (i32, i32) {
    %c0_i32 = arith.constant 0 : i32
    %c0_i32_0 = arith.constant 0 : i32
    return %arg0, %c0_i32 : i32, i32
  }
  func.func @transform_1(%arg0: i32) -> (i32, i32) {
    %c0_i32 = arith.constant 0 : i32
    %c0_i32_0 = arith.constant 0 : i32
    return %arg0, %c0_i32 : i32, i32
  }
  func.func @transform_2(%arg0: i32) -> (i32, i32) {
    %c0_i32 = arith.constant 0 : i32
    %c0_i32_0 = arith.constant 0 : i32
    %c0_i32_1 = arith.constant 0 : i32
    return %c0_i32, %c0_i32_0 : i32, i32
  }
  func.func @transform_3(%arg0: i32) -> (i32, i32) {
    %c0_i32 = arith.constant 0 : i32
    %c0_i32_0 = arith.constant 0 : i32
    %c0_i32_1 = arith.constant 0 : i32
    return %c0_i32, %c0_i32_0 : i32, i32
  }
  func.func @transform_4(%arg0: i32) -> (i32, i32) {
    %c0_i32 = arith.constant 0 : i32
    %c0_i32_0 = arith.constant 0 : i32
    return %arg0, %c0_i32 : i32, i32
  }
}

</mosaic_0001>

<llo_original>
// kernel: vit_forward.1
$region0: #{vit_forward.1}
  #allocation0 [shape = 'u32[]', space=smem, size = 0x4, offset = 0x4, fixed_abs, tag = 'smem constant byte address 0x4 - core index']
  #allocation1 [shape = 'u32[144,128]{1,0:T(1,128)}', space=vmem, size = 0x12000, scoped, tag = 'internal scratch']
  %s0 = inlined_call_operand.vmem [shape: bf16[48,64], index: 0, kind: input, shape index: {}]
  %s1 = inlined_call_operand.vmem [shape: f32[48,32], index: 1, kind: input, shape index: {}]
  %s2 = inlined_call_operand.vmem [shape: f32[24,128], index: 2, kind: input, shape index: {}]
  %s3 = inlined_call_operand.vmem [shape: bf16[416,128], index: 3, kind: input, shape index: {}]
  %s4 = inlined_call_operand.hbm [shape: f32[2,128], index: 4, kind: output, shape index: {}]
  %s5 = sld [smem:[#allocation0]]
  $region26: #{vit_forward.1} parent=0
    _
  %s7 = ssub.s32 1, %s5
  %s8 = scalar_select 0, %s7, %s5
  $region1: #{vit_forward.1} parent=0
    #allocation2 [shape = 'u8[1024]{0}', space=vmem, size = 0x400, scoped, tag = 'output window, operand 0, single buffered']
    #allocation3 [shape = 's32[1]{0}', space=sflag, size = 0x4, scoped, tag = 'scoped memory for vit_forward.1']
    %9 = vsyncpa [#allocation3], 0
    // Predicated region
    $region2: #{vit_forward.1} parent=1 // pred_check
      _
    $region3: #{vit_forward.1} parent=1 // pred_check_branch
      %11 = sbr.rel (0) target = $region5
    $region4: #{vit_forward.1} parent=1 // pred_region
      _
    $region5: #{vit_forward.1} parent=1 // pred_fallthru
      _
    // Predicated region
    $region6: #{vit_forward.1} parent=1 // pred_check
      _
    $region7: #{vit_forward.1} parent=1 // pred_check_branch
      %13 = sbr.rel (0) target = $region9
    $region8: #{vit_forward.1} parent=1 // pred_region
      _
    $region9: #{vit_forward.1} parent=1 // pred_fallthru
      _
    // Predicated region
    $region10: #{vit_forward.1} parent=1 // pred_check
      _
    $region11: #{vit_forward.1} parent=1 // pred_check_branch
      %15 = sbr.rel (0) target = $region13
    $region12: #{vit_forward.1} parent=1 // pred_region
      _
    $region13: #{vit_forward.1} parent=1 // pred_fallthru
      _
    // Predicated region
    $region14: #{vit_forward.1} parent=1 // pred_check
      _
    $region15: #{vit_forward.1} parent=1 // pred_check_branch
      %17 = sbr.rel (0) target = $region17
    $region16: #{vit_forward.1} parent=1 // pred_region
      _
    $region17: #{vit_forward.1} parent=1 // pred_fallthru
      _
    %v19 = vld [vmem:[%s3] sm:$0xf]
    %v20 = vld [vmem:[%s3 + $0x4] sm:$0xf]
    %v21 = vld [vmem:[%s3 + $0x8] sm:$0xf]
    %v22 = vld [vmem:[%s3 + $0xc] sm:$0xf]
    %v23 = vld [vmem:[%s3 + $0x10] sm:$0xf]
    %v24 = vld [vmem:[%s3 + $0x14] sm:$0xf]
    %v25 = vld [vmem:[%s3 + $0x18] sm:$0xf]
    %v26 = vld [vmem:[%s3 + $0x1c] sm:$0xf]
    %v27 = vld [vmem:[%s0] sm:$0xf]
    %v28 = vld [vmem:[%s0 + $0x4] sm:$0xf]
    %v29 = vld [vmem:[%s0 + $0x8] sm:$0xf]
    %v30 = vld [vmem:[%s0 + $0xc] sm:$0xf]
    %v31 = vld [vmem:[%s0 + $0x10] sm:$0xf]
    %v32 = vld [vmem:[%s0 + $0x14] sm:$0xf]
    %v33 = vld [vmem:[%s1] sm:$0xff]
    %v34 = vld [vmem:[%s1 + $0x8] sm:$0xff]
    %v35 = vld [vmem:[%s1 + $0x10] sm:$0xff]
    %v36 = vld [vmem:[%s1 + $0x18] sm:$0xff]
    %v37 = vld [vmem:[%s1 + $0x20] sm:$0xff]
    %v38 = vld [vmem:[%s1 + $0x28] sm:$0xff]
    %v45 = vunpack.c.l.b16 %v27
    %v46 = vunpack.c.l.b16 %v28
    %v47 = vunpack.c.l.b16 %v29
    %v48 = vunpack.c.l.b16 %v30
    %v49 = vunpack.c.l.b16 %v31
    %v50 = vunpack.c.l.b16 %v32
    %v51 = vpack.c.b16 %v46, %v45
    %v52 = vpack.c.b16 %v48, %v47
    %v53 = vpack.c.b16 %v50, %v49
    %v62 = vunpack.c.l.b16 %v19
    %v63 = vunpack.c.l.b16 %v20
    %v64 = vunpack.c.l.b16 %v21
    %v65 = vunpack.c.l.b16 %v22
    %v66 = vunpack.c.l.b16 %v23
    %v67 = vunpack.c.l.b16 %v24
    %v68 = vunpack.c.l.b16 %v25
    %v69 = vunpack.c.l.b16 %v26
    %v70 = vpack.c.b16 %v63, %v62
    %v71 = vpack.c.b16 %v65, %v64
    %v72 = vpack.c.b16 %v67, %v66
    %v73 = vpack.c.b16 %v69, %v68
    %vm78 = vcmask 523264
    %v80 = vsel %vm78, %v51, 0
    %v83 = vsel %vm78, %v52, 0
    %v86 = vsel %vm78, %v53, 0
    %88 = vmatprep.subr.bf16.mxu0 0
    %89 = vmatpush1.bf16.msra.mxu0 %v70
    %90 = vmatprep.subr.bf16.mxu0 0
    %91 = vmatpush1.bf16.msra.mxu0 %v71
    %92 = vmatprep.subr.bf16.mxu0 0
    %93 = vmatpush1.bf16.msra.mxu0 %v72
    %94 = vmatprep.subr.bf16.mxu0 0
    %95 = vmatpush1.bf16.msra.mxu0 %v73
    %96 = vmatprep.subr.bf16.mxu0 0
    %97 = vmatpush1.bf16.msra.mxu0 0
    %98 = vmatprep.subr.bf16.mxu0 0
    %99 = vmatpush1.bf16.msra.mxu0 0
    %100 = vmatprep.subr.bf16.mxu0 0
    %101 = vmatpush1.bf16.msra.mxu0 0
    %102 = vmatprep.subr.bf16.mxu0 0
    %103 = vmatpush1.bf16.msra.mxu0 0
    %104 = vmatprep.subr.bf16.mxu0 0
    %105 = vmatpush1.bf16.msra.mxu0 0
    %106 = vmatprep.subr.bf16.mxu0 0
    %107 = vmatpush1.bf16.msra.mxu0 0
    %108 = vmatprep.subr.bf16.mxu0 0
    %109 = vmatpush1.bf16.msra.mxu0 0
    %110 = vmatprep.subr.bf16.mxu0 0
    %111 = vmatpush1.bf16.msra.mxu0 0
    %112 = vmatprep.subr.bf16.mxu0 0
    %113 = vmatpush1.bf16.msra.mxu0 0
    %114 = vmatprep.subr.bf16.mxu0 0
    %115 = vmatpush1.bf16.msra.mxu0 0
    %116 = vmatprep.subr.bf16.mxu0 0
    %117 = vmatpush1.bf16.msra.mxu0 0
    %118 = vmatprep.subr.bf16.mxu0 0
    %119 = vmatpush1.bf16.msra.mxu0 0
    %120 = vmatprep.mubr.bf16.mxu0 0
    %121 = vmatmul.mubr.bf16.gmra.mrb[0].mxu0 %v80
    %v122 = vpop.f32.mrb[0].mxu0
    %v123 = vadd.f32 %v33, %v122
    %v124 = vpop.f32.mrb[0].mxu0
    %v125 = vpop.f32.mrb[0].mxu0
    %v126 = vadd.f32 %v34, %v125
    %v127 = vpop.f32.mrb[0].mxu0
    %128 = vmatprep.mubr.bf16.mxu0 0
    %129 = vmatmul.mubr.bf16.gmra.mrb[0].mxu0 %v83
    %v130 = vpop.f32.mrb[0].mxu0
    %v131 = vadd.f32 %v35, %v130
    %v132 = vpop.f32.mrb[0].mxu0
    %v133 = vpop.f32.mrb[0].mxu0
    %v134 = vadd.f32 %v36, %v133
    %v135 = vpop.f32.mrb[0].mxu0
    %136 = vmatprep.mubr.bf16.mxu0 0
    %137 = vmatmul.mubr.bf16.gmra.mrb[0].mxu0 %v86
    %v138 = vpop.f32.mrb[0].mxu0
    %v139 = vadd.f32 %v37, %v138
    %v140 = vpop.f32.mrb[0].mxu0
    %v141 = vpop.f32.mrb[0].mxu0
    %v142 = vadd.f32 %v38, %v141
    %v143 = vpop.f32.mrb[0].mxu0
    %144 = vdwg.mxu0
    %v145 = vld [vmem:[%s2 + $0x4] sm:$0xf]
    %v148 = vunpack.c.l.s4 1966171168
    %v149 = vunpack.c.0.s8 %v148
    %v150 = vlaneseq
    %v151 = vshrl.u32 %v150, 7
    %v152 = vsub.s32 %v149, %v151
    %v153 = vrot.slane %v145, %v152
    %v154 = vcombine.high %v153, %v153
    %v156 = vunpack.c.l.s4 1966171168
    %v157 = vunpack.c.0.s8 %v156
    %v158 = vlaneseq
    %v159 = vshrl.u32 %v158, 7
    %v160 = vsub.s32 %v157, %v159
    %v161 = vrot.slane %v153, %v160
    %v163 = vunpack.c.l.s4 1966171168
    %v164 = vunpack.c.0.s8 %v163
    %v165 = vlaneseq
    %v166 = vshrl.u32 %v165, 7
    %v167 = vsub.s32 %v164, %v166
    %v168 = vrot.slane %v154, %v167
    %v169 = vcombine.high %v161, %v161
    %v170 = vcombine.high %v168, %v168
    %v171 = vld [vmem:[%s2 + $0x3] sm:$0x1]
    %v172 = vld [vmem:[%s3 + $0x30] sm:$0xf]
    %v173 = vld [vmem:[%s3 + $0x34] sm:$0xf]
    %v174 = vld [vmem:[%s3 + $0x38] sm:$0xf]
    %v175 = vld [vmem:[%s3 + $0x3c] sm:$0xf]
    %v176 = vld [vmem:[%s3 + $0x40] sm:$0xf]
    %v177 = vld [vmem:[%s3 + $0x44] sm:$0xf]
    %v178 = vld [vmem:[%s3 + $0x48] sm:$0xf]
    %v179 = vld [vmem:[%s3 + $0x4c] sm:$0xf]
    %v180 = vld [vmem:[%s3 + $0x50] sm:$0xf]
    %v181 = vld [vmem:[%s3 + $0x54] sm:$0xf]
    %v182 = vld [vmem:[%s3 + $0x58] sm:$0xf]
    %v183 = vld [vmem:[%s3 + $0x5c] sm:$0xf]
    %v184 = vld [vmem:[%s3 + $0x60] sm:$0xf]
    %v185 = vld [vmem:[%s3 + $0x64] sm:$0xf]
    %v186 = vld [vmem:[%s3 + $0x68] sm:$0xf]
    %v187 = vld [vmem:[%s3 + $0x6c] sm:$0xf]
    %v188 = vld [vmem:[%s3 + $0x70] sm:$0xf]
    %v189 = vld [vmem:[%s3 + $0x74] sm:$0xf]
    %v190 = vld [vmem:[%s3 + $0x78] sm:$0xf]
    %v191 = vld [vmem:[%s3 + $0x7c] sm:$0xf]
    %v192 = vld [vmem:[%s2 + $0x8] sm:$0x1]
    %v193 = vld [vmem:[%s2 + $0x9] sm:$0x1]
    %vm194 = vcmask 261120
    %v195 = vsel %vm194, %v123, 0.0
    %196 = vadd.xlane.f32.xlu0 %v195
    %v197 = vpop.xlane.xlu0 %196
    %v198 = vsel %vm194, %v126, 0.0
    %199 = vadd.xlane.f32.xlu0 %v198
    %v200 = vpop.xlane.xlu0 %199
    %v201 = vsel %vm194, %v131, 0.0
    %202 = vadd.xlane.f32.xlu0 %v201
    %v203 = vpop.xlane.xlu0 %202
    %v204 = vsel %vm194, %v134, 0.0
    %205 = vadd.xlane.f32.xlu0 %v204
    %v206 = vpop.xlane.xlu0 %205
    %v207 = vsel %vm194, %v139, 0.0
    %208 = vadd.xlane.f32.xlu0 %v207
    %v209 = vpop.xlane.xlu0 %208
    %v210 = vsel %vm194, %v142, 0.0
    %211 = vadd.xlane.f32.xlu0 %v210
    %v212 = vpop.xlane.xlu0 %211
    %v213 = vrcp.pop 32.0
    %v214 = vmul.f32 %v197, %v213
    %v215 = vmul.f32 %v200, %v213
    %v216 = vmul.f32 %v203, %v213
    %v217 = vmul.f32 %v206, %v213
    %v218 = vmul.f32 %v209, %v213
    %v219 = vmul.f32 %v212, %v213
    %v220 = vsub.f32 %v123, %v214
    %v221 = vsub.f32 %v126, %v215
    %v222 = vsub.f32 %v131, %v216
    %v223 = vsub.f32 %v134, %v217
    %v224 = vsub.f32 %v139, %v218
    %v225 = vsub.f32 %v142, %v219
    %v226 = vmul.f32 %v220, %v220
    %v227 = vmul.f32 %v221, %v221
    %v228 = vmul.f32 %v222, %v222
    %v229 = vmul.f32 %v223, %v223
    %v230 = vmul.f32 %v224, %v224
    %v231 = vmul.f32 %v225, %v225
    %v232 = vsel %vm194, %v226, 0.0
    %233 = vadd.xlane.f32.xlu0 %v232
    %v234 = vpop.xlane.xlu0 %233
    %v235 = vsel %vm194, %v227, 0.0
    %236 = vadd.xlane.f32.xlu0 %v235
    %v237 = vpop.xlane.xlu0 %236
    %v238 = vsel %vm194, %v228, 0.0
    %239 = vadd.xlane.f32.xlu0 %v238
    %v240 = vpop.xlane.xlu0 %239
    %v241 = vsel %vm194, %v229, 0.0
    %242 = vadd.xlane.f32.xlu0 %v241
    %v243 = vpop.xlane.xlu0 %242
    %v244 = vsel %vm194, %v230, 0.0
    %245 = vadd.xlane.f32.xlu0 %v244
    %v246 = vpop.xlane.xlu0 %245
    %v247 = vsel %vm194, %v231, 0.0
    %248 = vadd.xlane.f32.xlu0 %v247
    %v249 = vpop.xlane.xlu0 %248
    %v250 = vmul.f32 %v234, %v213
    %v251 = vmul.f32 %v237, %v213
    %v252 = vmul.f32 %v240, %v213
    %v253 = vmul.f32 %v243, %v213
    %v254 = vmul.f32 %v246, %v213
    %v255 = vmul.f32 %v249, %v213
    %v256 = vadd.f32 %v250, 1e-05
    %v257 = vadd.f32 %v251, 1e-05
    %v258 = vadd.f32 %v252, 1e-05
    %v259 = vadd.f32 %v253, 1e-05
    %v260 = vadd.f32 %v254, 1e-05
    %v261 = vadd.f32 %v255, 1e-05
    %v262 = vrsqrt.pop %v256
    %v263 = vrsqrt.pop %v257
    %v264 = vrsqrt.pop %v258
    %v265 = vrsqrt.pop %v259
    %v266 = vrsqrt.pop %v260
    %v267 = vrsqrt.pop %v261
    %v268 = vmul.f32 %v220, %v262
    %v269 = vmul.f32 %v221, %v263
    %v270 = vmul.f32 %v222, %v264
    %v271 = vmul.f32 %v223, %v265
    %v272 = vmul.f32 %v224, %v266
    %v273 = vmul.f32 %v225, %v267
    %v274 = vlaneseq
    %v275 = vshrl.u32 %v274, 7
    %v276 = vsub.s32 0, %v275
    %v277 = vrot.slane %v192, %v276
    %v278 = vmul.f32 %v268, %v277
    %v279 = vmul.f32 %v269, %v277
    %v280 = vmul.f32 %v270, %v277
    %v281 = vmul.f32 %v271, %v277
    %v282 = vmul.f32 %v272, %v277
    %v283 = vmul.f32 %v273, %v277
    %v284 = vlaneseq
    %v285 = vshrl.u32 %v284, 7
    %v286 = vsub.s32 0, %v285
    %v287 = vrot.slane %v193, %v286
    %v288 = vadd.f32 %v278, %v287
    %v289 = vadd.f32 %v279, %v287
    %v290 = vadd.f32 %v280, %v287
    %v291 = vadd.f32 %v281, %v287
    %v292 = vadd.f32 %v282, %v287
    %v293 = vadd.f32 %v283, %v287
    %v294 = vpack.c.bf16 %v289, %v288
    %v295 = vpack.c.bf16 %v291, %v290
    %v296 = vpack.c.bf16 %v293, %v292
    %v297 = vld [vmem:[%s2 + $0xa] sm:$0x1]
    %v298 = vlaneseq
    %v299 = vshrl.u32 %v298, 7
    %v300 = vsub.s32 0, %v299
    %v301 = vrot.slane %v297, %v300
    %v306 = vunpack.c.l.b16 %v172
    %v307 = vunpack.c.l.b16 %v173
    %v308 = vunpack.c.l.b16 %v174
    %v309 = vunpack.c.l.b16 %v175
    %v310 = vpack.c.b16 %v307, %v306
    %v311 = vpack.c.b16 %v309, %v308
    %v315 = vsel %vm194, %v294, 0
    %v318 = vsel %vm194, %v295, 0
    %v321 = vsel %vm194, %v296, 0
    %323 = vmatprep.subr.bf16.mxu0 0
    %324 = vmatpush1.bf16.msra.mxu0 %v310
    %325 = vmatprep.subr.bf16.mxu0 0
    %326 = vmatpush1.bf16.msra.mxu0 %v311
    %327 = vmatprep.subr.bf16.mxu0 0
    %328 = vmatpush1.bf16.msra.mxu0 0
    %329 = vmatprep.subr.bf16.mxu0 0
    %330 = vmatpush1.bf16.msra.mxu0 0
    %331 = vmatprep.subr.bf16.mxu0 0
    %332 = vmatpush1.bf16.msra.mxu0 0
    %333 = vmatprep.subr.bf16.mxu0 0
    %334 = vmatpush1.bf16.msra.mxu0 0
    %335 = vmatprep.subr.bf16.mxu0 0
    %336 = vmatpush1.bf16.msra.mxu0 0
    %337 = vmatprep.subr.bf16.mxu0 0
    %338 = vmatpush1.bf16.msra.mxu0 0
    %339 = vmatprep.subr.bf16.mxu0 0
    %340 = vmatpush1.bf16.msra.mxu0 0
    %341 = vmatprep.subr.bf16.mxu0 0
    %342 = vmatpush1.bf16.msra.mxu0 0
    %343 = vmatprep.subr.bf16.mxu0 0
    %344 = vmatpush1.bf16.msra.mxu0 0
    %345 = vmatprep.subr.bf16.mxu0 0
    %346 = vmatpush1.bf16.msra.mxu0 0
    %347 = vmatprep.subr.bf16.mxu0 0
    %348 = vmatpush1.bf16.msra.mxu0 0
    %349 = vmatprep.subr.bf16.mxu0 0
    %350 = vmatpush1.bf16.msra.mxu0 0
    %351 = vmatprep.subr.bf16.mxu0 0
    %352 = vmatpush1.bf16.msra.mxu0 0
    %353 = vmatprep.subr.bf16.mxu0 0
    %354 = vmatpush1.bf16.msra.mxu0 0
    %355 = vmatprep.mubr.bf16.mxu0 0
    %356 = vmatmul.mubr.bf16.gmra.mrb[0].mxu0 %v315
    %v357 = vpop.f32.mrb[0].mxu0
    %v358 = vadd.f32 %v301, %v357
    %v359 = vpop.f32.mrb[0].mxu0
    %v360 = vpop.f32.mrb[0].mxu0
    %v361 = vadd.f32 %v301, %v360
    %v362 = vpop.f32.mrb[0].mxu0
    %363 = vmatprep.mubr.bf16.mxu0 0
    %364 = vmatmul.mubr.bf16.gmra.mrb[0].mxu0 %v318
    %v365 = vpop.f32.mrb[0].mxu0
    %v366 = vadd.f32 %v301, %v365
    %v367 = vpop.f32.mrb[0].mxu0
    %v368 = vpop.f32.mrb[0].mxu0
    %v369 = vadd.f32 %v301, %v368
    %v370 = vpop.f32.mrb[0].mxu0
    %371 = vmatprep.mubr.bf16.mxu0 0
    %372 = vmatmul.mubr.bf16.gmra.mrb[0].mxu0 %v321
    %v373 = vpop.f32.mrb[0].mxu0
    %v374 = vadd.f32 %v301, %v373
    %v375 = vpop.f32.mrb[0].mxu0
    %v376 = vpop.f32.mrb[0].mxu0
    %v377 = vadd.f32 %v301, %v376
    %v378 = vpop.f32.mrb[0].mxu0
    %379 = vdwg.mxu0
    %v380 = vlaneseq
    %v381 = vshrl.u32 %v380, 7
    %v382 = vsub.s32 0, %v381
    %v383 = vrot.slane %v161, %v382
    %v384 = vlaneseq
    %v385 = vshrl.u32 %v384, 7
    %v386 = vsub.s32 0, %v385
    %v387 = vrot.slane %v168, %v386
    %v388 = vlaneseq
    %v389 = vshrl.u32 %v388, 7
    %v390 = vsub.s32 0, %v389
    %v391 = vrot.slane %v169, %v390
    %v392 = vlaneseq
    %v393 = vshrl.u32 %v392, 7
    %v394 = vsub.s32 0, %v393
    %v395 = vrot.slane %v170, %v394
    %v400 = vmul.f32 %v358, %v383
    %v401 = vmul.f32 %v361, %v383
    %v402 = vmul.f32 %v366, %v383
    %v403 = vmul.f32 %v358, %v387
    %v404 = vmul.f32 %v361, %v387
    %v405 = vmul.f32 %v366, %v387
    %v406 = vmul.f32 %v358, %v391
    %v407 = vmul.f32 %v361, %v391
    %v408 = vmul.f32 %v366, %v391
    %v409 = vmul.f32 %v358, %v395
    %v410 = vmul.f32 %v361, %v395
    %v411 = vmul.f32 %v366, %v395
    %v412 = vmul.f32 %v369, %v383
    %v413 = vmul.f32 %v374, %v383
    %v414 = vmul.f32 %v377, %v383
    %v415 = vmul.f32 %v369, %v387
    %v416 = vmul.f32 %v374, %v387
    %v417 = vmul.f32 %v377, %v387
    %v418 = vmul.f32 %v369, %v391
    %v419 = vmul.f32 %v374, %v391
    %v420 = vmul.f32 %v377, %v391
    %v421 = vmul.f32 %v369, %v395
    %v422 = vmul.f32 %v374, %v395
    %v423 = vmul.f32 %v377, %v395
    %424 = vrot.lane.b32.xlu0 %v383, 64
    %v425 = vpop.permute.xlu0 %424
    %426 = vrot.lane.b32.xlu0 %v387, 64
    %v427 = vpop.permute.xlu0 %426
    %428 = vrot.lane.b32.xlu0 %v391, 64
    %v429 = vpop.permute.xlu0 %428
    %430 = vrot.lane.b32.xlu0 %v395, 64
    %v431 = vpop.permute.xlu0 %430
    %v436 = vmul.f32 %v358, %v425
    %v437 = vmul.f32 %v361, %v425
    %v438 = vmul.f32 %v366, %v425
    %v439 = vmul.f32 %v358, %v427
    %v440 = vmul.f32 %v361, %v427
    %v441 = vmul.f32 %v366, %v427
    %v442 = vmul.f32 %v358, %v429
    %v443 = vmul.f32 %v361, %v429
    %v444 = vmul.f32 %v366, %v429
    %v445 = vmul.f32 %v358, %v431
    %v446 = vmul.f32 %v361, %v431
    %v447 = vmul.f32 %v366, %v431
    %v448 = vmul.f32 %v369, %v425
    %v449 = vmul.f32 %v374, %v425
    %v450 = vmul.f32 %v377, %v425
    %v451 = vmul.f32 %v369, %v427
    %v452 = vmul.f32 %v374, %v427
    %v453 = vmul.f32 %v377, %v427
    %v454 = vmul.f32 %v369, %v429
    %v455 = vmul.f32 %v374, %v429
    %v456 = vmul.f32 %v377, %v429
    %v457 = vmul.f32 %v369, %v431
    %v458 = vmul.f32 %v374, %v431
    %v459 = vmul.f32 %v377, %v431
    %v460 = vpack.c.bf16 %v401, %v400
    %v461 = vpack.c.bf16 %v402, %v402
    %v462 = vpack.c.bf16 %v404, %v403
    %v463 = vpack.c.bf16 %v405, %v405
    %v464 = vpack.c.bf16 %v407, %v406
    %v465 = vpack.c.bf16 %v408, %v408
    %v466 = vpack.c.bf16 %v410, %v409
    %v467 = vpack.c.bf16 %v411, %v411
    %v468 = vpack.c.bf16 %v413, %v412
    %v469 = vpack.c.bf16 %v414, %v414
    %v470 = vpack.c.bf16 %v416, %v415
    %v471 = vpack.c.bf16 %v417, %v417
    %v472 = vpack.c.bf16 %v419, %v418
    %v473 = vpack.c.bf16 %v420, %v420
    %v474 = vpack.c.bf16 %v422, %v421
    %v475 = vpack.c.bf16 %v423, %v423
    %v476 = vpack.c.bf16 %v361, %v358
    %v477 = vpack.c.bf16 %v366, %v366
    %v478 = vpack.c.bf16 %v374, %v369
    %v479 = vpack.c.bf16 %v377, %v377
    %482 = vrot.lane.b32.xlu0 %v476, 96
    %v483 = vpop.permute.xlu0 %482
    %484 = vrot.lane.b32.xlu0 %v477, 96
    %v485 = vpop.permute.xlu0 %484
    %v487 = vsel %vm194, %v460, 0
    %v490 = vsel %vm194, %v461, 0
    %v493 = vsel %vm194, %v483, 0
    %v496 = vsel %vm194, %v485, 0
    %498 = vmatprep.subr.bf16.mxu0 0
    %499 = vmatpush1.bf16.xpose.msra.mxu0 %v493
    %500 = vmatprep.subr.bf16.mxu0 0
    %501 = vmatpush1.bf16.xpose.msra.mxu0 %v496
    %502 = vmatprep.subr.bf16.mxu0 0
    %503 = vmatpush1.bf16.xpose.msra.mxu0 0
    %504 = vmatprep.subr.bf16.mxu0 0
    %505 = vmatpush1.bf16.xpose.msra.mxu0 0
    %506 = vmatprep.subr.bf16.mxu0 0
    %507 = vmatpush1.bf16.xpose.msra.mxu0 0
    %508 = vmatprep.subr.bf16.mxu0 0
    %509 = vmatpush1.bf16.xpose.msra.mxu0 0
    %510 = vmatprep.subr.bf16.mxu0 0
    %511 = vmatpush1.bf16.xpose.msra.mxu0 0
    %512 = vmatprep.subr.bf16.mxu0 0
    %513 = vmatpush1.bf16.xpose.msra.mxu0 0
    %514 = vmatprep.subr.bf16.mxu0 0
    %515 = vmatpush1.bf16.xpose.msra.mxu0 0
    %516 = vmatprep.subr.bf16.mxu0 0
    %517 = vmatpush1.bf16.xpose.msra.mxu0 0
    %518 = vmatprep.subr.bf16.mxu0 0
    %519 = vmatpush1.bf16.xpose.msra.mxu0 0
    %520 = vmatprep.subr.bf16.mxu0 0
    %521 = vmatpush1.bf16.xpose.msra.mxu0 0
    %522 = vmatprep.subr.bf16.mxu0 0
    %523 = vmatpush1.bf16.xpose.msra.mxu0 0
    %524 = vmatprep.subr.bf16.mxu0 0
    %525 = vmatpush1.bf16.xpose.msra.mxu0 0
    %526 = vmatprep.subr.bf16.mxu0 0
    %527 = vmatpush1.bf16.xpose.msra.mxu0 0
    %528 = vmatprep.subr.bf16.mxu0 0
    %529 = vmatpush1.bf16.xpose.msra.mxu0 0
    %530 = vmatprep.mubr.bf16.mxu0 0
    %531 = vmatmul.mubr.bf16.gmra.mrb[0].mxu0 %v487
    %v532 = vpop.f32.mrb[0].mxu0
    %v533 = vadd.f32 0.0, %v532
    %v534 = vpop.f32.mrb[0].mxu0
    %v535 = vpop.f32.mrb[0].mxu0
    %v536 = vadd.f32 0.0, %v535
    %v537 = vpop.f32.mrb[0].mxu0
    %538 = vmatprep.mubr.bf16.mxu0 0
    %539 = vmatmul.mubr.bf16.gmra.mrb[0].mxu0 %v490
    %v540 = vpop.f32.mrb[0].mxu0
    %v541 = vadd.f32 0.0, %v540
    %v542 = vpop.f32.mrb[0].mxu0
    %v543 = vpop.f32.mrb[0].mxu0
    %v544 = vpop.f32.mrb[0].mxu0
    %545 = vdwg.mxu0
    %v547 = vsel %vm194, %v462, 0
    %v550 = vsel %vm194, %v463, 0
    %552 = vmatprep.subr.bf16.mxu0 0
    %553 = vmatpush1.bf16.xpose.msra.mxu0 %v493
    %554 = vmatprep.subr.bf16.mxu0 0
    %555 = vmatpush1.bf16.xpose.msra.mxu0 %v496
    %556 = vmatprep.subr.bf16.mxu0 0
    %557 = vmatpush1.bf16.xpose.msra.mxu0 0
    %558 = vmatprep.subr.bf16.mxu0 0
    %559 = vmatpush1.bf16.xpose.msra.mxu0 0
    %560 = vmatprep.subr.bf16.mxu0 0
    %561 = vmatpush1.bf16.xpose.msra.mxu0 0
    %562 = vmatprep.subr.bf16.mxu0 0
    %563 = vmatpush1.bf16.xpose.msra.mxu0 0
    %564 = vmatprep.subr.bf16.mxu0 0
    %565 = vmatpush1.bf16.xpose.msra.mxu0 0
    %566 = vmatprep.subr.bf16.mxu0 0
    %567 = vmatpush1.bf16.xpose.msra.mxu0 0
    %568 = vmatprep.subr.bf16.mxu0 0
    %569 = vmatpush1.bf16.xpose.msra.mxu0 0
    %570 = vmatprep.subr.bf16.mxu0 0
    %571 = vmatpush1.bf16.xpose.msra.mxu0 0
    %572 = vmatprep.subr.bf16.mxu0 0
    %573 = vmatpush1.bf16.xpose.msra.mxu0 0
    %574 = vmatprep.subr.bf16.mxu0 0
    %575 = vmatpush1.bf16.xpose.msra.mxu0 0
    %576 = vmatprep.subr.bf16.mxu0 0
    %577 = vmatpush1.bf16.xpose.msra.mxu0 0
    %578 = vmatprep.subr.bf16.mxu0 0
    %579 = vmatpush1.bf16.xpose.msra.mxu0 0
    %580 = vmatprep.subr.bf16.mxu0 0
    %581 = vmatpush1.bf16.xpose.msra.mxu0 0
    %582 = vmatprep.subr.bf16.mxu0 0
    %583 = vmatpush1.bf16.xpose.msra.mxu0 0
    %584 = vmatprep.mubr.bf16.mxu0 0
    %585 = vmatmul.mubr.bf16.gmra.mrb[0].mxu0 %v547
    %v586 = vpop.f32.mrb[0].mxu0
    %v587 = vadd.f32 0.0, %v586
    %v588 = vpop.f32.mrb[0].mxu0
    %v589 = vpop.f32.mrb[0].mxu0
    %v590 = vadd.f32 0.0, %v589
    %v591 = vpop.f32.mrb[0].mxu0
    %592 = vmatprep.mubr.bf16.mxu0 0
    %593 = vmatmul.mubr.bf16.gmra.mrb[0].mxu0 %v550
    %v594 = vpop.f32.mrb[0].mxu0
    %v595 = vadd.f32 0.0, %v594
    %v596 = vpop.f32.mrb[0].mxu0
    %v597 = vpop.f32.mrb[0].mxu0
    %v598 = vpop.f32.mrb[0].mxu0
    %599 = vdwg.mxu0
    %v601 = vsel %vm194, %v464, 0
    %v604 = vsel %vm194, %v465, 0
    %606 = vmatprep.subr.bf16.mxu0 0
    %607 = vmatpush1.bf16.xpose.msra.mxu0 %v493
    %608 = vmatprep.subr.bf16.mxu0 0
    %609 = vmatpush1.bf16.xpose.msra.mxu0 %v496
    %610 = vmatprep.subr.bf16.mxu0 0
    %611 = vmatpush1.bf16.xpose.msra.mxu0 0
    %612 = vmatprep.subr.bf16.mxu0 0
    %613 = vmatpush1.bf16.xpose.msra.mxu0 0
    %614 = vmatprep.subr.bf16.mxu0 0
    %615 = vmatpush1.bf16.xpose.msra.mxu0 0
    %616 = vmatprep.subr.bf16.mxu0 0
    %617 = vmatpush1.bf16.xpose.msra.mxu0 0
    %618 = vmatprep.subr.bf16.mxu0 0
    %619 = vmatpush1.bf16.xpose.msra.mxu0 0
    %620 = vmatprep.subr.bf16.mxu0 0
    %621 = vmatpush1.bf16.xpose.msra.mxu0 0
    %622 = vmatprep.subr.bf16.mxu0 0
    %623 = vmatpush1.bf16.xpose.msra.mxu0 0
    %624 = vmatprep.subr.bf16.mxu0 0
    %625 = vmatpush1.bf16.xpose.msra.mxu0 0
    %626 = vmatprep.subr.bf16.mxu0 0
    %627 = vmatpush1.bf16.xpose.msra.mxu0 0
    %628 = vmatprep.subr.bf16.mxu0 0
    %629 = vmatpush1.bf16.xpose.msra.mxu0 0
    %630 = vmatprep.subr.bf16.mxu0 0
    %631 = vmatpush1.bf16.xpose.msra.mxu0 0
    %632 = vmatprep.subr.bf16.mxu0 0
    %633 = vmatpush1.bf16.xpose.msra.mxu0 0
    %634 = vmatprep.subr.bf16.mxu0 0
    %635 = vmatpush1.bf16.xpose.msra.mxu0 0
    %636 = vmatprep.subr.bf16.mxu0 0
    %637 = vmatpush1.bf16.xpose.msra.mxu0 0
    %638 = vmatprep.mubr.bf16.mxu0 0
    %639 = vmatmul.mubr.bf16.gmra.mrb[0].mxu0 %v601
    %v640 = vpop.f32.mrb[0].mxu0
    %v641 = vadd.f32 0.0, %v640
    %v642 = vpop.f32.mrb[0].mxu0
    %v643 = vpop.f32.mrb[0].mxu0
    %v644 = vadd.f32 0.0, %v643
    %v645 = vpop.f32.mrb[0].mxu0
    %646 = vmatprep.mubr.bf16.mxu0 0
    %647 = vmatmul.mubr.bf16.gmra.mrb[0].mxu0 %v604
    %v648 = vpop.f32.mrb[0].mxu0
    %v649 = vadd.f32 0.0, %v648
    %v650 = vpop.f32.mrb[0].mxu0
    %v651 = vpop.f32.mrb[0].mxu0
    %v652 = vpop.f32.mrb[0].mxu0
    %653 = vdwg.mxu0
    %v655 = vsel %vm194, %v466, 0
    %v658 = vsel %vm194, %v467, 0
    %660 = vmatprep.subr.bf16.mxu0 0
    %661 = vmatpush1.bf16.xpose.msra.mxu0 %v493
    %662 = vmatprep.subr.bf16.mxu0 0
    %663 = vmatpush1.bf16.xpose.msra.mxu0 %v496
    %664 = vmatprep.subr.bf16.mxu0 0
    %665 = vmatpush1.bf16.xpose.msra.mxu0 0
    %666 = vmatprep.subr.bf16.mxu0 0
    %667 = vmatpush1.bf16.xpose.msra.mxu0 0
    %668 = vmatprep.subr.bf16.mxu0 0
    %669 = vmatpush1.bf16.xpose.msra.mxu0 0
    %670 = vmatprep.subr.bf16.mxu0 0
    %671 = vmatpush1.bf16.xpose.msra.mxu0 0
    %672 = vmatprep.subr.bf16.mxu0 0
    %673 = vmatpush1.bf16.xpose.msra.mxu0 0
    %674 = vmatprep.subr.bf16.mxu0 0
    %675 = vmatpush1.bf16.xpose.msra.mxu0 0
    %676 = vmatprep.subr.bf16.mxu0 0
    %677 = vmatpush1.bf16.xpose.msra.mxu0 0
    %678 = vmatprep.subr.bf16.mxu0 0
    %679 = vmatpush1.bf16.xpose.msra.mxu0 0
    %680 = vmatprep.subr.bf16.mxu0 0
    %681 = vmatpush1.bf16.xpose.msra.mxu0 0
    %682 = vmatprep.subr.bf16.mxu0 0
    %683 = vmatpush1.bf16.xpose.msra.mxu0 0
    %684 = vmatprep.subr.bf16.mxu0 0
    %685 = vmatpush1.bf16.xpose.msra.mxu0 0
    %686 = vmatprep.subr.bf16.mxu0 0
    %687 = vmatpush1.bf16.xpose.msra.mxu0 0
    %688 = vmatprep.subr.bf16.mxu0 0
    %689 = vmatpush1.bf16.xpose.msra.mxu0 0
    %690 = vmatprep.subr.bf16.mxu0 0
    %691 = vmatpush1.bf16.xpose.msra.mxu0 0
    %692 = vmatprep.mubr.bf16.mxu0 0
    %693 = vmatmul.mubr.bf16.gmra.mrb[0].mxu0 %v655
    %v694 = vpop.f32.mrb[0].mxu0
    %v695 = vadd.f32 0.0, %v694
    %v696 = vpop.f32.mrb[0].mxu0
    %v697 = vpop.f32.mrb[0].mxu0
    %v698 = vadd.f32 0.0, %v697
    %v699 = vpop.f32.mrb[0].mxu0
    %700 = vmatprep.mubr.bf16.mxu0 0
    %701 = vmatmul.mubr.bf16.gmra.mrb[0].mxu0 %v658
    %v702 = vpop.f32.mrb[0].mxu0
    %v703 = vadd.f32 0.0, %v702
    %v704 = vpop.f32.mrb[0].mxu0
    %v705 = vpop.f32.mrb[0].mxu0
    %v706 = vpop.f32.mrb[0].mxu0
    %707 = vdwg.mxu0
    %710 = vrot.lane.b32.xlu0 %v478, 96
    %v711 = vpop.permute.xlu0 %710
    %712 = vrot.lane.b32.xlu0 %v479, 96
    %v713 = vpop.permute.xlu0 %712
    %v715 = vsel %vm194, %v468, 0
    %v718 = vsel %vm194, %v469, 0
    %v721 = vsel %vm194, %v711, 0
    %v724 = vsel %vm194, %v713, 0
    %726 = vmatprep.subr.bf16.mxu0 0
    %727 = vmatpush1.bf16.xpose.msra.mxu0 %v721
    %728 = vmatprep.subr.bf16.mxu0 0
    %729 = vmatpush1.bf16.xpose.msra.mxu0 %v724
    %730 = vmatprep.subr.bf16.mxu0 0
    %731 = vmatpush1.bf16.xpose.msra.mxu0 0
    %732 = vmatprep.subr.bf16.mxu0 0
    %733 = vmatpush1.bf16.xpose.msra.mxu0 0
    %734 = vmatprep.subr.bf16.mxu0 0
    %735 = vmatpush1.bf16.xpose.msra.mxu0 0
    %736 = vmatprep.subr.bf16.mxu0 0
    %737 = vmatpush1.bf16.xpose.msra.mxu0 0
    %738 = vmatprep.subr.bf16.mxu0 0
    %739 = vmatpush1.bf16.xpose.msra.mxu0 0
    %740 = vmatprep.subr.bf16.mxu0 0
    %741 = vmatpush1.bf16.xpose.msra.mxu0 0
    %742 = vmatprep.subr.bf16.mxu0 0
    %743 = vmatpush1.bf16.xpose.msra.mxu0 0
    %744 = vmatprep.subr.bf16.mxu0 0
    %745 = vmatpush1.bf16.xpose.msra.mxu0 0
    %746 = vmatprep.subr.bf16.mxu0 0
    %747 = vmatpush1.bf16.xpose.msra.mxu0 0
    %748 = vmatprep.subr.bf16.mxu0 0
    %749 = vmatpush1.bf16.xpose.msra.mxu0 0
    %750 = vmatprep.subr.bf16.mxu0 0
    %751 = vmatpush1.bf16.xpose.msra.mxu0 0
    %752 = vmatprep.subr.bf16.mxu0 0
    %753 = vmatpush1.bf16.xpose.msra.mxu0 0
    %754 = vmatprep.subr.bf16.mxu0 0
    %755 = vmatpush1.bf16.xpose.msra.mxu0 0
    %756 = vmatprep.subr.bf16.mxu0 0
    %757 = vmatpush1.bf16.xpose.msra.mxu0 0
    %758 = vmatprep.mubr.bf16.mxu0 0
    %759 = vmatmul.mubr.bf16.gmra.mrb[0].mxu0 %v715
    %v760 = vpop.f32.mrb[0].mxu0
    %v761 = vadd.f32 0.0, %v760
    %v762 = vpop.f32.mrb[0].mxu0
    %v763 = vpop.f32.mrb[0].mxu0
    %v764 = vadd.f32 0.0, %v763
    %v765 = vpop.f32.mrb[0].mxu0
    %766 = vmatprep.mubr.bf16.mxu0 0
    %767 = vmatmul.mubr.bf16.gmra.mrb[0].mxu0 %v718
    %v768 = vpop.f32.mrb[0].mxu0
    %v769 = vadd.f32 0.0, %v768
    %v770 = vpop.f32.mrb[0].mxu0
    %v771 = vpop.f32.mrb[0].mxu0
    %v772 = vpop.f32.mrb[0].mxu0
    %773 = vdwg.mxu0
    %v775 = vsel %vm194, %v470, 0
    %v778 = vsel %vm194, %v471, 0
    %780 = vmatprep.subr.bf16.mxu0 0
    %781 = vmatpush1.bf16.xpose.msra.mxu0 %v721
    %782 = vmatprep.subr.bf16.mxu0 0
    %783 = vmatpush1.bf16.xpose.msra.mxu0 %v724
    %784 = vmatprep.subr.bf16.mxu0 0
    %785 = vmatpush1.bf16.xpose.msra.mxu0 0
    %786 = vmatprep.subr.bf16.mxu0 0
    %787 = vmatpush1.bf16.xpose.msra.mxu0 0
    %788 = vmatprep.subr.bf16.mxu0 0
    %789 = vmatpush1.bf16.xpose.msra.mxu0 0
    %790 = vmatprep.subr.bf16.mxu0 0
    %791 = vmatpush1.bf16.xpose.msra.mxu0 0
    %792 = vmatprep.subr.bf16.mxu0 0
    %793 = vmatpush1.bf16.xpose.msra.mxu0 0
    %794 = vmatprep.subr.bf16.mxu0 0
    %795 = vmatpush1.bf16.xpose.msra.mxu0 0
    %796 = vmatprep.subr.bf16.mxu0 0
    %797 = vmatpush1.bf16.xpose.msra.mxu0 0
    %798 = vmatprep.subr.bf16.mxu0 0
    %799 = vmatpush1.bf16.xpose.msra.mxu0 0
    %800 = vmatprep.subr.bf16.mxu0 0
    %801 = vmatpush1.bf16.xpose.msra.mxu0 0
    %802 = vmatprep.subr.bf16.mxu0 0
    %803 = vmatpush1.bf16.xpose.msra.mxu0 0
    %804 = vmatprep.subr.bf16.mxu0 0
    %805 = vmatpush1.bf16.xpose.msra.mxu0 0
    %806 = vmatprep.subr.bf16.mxu0 0
    %807 = vmatpush1.bf16.xpose.msra.mxu0 0
    %808 = vmatprep.subr.bf16.mxu0 0
    %809 = vmatpush1.bf16.xpose.msra.mxu0 0
    %810 = vmatprep.subr.bf16.mxu0 0
    %811 = vmatpush1.bf16.xpose.msra.mxu0 0
    %812 = vmatprep.mubr.bf16.mxu0 0
    %813 = vmatmul.mubr.bf16.gmra.mrb[0].mxu0 %v775
    %v814 = vpop.f32.mrb[0].mxu0
    %v815 = vadd.f32 0.0, %v814
    %v816 = vpop.f32.mrb[0].mxu0
    %v817 = vpop.f32.mrb[0].mxu0
    %v818 = vadd.f32 0.0, %v817
    %v819 = vpop.f32.mrb[0].mxu0
    %820 = vmatprep.mubr.bf16.mxu0 0
    %821 = vmatmul.mubr.bf16.gmra.mrb[0].mxu0 %v778
    %v822 = vpop.f32.mrb[0].mxu0
    %v823 = vadd.f32 0.0, %v822
    %v824 = vpop.f32.mrb[0].mxu0
    %v825 = vpop.f32.mrb[0].mxu0
    %v826 = vpop.f32.mrb[0].mxu0
    %827 = vdwg.mxu0
    %v829 = vsel %vm194, %v472, 0
    %v832 = vsel %vm194, %v473, 0
    %834 = vmatprep.subr.bf16.mxu0 0
    %835 = vmatpush1.bf16.xpose.msra.mxu0 %v721
    %836 = vmatprep.subr.bf16.mxu0 0
    %837 = vmatpush1.bf16.xpose.msra.mxu0 %v724
    %838 = vmatprep.subr.bf16.mxu0 0
    %839 = vmatpush1.bf16.xpose.msra.mxu0 0
    %840 = vmatprep.subr.bf16.mxu0 0
    %841 = vmatpush1.bf16.xpose.msra.mxu0 0
    %842 = vmatprep.subr.bf16.mxu0 0
    %843 = vmatpush1.bf16.xpose.msra.mxu0 0
    %844 = vmatprep.subr.bf16.mxu0 0
    %845 = vmatpush1.bf16.xpose.msra.mxu0 0
    %846 = vmatprep.subr.bf16.mxu0 0
    %847 = vmatpush1.bf16.xpose.msra.mxu0 0
    %848 = vmatprep.subr.bf16.mxu0 0
    %849 = vmatpush1.bf16.xpose.msra.mxu0 0
    %850 = vmatprep.subr.bf16.mxu0 0
    %851 = vmatpush1.bf16.xpose.msra.mxu0 0
    %852 = vmatprep.subr.bf16.mxu0 0
    %853 = vmatpush1.bf16.xpose.msra.mxu0 0
    %854 = vmatprep.subr.bf16.mxu0 0
    %855 = vmatpush1.bf16.xpose.msra.mxu0 0
    %856 = vmatprep.subr.bf16.mxu0 0
    %857 = vmatpush1.bf16.xpose.msra.mxu0 0
    %858 = vmatprep.subr.bf16.mxu0 0
    %859 = vmatpush1.bf16.xpose.msra.mxu0 0
    %860 = vmatprep.subr.bf16.mxu0 0
    %861 = vmatpush1.bf16.xpose.msra.mxu0 0
    %862 = vmatprep.subr.bf16.mxu0 0
    %863 = vmatpush1.bf16.xpose.msra.mxu0 0
    %864 = vmatprep.subr.bf16.mxu0 0
    %865 = vmatpush1.bf16.xpose.msra.mxu0 0
    %866 = vmatprep.mubr.bf16.mxu0 0
    %867 = vmatmul.mubr.bf16.gmra.mrb[0].mxu0 %v829
    %v868 = vpop.f32.mrb[0].mxu0
    %v869 = vadd.f32 0.0, %v868
    %v870 = vpop.f32.mrb[0].mxu0
    %v871 = vpop.f32.mrb[0].mxu0
    %v872 = vadd.f32 0.0, %v871
    %v873 = vpop.f32.mrb[0].mxu0
    %874 = vmatprep.mubr.bf16.mxu0 0
    %875 = vmatmul.mubr.bf16.gmra.mrb[0].mxu0 %v832
    %v876 = vpop.f32.mrb[0].mxu0
    %v877 = vadd.f32 0.0, %v876
    %v878 = vpop.f32.mrb[0].mxu0
    %v879 = vpop.f32.mrb[0].mxu0
    %v880 = vpop.f32.mrb[0].mxu0
    %881 = vdwg.mxu0
    %v883 = vsel %vm194, %v474, 0
    %v886 = vsel %vm194, %v475, 0
    %888 = vmatprep.subr.bf16.mxu0 0
    %889 = vmatpush1.bf16.xpose.msra.mxu0 %v721
    %890 = vmatprep.subr.bf16.mxu0 0
    %891 = vmatpush1.bf16.xpose.msra.mxu0 %v724
    %892 = vmatprep.subr.bf16.mxu0 0
    %893 = vmatpush1.bf16.xpose.msra.mxu0 0
    %894 = vmatprep.subr.bf16.mxu0 0
    %895 = vmatpush1.bf16.xpose.msra.mxu0 0
    %896 = vmatprep.subr.bf16.mxu0 0
    %897 = vmatpush1.bf16.xpose.msra.mxu0 0
    %898 = vmatprep.subr.bf16.mxu0 0
    %899 = vmatpush1.bf16.xpose.msra.mxu0 0
    %900 = vmatprep.subr.bf16.mxu0 0
    %901 = vmatpush1.bf16.xpose.msra.mxu0 0
    %902 = vmatprep.subr.bf16.mxu0 0
    %903 = vmatpush1.bf16.xpose.msra.mxu0 0
    %904 = vmatprep.subr.bf16.mxu0 0
    %905 = vmatpush1.bf16.xpose.msra.mxu0 0
    %906 = vmatprep.subr.bf16.mxu0 0
    %907 = vmatpush1.bf16.xpose.msra.mxu0 0
    %908 = vmatprep.subr.bf16.mxu0 0
    %909 = vmatpush1.bf16.xpose.msra.mxu0 0
    %910 = vmatprep.subr.bf16.mxu0 0
    %911 = vmatpush1.bf16.xpose.msra.mxu0 0
    %912 = vmatprep.subr.bf16.mxu0 0
    %913 = vmatpush1.bf16.xpose.msra.mxu0 0
    %914 = vmatprep.subr.bf16.mxu0 0
    %915 = vmatpush1.bf16.xpose.msra.mxu0 0
    %916 = vmatprep.subr.bf16.mxu0 0
    %917 = vmatpush1.bf16.xpose.msra.mxu0 0
    %918 = vmatprep.subr.bf16.mxu0 0
    %919 = vmatpush1.bf16.xpose.msra.mxu0 0
    %920 = vmatprep.mubr.bf16.mxu0 0
    %921 = vmatmul.mubr.bf16.gmra.mrb[0].mxu0 %v883
    %v922 = vpop.f32.mrb[0].mxu0
    %v923 = vadd.f32 0.0, %v922
    %v924 = vpop.f32.mrb[0].mxu0
    %v925 = vpop.f32.mrb[0].mxu0
    %v926 = vadd.f32 0.0, %v925
    %v927 = vpop.f32.mrb[0].mxu0
    %928 = vmatprep.mubr.bf16.mxu0 0
    %929 = vmatmul.mubr.bf16.gmra.mrb[0].mxu0 %v886
    %v930 = vpop.f32.mrb[0].mxu0
    %v931 = vadd.f32 0.0, %v930
    %v932 = vpop.f32.mrb[0].mxu0
    %v933 = vpop.f32.mrb[0].mxu0
    %v934 = vpop.f32.mrb[0].mxu0
    %935 = vdwg.mxu0
    %v936 = vmul.f32 %v533, 0.35355338
    %v937 = vmul.f32 %v536, 0.35355338
    %v938 = vmul.f32 %v541, 0.35355338
    %v939 = vmul.f32 %v587, 0.35355338
    %v940 = vmul.f32 %v590, 0.35355338
    %v941 = vmul.f32 %v595, 0.35355338
    %v942 = vmul.f32 %v641, 0.35355338
    %v943 = vmul.f32 %v644, 0.35355338
    %v944 = vmul.f32 %v649, 0.35355338
    %v945 = vmul.f32 %v695, 0.35355338
    %v946 = vmul.f32 %v698, 0.35355338
    %v947 = vmul.f32 %v703, 0.35355338
    %v948 = vmul.f32 %v761, 0.35355338
    %v949 = vmul.f32 %v764, 0.35355338
    %v950 = vmul.f32 %v769, 0.35355338
    %v951 = vmul.f32 %v815, 0.35355338
    %v952 = vmul.f32 %v818, 0.35355338
    %v953 = vmul.f32 %v823, 0.35355338
    %v954 = vmul.f32 %v869, 0.35355338
    %v955 = vmul.f32 %v872, 0.35355338
    %v956 = vmul.f32 %v877, 0.35355338
    %v957 = vmul.f32 %v923, 0.35355338
    %v958 = vmul.f32 %v926, 0.35355338
    %v959 = vmul.f32 %v931, 0.35355338
    %v960 = vlaneseq
    %v961 = vshrl.u32 %v960, 7
    %v962 = vsub.s32 0, %v961
    %v963 = vrot.slane %v171, %v962
    %v964 = vadd.f32 %v936, %v963
    %v965 = vadd.f32 %v937, %v963
    %v966 = vadd.f32 %v938, %v963
    %v967 = vadd.f32 %v939, %v963
    %v968 = vadd.f32 %v940, %v963
    %v969 = vadd.f32 %v941, %v963
    %v970 = vadd.f32 %v942, %v963
    %v971 = vadd.f32 %v943, %v963
    %v972 = vadd.f32 %v944, %v963
    %v973 = vadd.f32 %v945, %v963
    %v974 = vadd.f32 %v946, %v963
    %v975 = vadd.f32 %v947, %v963
    %v976 = vadd.f32 %v948, %v963
    %v977 = vadd.f32 %v949, %v963
    %v978 = vadd.f32 %v950, %v963
    %v979 = vadd.f32 %v951, %v963
    %v980 = vadd.f32 %v952, %v963
    %v981 = vadd.f32 %v953, %v963
    %v982 = vadd.f32 %v954, %v963
    %v983 = vadd.f32 %v955, %v963
    %v984 = vadd.f32 %v956, %v963
    %v985 = vadd.f32 %v957, %v963
    %v986 = vadd.f32 %v958, %v963
    %v987 = vadd.f32 %v959, %v963
    %vm988 = vcmask 195584
    %v989 = vsel %vm988, %v964, -inf
    %990 = vmax.xlane.f32.xlu0 %v989
    %v991 = vpop.xlane.xlu0 %990
    %v992 = vsel %vm988, %v965, -inf
    %993 = vmax.xlane.f32.xlu0 %v992
    %v994 = vpop.xlane.xlu0 %993
    %v995 = vsel %vm988, %v966, -inf
    %996 = vmax.xlane.f32.xlu0 %v995
    %v997 = vpop.xlane.xlu0 %996
    %v998 = vsel %vm988, %v967, -inf
    %999 = vmax.xlane.f32.xlu0 %v998
    %v1000 = vpop.xlane.xlu0 %999
    %v1001 = vsel %vm988, %v968, -inf
    %1002 = vmax.xlane.f32.xlu0 %v1001
    %v1003 = vpop.xlane.xlu0 %1002
    %v1004 = vsel %vm988, %v969, -inf
    %1005 = vmax.xlane.f32.xlu0 %v1004
    %v1006 = vpop.xlane.xlu0 %1005
    %v1007 = vsel %vm988, %v970, -inf
    %1008 = vmax.xlane.f32.xlu0 %v1007
    %v1009 = vpop.xlane.xlu0 %1008
    %v1010 = vsel %vm988, %v971, -inf
    %1011 = vmax.xlane.f32.xlu0 %v1010
    %v1012 = vpop.xlane.xlu0 %1011
    %v1013 = vsel %vm988, %v972, -inf
    %1014 = vmax.xlane.f32.xlu0 %v1013
    %v1015 = vpop.xlane.xlu0 %1014
    %v1016 = vsel %vm988, %v973, -inf
    %1017 = vmax.xlane.f32.xlu0 %v1016
    %v1018 = vpop.xlane.xlu0 %1017
    %v1019 = vsel %vm988, %v974, -inf
    %1020 = vmax.xlane.f32.xlu0 %v1019
    %v1021 = vpop.xlane.xlu0 %1020
    %v1022 = vsel %vm988, %v975, -inf
    %1023 = vmax.xlane.f32.xlu0 %v1022
    %v1024 = vpop.xlane.xlu0 %1023
    %v1025 = vsel %vm988, %v976, -inf
    %1026 = vmax.xlane.f32.xlu0 %v1025
    %v1027 = vpop.xlane.xlu0 %1026
    %v1028 = vsel %vm988, %v977, -inf
    %1029 = vmax.xlane.f32.xlu0 %v1028
    %v1030 = vpop.xlane.xlu0 %1029
    %v1031 = vsel %vm988, %v978, -inf
    %1032 = vmax.xlane.f32.xlu0 %v1031
    %v1033 = vpop.xlane.xlu0 %1032
    %v1034 = vsel %vm988, %v979, -inf
    %1035 = vmax.xlane.f32.xlu0 %v1034
    %v1036 = vpop.xlane.xlu0 %1035
    %v1037 = vsel %vm988, %v980, -inf
    %1038 = vmax.xlane.f32.xlu0 %v1037
    %v1039 = vpop.xlane.xlu0 %1038
    %v1040 = vsel %vm988, %v981, -inf
    %1041 = vmax.xlane.f32.xlu0 %v1040
    %v1042 = vpop.xlane.xlu0 %1041
    %v1043 = vsel %vm988, %v982, -inf
    %1044 = vmax.xlane.f32.xlu0 %v1043
    %v1045 = vpop.xlane.xlu0 %1044
    %v1046 = vsel %vm988, %v983, -inf
    %1047 = vmax.xlane.f32.xlu0 %v1046
    %v1048 = vpop.xlane.xlu0 %1047
    %v1049 = vsel %vm988, %v984, -inf
    %1050 = vmax.xlane.f32.xlu0 %v1049
    %v1051 = vpop.xlane.xlu0 %1050
    %v1052 = vsel %vm988, %v985, -inf
    %1053 = vmax.xlane.f32.xlu0 %v1052
    %v1054 = vpop.xlane.xlu0 %1053
    %v1055 = vsel %vm988, %v986, -inf
    %1056 = vmax.xlane.f32.xlu0 %v1055
    %v1057 = vpop.xlane.xlu0 %1056
    %v1058 = vsel %vm988, %v987, -inf
    %1059 = vmax.xlane.f32.xlu0 %v1058
    %v1060 = vpop.xlane.xlu0 %1059
    %v1061 = vsub.f32 %v964, %v991
    %v1062 = vsub.f32 %v965, %v994
    %v1063 = vsub.f32 %v966, %v997
    %v1064 = vsub.f32 %v967, %v1000
    %v1065 = vsub.f32 %v968, %v1003
    %v1066 = vsub.f32 %v969, %v1006
    %v1067 = vsub.f32 %v970, %v1009
    %v1068 = vsub.f32 %v971, %v1012
    %v1069 = vsub.f32 %v972, %v1015
    %v1070 = vsub.f32 %v973, %v1018
    %v1071 = vsub.f32 %v974, %v1021
    %v1072 = vsub.f32 %v975, %v1024
    %v1073 = vsub.f32 %v976, %v1027
    %v1074 = vsub.f32 %v977, %v1030
    %v1075 = vsub.f32 %v978, %v1033
    %v1076 = vsub.f32 %v979, %v1036
    %v1077 = vsub.f32 %v980, %v1039
    %v1078 = vsub.f32 %v981, %v1042
    %v1079 = vsub.f32 %v982, %v1045
    %v1080 = vsub.f32 %v983, %v1048
    %v1081 = vsub.f32 %v984, %v1051
    %v1082 = vsub.f32 %v985, %v1054
    %v1083 = vsub.f32 %v986, %v1057
    %v1084 = vsub.f32 %v987, %v1060
    %v1085 = vmul.f32 %v1061, 1.442695
    %v1086 = vpow.pop %v1085
    %v1087 = vmul.f32 %v1062, 1.442695
    %v1088 = vpow.pop %v1087
    %v1089 = vmul.f32 %v1063, 1.442695
    %v1090 = vpow.pop %v1089
    %v1091 = vmul.f32 %v1064, 1.442695
    %v1092 = vpow.pop %v1091
    %v1093 = vmul.f32 %v1065, 1.442695
    %v1094 = vpow.pop %v1093
    %v1095 = vmul.f32 %v1066, 1.442695
    %v1096 = vpow.pop %v1095
    %v1097 = vmul.f32 %v1067, 1.442695
    %v1098 = vpow.pop %v1097
    %v1099 = vmul.f32 %v1068, 1.442695
    %v1100 = vpow.pop %v1099
    %v1101 = vmul.f32 %v1069, 1.442695
    %v1102 = vpow.pop %v1101
    %v1103 = vmul.f32 %v1070, 1.442695
    %v1104 = vpow.pop %v1103
    %v1105 = vmul.f32 %v1071, 1.442695
    %v1106 = vpow.pop %v1105
    %v1107 = vmul.f32 %v1072, 1.442695
    %v1108 = vpow.pop %v1107
    %v1109 = vmul.f32 %v1073, 1.442695
    %v1110 = vpow.pop %v1109
    %v1111 = vmul.f32 %v1074, 1.442695
    %v1112 = vpow.pop %v1111
    %v1113 = vmul.f32 %v1075, 1.442695
    %v1114 = vpow.pop %v1113
    %v1115 = vmul.f32 %v1076, 1.442695
    %v1116 = vpow.pop %v1115
    %v1117 = vmul.f32 %v1077, 1.442695
    %v1118 = vpow.pop %v1117
    %v1119 = vmul.f32 %v1078, 1.442695
    %v1120 = vpow.pop %v1119
    %v1121 = vmul.f32 %v1079, 1.442695
    %v1122 = vpow.pop %v1121
    %v1123 = vmul.f32 %v1080, 1.442695
    %v1124 = vpow.pop %v1123
    %v1125 = vmul.f32 %v1081, 1.442695
    %v1126 = vpow.pop %v1125
    %v1127 = vmul.f32 %v1082, 1.442695
    %v1128 = vpow.pop %v1127
    %v1129 = vmul.f32 %v1083, 1.442695
    %v1130 = vpow.pop %v1129
    %v1131 = vmul.f32 %v1084, 1.442695
    %v1132 = vpow.pop %v1131
    %v1133 = vsel %vm988, %v1086, 0.0
    %1134 = vadd.xlane.f32.xlu0 %v1133
    %v1135 = vpop.xlane.xlu0 %1134
    %v1136 = vsel %vm988, %v1088, 0.0
    %1137 = vadd.xlane.f32.xlu0 %v1136
    %v1138 = vpop.xlane.xlu0 %1137
    %v1139 = vsel %vm988, %v1090, 0.0
    %1140 = vadd.xlane.f32.xlu0 %v1139
    %v1141 = vpop.xlane.xlu0 %1140
    %v1142 = vsel %vm988, %v1092, 0.0
    %1143 = vadd.xlane.f32.xlu0 %v1142
    %v1144 = vpop.xlane.xlu0 %1143
    %v1145 = vsel %vm988, %v1094, 0.0
    %1146 = vadd.xlane.f32.xlu0 %v1145
    %v1147 = vpop.xlane.xlu0 %1146
    %v1148 = vsel %vm988, %v1096, 0.0
    %1149 = vadd.xlane.f32.xlu0 %v1148
    %v1150 = vpop.xlane.xlu0 %1149
    %v1151 = vsel %vm988, %v1098, 0.0
    %1152 = vadd.xlane.f32.xlu0 %v1151
    %v1153 = vpop.xlane.xlu0 %1152
    %v1154 = vsel %vm988, %v1100, 0.0
    %1155 = vadd.xlane.f32.xlu0 %v1154
    %v1156 = vpop.xlane.xlu0 %1155
    %v1157 = vsel %vm988, %v1102, 0.0
    %1158 = vadd.xlane.f32.xlu0 %v1157
    %v1159 = vpop.xlane.xlu0 %1158
    %v1160 = vsel %vm988, %v1104, 0.0
    %1161 = vadd.xlane.f32.xlu0 %v1160
    %v1162 = vpop.xlane.xlu0 %1161
    %v1163 = vsel %vm988, %v1106, 0.0
    %1164 = vadd.xlane.f32.xlu0 %v1163
    %v1165 = vpop.xlane.xlu0 %1164
    %v1166 = vsel %vm988, %v1108, 0.0
    %1167 = vadd.xlane.f32.xlu0 %v1166
    %v1168 = vpop.xlane.xlu0 %1167
    %v1169 = vsel %vm988, %v1110, 0.0
    %1170 = vadd.xlane.f32.xlu0 %v1169
    %v1171 = vpop.xlane.xlu0 %1170
    %v1172 = vsel %vm988, %v1112, 0.0
    %1173 = vadd.xlane.f32.xlu0 %v1172
    %v1174 = vpop.xlane.xlu0 %1173
    %v1175 = vsel %vm988, %v1114, 0.0
    %1176 = vadd.xlane.f32.xlu0 %v1175
    %v1177 = vpop.xlane.xlu0 %1176
    %v1178 = vsel %vm988, %v1116, 0.0
    %1179 = vadd.xlane.f32.xlu0 %v1178
    %v1180 = vpop.xlane.xlu0 %1179
    %v1181 = vsel %vm988, %v1118, 0.0
    %1182 = vadd.xlane.f32.xlu0 %v1181
    %v1183 = vpop.xlane.xlu0 %1182
    %v1184 = vsel %vm988, %v1120, 0.0
    %1185 = vadd.xlane.f32.xlu0 %v1184
    %v1186 = vpop.xlane.xlu0 %1185
    %v1187 = vsel %vm988, %v1122, 0.0
    %1188 = vadd.xlane.f32.xlu0 %v1187
    %v1189 = vpop.xlane.xlu0 %1188
    %v1190 = vsel %vm988, %v1124, 0.0
    %1191 = vadd.xlane.f32.xlu0 %v1190
    %v1192 = vpop.xlane.xlu0 %1191
    %v1193 = vsel %vm988, %v1126, 0.0
    %1194 = vadd.xlane.f32.xlu0 %v1193
    %v1195 = vpop.xlane.xlu0 %1194
    %v1196 = vsel %vm988, %v1128, 0.0
    %1197 = vadd.xlane.f32.xlu0 %v1196
    %v1198 = vpop.xlane.xlu0 %1197
    %v1199 = vsel %vm988, %v1130, 0.0
    %1200 = vadd.xlane.f32.xlu0 %v1199
    %v1201 = vpop.xlane.xlu0 %1200
    %v1202 = vsel %vm988, %v1132, 0.0
    %1203 = vadd.xlane.f32.xlu0 %v1202
    %v1204 = vpop.xlane.xlu0 %1203
    %v1205 = vrcp.pop %v1135
    %v1206 = vrcp.pop %v1138
    %v1207 = vrcp.pop %v1141
    %v1208 = vrcp.pop %v1144
    %v1209 = vrcp.pop %v1147
    %v1210 = vrcp.pop %v1150
    %v1211 = vrcp.pop %v1153
    %v1212 = vrcp.pop %v1156
    %v1213 = vrcp.pop %v1159
    %v1214 = vrcp.pop %v1162
    %v1215 = vrcp.pop %v1165
    %v1216 = vrcp.pop %v1168
    %v1217 = vrcp.pop %v1171
    %v1218 = vrcp.pop %v1174
    %v1219 = vrcp.pop %v1177
    %v1220 = vrcp.pop %v1180
    %v1221 = vrcp.pop %v1183
    %v1222 = vrcp.pop %v1186
    %v1223 = vrcp.pop %v1189
    %v1224 = vrcp.pop %v1192
    %v1225 = vrcp.pop %v1195
    %v1226 = vrcp.pop %v1198
    %v1227 = vrcp.pop %v1201
    %v1228 = vrcp.pop %v1204
    %v1229 = vmul.f32 %v1086, %v1205
    %v1230 = vmul.f32 %v1088, %v1206
    %v1231 = vmul.f32 %v1090, %v1207
    %v1232 = vmul.f32 %v1092, %v1208
    %v1233 = vmul.f32 %v1094, %v1209
    %v1234 = vmul.f32 %v1096, %v1210
    %v1235 = vmul.f32 %v1098, %v1211
    %v1236 = vmul.f32 %v1100, %v1212
    %v1237 = vmul.f32 %v1102, %v1213
    %v1238 = vmul.f32 %v1104, %v1214
    %v1239 = vmul.f32 %v1106, %v1215
    %v1240 = vmul.f32 %v1108, %v1216
    %v1241 = vmul.f32 %v1110, %v1217
    %v1242 = vmul.f32 %v1112, %v1218
    %v1243 = vmul.f32 %v1114, %v1219
    %v1244 = vmul.f32 %v1116, %v1220
    %v1245 = vmul.f32 %v1118, %v1221
    %v1246 = vmul.f32 %v1120, %v1222
    %v1247 = vmul.f32 %v1122, %v1223
    %v1248 = vmul.f32 %v1124, %v1224
    %v1249 = vmul.f32 %v1126, %v1225
    %v1250 = vmul.f32 %v1128, %v1226
    %v1251 = vmul.f32 %v1130, %v1227
    %v1252 = vmul.f32 %v1132, %v1228
    %v1253 = vpack.c.bf16 %v1230, %v1229
    %v1254 = vpack.c.bf16 %v1231, %v1231
    %v1255 = vpack.c.bf16 %v1233, %v1232
    %v1256 = vpack.c.bf16 %v1234, %v1234
    %v1257 = vpack.c.bf16 %v1236, %v1235
    %v1258 = vpack.c.bf16 %v1237, %v1237
    %v1259 = vpack.c.bf16 %v1239, %v1238
    %v1260 = vpack.c.bf16 %v1240, %v1240
    %v1261 = vpack.c.bf16 %v1242, %v1241
    %v1262 = vpack.c.bf16 %v1243, %v1243
    %v1263 = vpack.c.bf16 %v1245, %v1244
    %v1264 = vpack.c.bf16 %v1246, %v1246
    %v1265 = vpack.c.bf16 %v1248, %v1247
    %v1266 = vpack.c.bf16 %v1249, %v1249
    %v1267 = vpack.c.bf16 %v1251, %v1250
    %v1268 = vpack.c.bf16 %v1252, %v1252
    %v1269 = vpack.c.bf16 %v437, %v436
    %v1270 = vpack.c.bf16 %v438, %v438
    %v1271 = vpack.c.bf16 %v440, %v439
    %v1272 = vpack.c.bf16 %v441, %v441
    %v1273 = vpack.c.bf16 %v443, %v442
    %v1274 = vpack.c.bf16 %v444, %v444
    %v1275 = vpack.c.bf16 %v446, %v445
    %v1276 = vpack.c.bf16 %v447, %v447
    %v1277 = vpack.c.bf16 %v449, %v448
    %v1278 = vpack.c.bf16 %v450, %v450
    %v1279 = vpack.c.bf16 %v452, %v451
    %v1280 = vpack.c.bf16 %v453, %v453
    %v1281 = vpack.c.bf16 %v455, %v454
    %v1282 = vpack.c.bf16 %v456, %v456
    %v1283 = vpack.c.bf16 %v458, %v457
    %v1284 = vpack.c.bf16 %v459, %v459
    %1287 = vrot.lane.b32.xlu0 %v1269, 64
    %v1288 = vpop.permute.xlu0 %1287
    %1289 = vrot.lane.b32.xlu0 %v1270, 64
    %v1290 = vpop.permute.xlu0 %1289
    %v1293 = vsel %vm988, %v1253, 0
    %v1296 = vsel %vm988, %v1254, 0
    %vm1298 = vcmask 1043456
    %v1300 = vsel %vm1298, %v1290, 0
    %1302 = vmatprep.subr.bf16.mxu0 0
    %1303 = vmatpush1.bf16.msra.mxu0 %v1288
    %1304 = vmatprep.subr.bf16.mxu0 0
    %1305 = vmatpush1.bf16.msra.mxu0 %v1300
    %1306 = vmatprep.subr.bf16.mxu0 0
    %1307 = vmatpush1.bf16.msra.mxu0 0
    %1308 = vmatprep.subr.bf16.mxu0 0
    %1309 = vmatpush1.bf16.msra.mxu0 0
    %1310 = vmatprep.subr.bf16.mxu0 0
    %1311 = vmatpush1.bf16.msra.mxu0 0
    %1312 = vmatprep.subr.bf16.mxu0 0
    %1313 = vmatpush1.bf16.msra.mxu0 0
    %1314 = vmatprep.subr.bf16.mxu0 0
    %1315 = vmatpush1.bf16.msra.mxu0 0
    %1316 = vmatprep.subr.bf16.mxu0 0
    %1317 = vmatpush1.bf16.msra.mxu0 0
    %1318 = vmatprep.subr.bf16.mxu0 0
    %1319 = vmatpush1.bf16.msra.mxu0 0
    %1320 = vmatprep.subr.bf16.mxu0 0
    %1321 = vmatpush1.bf16.msra.mxu0 0
    %1322 = vmatprep.subr.bf16.mxu0 0
    %1323 = vmatpush1.bf16.msra.mxu0 0
    %1324 = vmatprep.subr.bf16.mxu0 0
    %1325 = vmatpush1.bf16.msra.mxu0 0
    %1326 = vmatprep.subr.bf16.mxu0 0
    %1327 = vmatpush1.bf16.msra.mxu0 0
    %1328 = vmatprep.subr.bf16.mxu0 0
    %1329 = vmatpush1.bf16.msra.mxu0 0
    %1330 = vmatprep.subr.bf16.mxu0 0
    %1331 = vmatpush1.bf16.msra.mxu0 0
    %1332 = vmatprep.subr.bf16.mxu0 0
    %1333 = vmatpush1.bf16.msra.mxu0 0
    %1334 = vmatprep.mubr.bf16.mxu0 0
    %1335 = vmatmul.mubr.bf16.gmra.mrb[0].mxu0 %v1293
    %v1336 = vpop.f32.mrb[0].mxu0
    %v1337 = vadd.f32 0.0, %v1336
    %v1338 = vpop.f32.mrb[0].mxu0
    %v1339 = vpop.f32.mrb[0].mxu0
    %v1340 = vadd.f32 0.0, %v1339
    %v1341 = vpop.f32.mrb[0].mxu0
    %1342 = vmatprep.mubr.bf16.mxu0 0
    %1343 = vmatmul.mubr.bf16.gmra.mrb[0].mxu0 %v1296
    %v1344 = vpop.f32.mrb[0].mxu0
    %v1345 = vadd.f32 0.0, %v1344
    %v1346 = vpop.f32.mrb[0].mxu0
    %v1347 = vpop.f32.mrb[0].mxu0
    %v1348 = vpop.f32.mrb[0].mxu0
    %1349 = vdwg.mxu0
    %1352 = vrot.lane.b32.xlu0 %v1271, 64
    %v1353 = vpop.permute.xlu0 %1352
    %1354 = vrot.lane.b32.xlu0 %v1272, 64
    %v1355 = vpop.permute.xlu0 %1354
    %v1358 = vsel %vm988, %v1255, 0
    %v1361 = vsel %vm988, %v1256, 0
    %v1364 = vsel %vm1298, %v1355, 0
    %1366 = vmatprep.subr.bf16.mxu0 0
    %1367 = vmatpush1.bf16.msra.mxu0 %v1353
    %1368 = vmatprep.subr.bf16.mxu0 0
    %1369 = vmatpush1.bf16.msra.mxu0 %v1364
    %1370 = vmatprep.subr.bf16.mxu0 0
    %1371 = vmatpush1.bf16.msra.mxu0 0
    %1372 = vmatprep.subr.bf16.mxu0 0
    %1373 = vmatpush1.bf16.msra.mxu0 0
    %1374 = vmatprep.subr.bf16.mxu0 0
    %1375 = vmatpush1.bf16.msra.mxu0 0
    %1376 = vmatprep.subr.bf16.mxu0 0
    %1377 = vmatpush1.bf16.msra.mxu0 0
    %1378 = vmatprep.subr.bf16.mxu0 0
    %1379 = vmatpush1.bf16.msra.mxu0 0
    %1380 = vmatprep.subr.bf16.mxu0 0
    %1381 = vmatpush1.bf16.msra.mxu0 0
    %1382 = vmatprep.subr.bf16.mxu0 0
    %1383 = vmatpush1.bf16.msra.mxu0 0
    %1384 = vmatprep.subr.bf16.mxu0 0
    %1385 = vmatpush1.bf16.msra.mxu0 0
    %1386 = vmatprep.subr.bf16.mxu0 0
    %1387 = vmatpush1.bf16.msra.mxu0 0
    %1388 = vmatprep.subr.bf16.mxu0 0
    %1389 = vmatpush1.bf16.msra.mxu0 0
    %1390 = vmatprep.subr.bf16.mxu0 0
    %1391 = vmatpush1.bf16.msra.mxu0 0
    %1392 = vmatprep.subr.bf16.mxu0 0
    %1393 = vmatpush1.bf16.msra.mxu0 0
    %1394 = vmatprep.subr.bf16.mxu0 0
    %1395 = vmatpush1.bf16.msra.mxu0 0
    %1396 = vmatprep.subr.bf16.mxu0 0
    %1397 = vmatpush1.bf16.msra.mxu0 0
    %1398 = vmatprep.mubr.bf16.mxu0 0
    %1399 = vmatmul.mubr.bf16.gmra.mrb[0].mxu0 %v1358
    %v1400 = vpop.f32.mrb[0].mxu0
    %v1401 = vadd.f32 0.0, %v1400
    %v1402 = vpop.f32.mrb[0].mxu0
    %v1403 = vpop.f32.mrb[0].mxu0
    %v1404 = vadd.f32 0.0, %v1403
    %v1405 = vpop.f32.mrb[0].mxu0
    %1406 = vmatprep.mubr.bf16.mxu0 0
    %1407 = vmatmul.mubr.bf16.gmra.mrb[0].mxu0 %v1361
    %v1408 = vpop.f32.mrb[0].mxu0
    %v1409 = vadd.f32 0.0, %v1408
    %v1410 = vpop.f32.mrb[0].mxu0
    %v1411 = vpop.f32.mrb[0].mxu0
    %v1412 = vpop.f32.mrb[0].mxu0
    %1413 = vdwg.mxu0
    %1416 = vrot.lane.b32.xlu0 %v1273, 64
    %v1417 = vpop.permute.xlu0 %1416
    %1418 = vrot.lane.b32.xlu0 %v1274, 64
    %v1419 = vpop.permute.xlu0 %1418
    %v1422 = vsel %vm988, %v1257, 0
    %v1425 = vsel %vm988, %v1258, 0
    %v1428 = vsel %vm1298, %v1419, 0
    %1430 = vmatprep.subr.bf16.mxu0 0
    %1431 = vmatpush1.bf16.msra.mxu0 %v1417
    %1432 = vmatprep.subr.bf16.mxu0 0
    %1433 = vmatpush1.bf16.msra.mxu0 %v1428
    %1434 = vmatprep.subr.bf16.mxu0 0
    %1435 = vmatpush1.bf16.msra.mxu0 0
    %1436 = vmatprep.subr.bf16.mxu0 0
    %1437 = vmatpush1.bf16.msra.mxu0 0
    %1438 = vmatprep.subr.bf16.mxu0 0
    %1439 = vmatpush1.bf16.msra.mxu0 0
    %1440 = vmatprep.subr.bf16.mxu0 0
    %1441 = vmatpush1.bf16.msra.mxu0 0
    %1442 = vmatprep.subr.bf16.mxu0 0
    %1443 = vmatpush1.bf16.msra.mxu0 0
    %1444 = vmatprep.subr.bf16.mxu0 0
    %1445 = vmatpush1.bf16.msra.mxu0 0
    %1446 = vmatprep.subr.bf16.mxu0 0
    %1447 = vmatpush1.bf16.msra.mxu0 0
    %1448 = vmatprep.subr.bf16.mxu0 0
    %1449 = vmatpush1.bf16.msra.mxu0 0
    %1450 = vmatprep.subr.bf16.mxu0 0
    %1451 = vmatpush1.bf16.msra.mxu0 0
    %1452 = vmatprep.subr.bf16.mxu0 0
    %1453 = vmatpush1.bf16.msra.mxu0 0
    %1454 = vmatprep.subr.bf16.mxu0 0
    %1455 = vmatpush1.bf16.msra.mxu0 0
    %1456 = vmatprep.subr.bf16.mxu0 0
    %1457 = vmatpush1.bf16.msra.mxu0 0
    %1458 = vmatprep.subr.bf16.mxu0 0
    %1459 = vmatpush1.bf16.msra.mxu0 0
    %1460 = vmatprep.subr.bf16.mxu0 0
    %1461 = vmatpush1.bf16.msra.mxu0 0
    %1462 = vmatprep.mubr.bf16.mxu0 0
    %1463 = vmatmul.mubr.bf16.gmra.mrb[0].mxu0 %v1422
    %v1464 = vpop.f32.mrb[0].mxu0
    %v1465 = vadd.f32 0.0, %v1464
    %v1466 = vpop.f32.mrb[0].mxu0
    %v1467 = vpop.f32.mrb[0].mxu0
    %v1468 = vadd.f32 0.0, %v1467
    %v1469 = vpop.f32.mrb[0].mxu0
    %1470 = vmatprep.mubr.bf16.mxu0 0
    %1471 = vmatmul.mubr.bf16.gmra.mrb[0].mxu0 %v1425
    %v1472 = vpop.f32.mrb[0].mxu0
    %v1473 = vadd.f32 0.0, %v1472
    %v1474 = vpop.f32.mrb[0].mxu0
    %v1475 = vpop.f32.mrb[0].mxu0
    %v1476 = vpop.f32.mrb[0].mxu0
    %1477 = vdwg.mxu0
    %1480 = vrot.lane.b32.xlu0 %v1275, 64
    %v1481 = vpop.permute.xlu0 %1480
    %1482 = vrot.lane.b32.xlu0 %v1276, 64
    %v1483 = vpop.permute.xlu0 %1482
    %v1486 = vsel %vm988, %v1259, 0
    %v1489 = vsel %vm988, %v1260, 0
    %v1492 = vsel %vm1298, %v1483, 0
    %1494 = vmatprep.subr.bf16.mxu0 0
    %1495 = vmatpush1.bf16.msra.mxu0 %v1481
    %1496 = vmatprep.subr.bf16.mxu0 0
    %1497 = vmatpush1.bf16.msra.mxu0 %v1492
    %1498 = vmatprep.subr.bf16.mxu0 0
    %1499 = vmatpush1.bf16.msra.mxu0 0
    %1500 = vmatprep.subr.bf16.mxu0 0
    %1501 = vmatpush1.bf16.msra.mxu0 0
    %1502 = vmatprep.subr.bf16.mxu0 0
    %1503 = vmatpush1.bf16.msra.mxu0 0
    %1504 = vmatprep.subr.bf16.mxu0 0
    %1505 = vmatpush1.bf16.msra.mxu0 0
    %1506 = vmatprep.subr.bf16.mxu0 0
    %1507 = vmatpush1.bf16.msra.mxu0 0
    %1508 = vmatprep.subr.bf16.mxu0 0
    %1509 = vmatpush1.bf16.msra.mxu0 0
    %1510 = vmatprep.subr.bf16.mxu0 0
    %1511 = vmatpush1.bf16.msra.mxu0 0
    %1512 = vmatprep.subr.bf16.mxu0 0
    %1513 = vmatpush1.bf16.msra.mxu0 0
    %1514 = vmatprep.subr.bf16.mxu0 0
    %1515 = vmatpush1.bf16.msra.mxu0 0
    %1516 = vmatprep.subr.bf16.mxu0 0
    %1517 = vmatpush1.bf16.msra.mxu0 0
    %1518 = vmatprep.subr.bf16.mxu0 0
    %1519 = vmatpush1.bf16.msra.mxu0 0
    %1520 = vmatprep.subr.bf16.mxu0 0
    %1521 = vmatpush1.bf16.msra.mxu0 0
    %1522 = vmatprep.subr.bf16.mxu0 0
    %1523 = vmatpush1.bf16.msra.mxu0 0
    %1524 = vmatprep.subr.bf16.mxu0 0
    %1525 = vmatpush1.bf16.msra.mxu0 0
    %1526 = vmatprep.mubr.bf16.mxu0 0
    %1527 = vmatmul.mubr.bf16.gmra.mrb[0].mxu0 %v1486
    %v1528 = vpop.f32.mrb[0].mxu0
    %v1529 = vadd.f32 0.0, %v1528
    %v1530 = vpop.f32.mrb[0].mxu0
    %v1531 = vpop.f32.mrb[0].mxu0
    %v1532 = vadd.f32 0.0, %v1531
    %v1533 = vpop.f32.mrb[0].mxu0
    %1534 = vmatprep.mubr.bf16.mxu0 0
    %1535 = vmatmul.mubr.bf16.gmra.mrb[0].mxu0 %v1489
    %v1536 = vpop.f32.mrb[0].mxu0
    %v1537 = vadd.f32 0.0, %v1536
    %v1538 = vpop.f32.mrb[0].mxu0
    %v1539 = vpop.f32.mrb[0].mxu0
    %v1540 = vpop.f32.mrb[0].mxu0
    %1541 = vdwg.mxu0
    %1544 = vrot.lane.b32.xlu0 %v1277, 64
    %v1545 = vpop.permute.xlu0 %1544
    %1546 = vrot.lane.b32.xlu0 %v1278, 64
    %v1547 = vpop.permute.xlu0 %1546
    %v1550 = vsel %vm988, %v1261, 0
    %v1553 = vsel %vm988, %v1262, 0
    %v1556 = vsel %vm1298, %v1547, 0
    %1558 = vmatprep.subr.bf16.mxu0 0
    %1559 = vmatpush1.bf16.msra.mxu0 %v1545
    %1560 = vmatprep.subr.bf16.mxu0 0
    %1561 = vmatpush1.bf16.msra.mxu0 %v1556
    %1562 = vmatprep.subr.bf16.mxu0 0
    %1563 = vmatpush1.bf16.msra.mxu0 0
    %1564 = vmatprep.subr.bf16.mxu0 0
    %1565 = vmatpush1.bf16.msra.mxu0 0
    %1566 = vmatprep.subr.bf16.mxu0 0
    %1567 = vmatpush1.bf16.msra.mxu0 0
    %1568 = vmatprep.subr.bf16.mxu0 0
    %1569 = vmatpush1.bf16.msra.mxu0 0
    %1570 = vmatprep.subr.bf16.mxu0 0
    %1571 = vmatpush1.bf16.msra.mxu0 0
    %1572 = vmatprep.subr.bf16.mxu0 0
    %1573 = vmatpush1.bf16.msra.mxu0 0
    %1574 = vmatprep.subr.bf16.mxu0 0
    %1575 = vmatpush1.bf16.msra.mxu0 0
    %1576 = vmatprep.subr.bf16.mxu0 0
    %1577 = vmatpush1.bf16.msra.mxu0 0
    %1578 = vmatprep.subr.bf16.mxu0 0
    %1579 = vmatpush1.bf16.msra.mxu0 0
    %1580 = vmatprep.subr.bf16.mxu0 0
    %1581 = vmatpush1.bf16.msra.mxu0 0
    %1582 = vmatprep.subr.bf16.mxu0 0
    %1583 = vmatpush1.bf16.msra.mxu0 0
    %1584 = vmatprep.subr.bf16.mxu0 0
    %1585 = vmatpush1.bf16.msra.mxu0 0
    %1586 = vmatprep.subr.bf16.mxu0 0
    %1587 = vmatpush1.bf16.msra.mxu0 0
    %1588 = vmatprep.subr.bf16.mxu0 0
    %1589 = vmatpush1.bf16.msra.mxu0 0
    %1590 = vmatprep.mubr.bf16.mxu0 0
    %1591 = vmatmul.mubr.bf16.gmra.mrb[0].mxu0 %v1550
    %v1592 = vpop.f32.mrb[0].mxu0
    %v1593 = vadd.f32 0.0, %v1592
    %v1594 = vpop.f32.mrb[0].mxu0
    %v1595 = vpop.f32.mrb[0].mxu0
    %v1596 = vadd.f32 0.0, %v1595
    %v1597 = vpop.f32.mrb[0].mxu0
    %1598 = vmatprep.mubr.bf16.mxu0 0
    %1599 = vmatmul.mubr.bf16.gmra.mrb[0].mxu0 %v1553
    %v1600 = vpop.f32.mrb[0].mxu0
    %v1601 = vadd.f32 0.0, %v1600
    %v1602 = vpop.f32.mrb[0].mxu0
    %v1603 = vpop.f32.mrb[0].mxu0
    %v1604 = vpop.f32.mrb[0].mxu0
    %1605 = vdwg.mxu0
    %1608 = vrot.lane.b32.xlu0 %v1279, 64
    %v1609 = vpop.permute.xlu0 %1608
    %1610 = vrot.lane.b32.xlu0 %v1280, 64
    %v1611 = vpop.permute.xlu0 %1610
    %v1614 = vsel %vm988, %v1263, 0
    %v1617 = vsel %vm988, %v1264, 0
    %v1620 = vsel %vm1298, %v1611, 0
    %1622 = vmatprep.subr.bf16.mxu0 0
    %1623 = vmatpush1.bf16.msra.mxu0 %v1609
    %1624 = vmatprep.subr.bf16.mxu0 0
    %1625 = vmatpush1.bf16.msra.mxu0 %v1620
    %1626 = vmatprep.subr.bf16.mxu0 0
    %1627 = vmatpush1.bf16.msra.mxu0 0
    %1628 = vmatprep.subr.bf16.mxu0 0
    %1629 = vmatpush1.bf16.msra.mxu0 0
    %1630 = vmatprep.subr.bf16.mxu0 0
    %1631 = vmatpush1.bf16.msra.mxu0 0
    %1632 = vmatprep.subr.bf16.mxu0 0
    %1633 = vmatpush1.bf16.msra.mxu0 0
    %1634 = vmatprep.subr.bf16.mxu0 0
    %1635 = vmatpush1.bf16.msra.mxu0 0
    %1636 = vmatprep.subr.bf16.mxu0 0
    %1637 = vmatpush1.bf16.msra.mxu0 0
    %1638 = vmatprep.subr.bf16.mxu0 0
    %1639 = vmatpush1.bf16.msra.mxu0 0
    %1640 = vmatprep.subr.bf16.mxu0 0
    %1641 = vmatpush1.bf16.msra.mxu0 0
    %1642 = vmatprep.subr.bf16.mxu0 0
    %1643 = vmatpush1.bf16.msra.mxu0 0
    %1644 = vmatprep.subr.bf16.mxu0 0
    %1645 = vmatpush1.bf16.msra.mxu0 0
    %1646 = vmatprep.subr.bf16.mxu0 0
    %1647 = vmatpush1.bf16.msra.mxu0 0
    %1648 = vmatprep.subr.bf16.mxu0 0
    %1649 = vmatpush1.bf16.msra.mxu0 0
    %1650 = vmatprep.subr.bf16.mxu0 0
    %1651 = vmatpush1.bf16.msra.mxu0 0
    %1652 = vmatprep.subr.bf16.mxu0 0
    %1653 = vmatpush1.bf16.msra.mxu0 0
    %1654 = vmatprep.mubr.bf16.mxu0 0
    %1655 = vmatmul.mubr.bf16.gmra.mrb[0].mxu0 %v1614
    %v1656 = vpop.f32.mrb[0].mxu0
    %v1657 = vadd.f32 0.0, %v1656
    %v1658 = vpop.f32.mrb[0].mxu0
    %v1659 = vpop.f32.mrb[0].mxu0
    %v1660 = vadd.f32 0.0, %v1659
    %v1661 = vpop.f32.mrb[0].mxu0
    %1662 = vmatprep.mubr.bf16.mxu0 0
    %1663 = vmatmul.mubr.bf16.gmra.mrb[0].mxu0 %v1617
    %v1664 = vpop.f32.mrb[0].mxu0
    %v1665 = vadd.f32 0.0, %v1664
    %v1666 = vpop.f32.mrb[0].mxu0
    %v1667 = vpop.f32.mrb[0].mxu0
    %v1668 = vpop.f32.mrb[0].mxu0
    %1669 = vdwg.mxu0
    %1672 = vrot.lane.b32.xlu0 %v1281, 64
    %v1673 = vpop.permute.xlu0 %1672
    %1674 = vrot.lane.b32.xlu0 %v1282, 64
    %v1675 = vpop.permute.xlu0 %1674
    %v1678 = vsel %vm988, %v1265, 0
    %v1681 = vsel %vm988, %v1266, 0
    %v1684 = vsel %vm1298, %v1675, 0
    %1686 = vmatprep.subr.bf16.mxu0 0
    %1687 = vmatpush1.bf16.msra.mxu0 %v1673
    %1688 = vmatprep.subr.bf16.mxu0 0
    %1689 = vmatpush1.bf16.msra.mxu0 %v1684
    %1690 = vmatprep.subr.bf16.mxu0 0
    %1691 = vmatpush1.bf16.msra.mxu0 0
    %1692 = vmatprep.subr.bf16.mxu0 0
    %1693 = vmatpush1.bf16.msra.mxu0 0
    %1694 = vmatprep.subr.bf16.mxu0 0
    %1695 = vmatpush1.bf16.msra.mxu0 0
    %1696 = vmatprep.subr.bf16.mxu0 0
    %1697 = vmatpush1.bf16.msra.mxu0 0
    %1698 = vmatprep.subr.bf16.mxu0 0
    %1699 = vmatpush1.bf16.msra.mxu0 0
    %1700 = vmatprep.subr.bf16.mxu0 0
    %1701 = vmatpush1.bf16.msra.mxu0 0
    %1702 = vmatprep.subr.bf16.mxu0 0
    %1703 = vmatpush1.bf16.msra.mxu0 0
    %1704 = vmatprep.subr.bf16.mxu0 0
    %1705 = vmatpush1.bf16.msra.mxu0 0
    %1706 = vmatprep.subr.bf16.mxu0 0
    %1707 = vmatpush1.bf16.msra.mxu0 0
    %1708 = vmatprep.subr.bf16.mxu0 0
    %1709 = vmatpush1.bf16.msra.mxu0 0
    %1710 = vmatprep.subr.bf16.mxu0 0
    %1711 = vmatpush1.bf16.msra.mxu0 0
    %1712 = vmatprep.subr.bf16.mxu0 0
    %1713 = vmatpush1.bf16.msra.mxu0 0
    %1714 = vmatprep.subr.bf16.mxu0 0
    %1715 = vmatpush1.bf16.msra.mxu0 0
    %1716 = vmatprep.subr.bf16.mxu0 0
    %1717 = vmatpush1.bf16.msra.mxu0 0
    %1718 = vmatprep.mubr.bf16.mxu0 0
    %1719 = vmatmul.mubr.bf16.gmra.mrb[0].mxu0 %v1678
    %v1720 = vpop.f32.mrb[0].mxu0
    %v1721 = vadd.f32 0.0, %v1720
    %v1722 = vpop.f32.mrb[0].mxu0
    %v1723 = vpop.f32.mrb[0].mxu0
    %v1724 = vadd.f32 0.0, %v1723
    %v1725 = vpop.f32.mrb[0].mxu0
    %1726 = vmatprep.mubr.bf16.mxu0 0
    %1727 = vmatmul.mubr.bf16.gmra.mrb[0].mxu0 %v1681
    %v1728 = vpop.f32.mrb[0].mxu0
    %v1729 = vadd.f32 0.0, %v1728
    %v1730 = vpop.f32.mrb[0].mxu0
    %v1731 = vpop.f32.mrb[0].mxu0
    %v1732 = vpop.f32.mrb[0].mxu0
    %1733 = vdwg.mxu0
    %1736 = vrot.lane.b32.xlu0 %v1283, 64
    %v1737 = vpop.permute.xlu0 %1736
    %1738 = vrot.lane.b32.xlu0 %v1284, 64
    %v1739 = vpop.permute.xlu0 %1738
    %v1742 = vsel %vm988, %v1267, 0
    %v1745 = vsel %vm988, %v1268, 0
    %v1748 = vsel %vm1298, %v1739, 0
    %1750 = vmatprep.subr.bf16.mxu0 0
    %1751 = vmatpush1.bf16.msra.mxu0 %v1737
    %1752 = vmatprep.subr.bf16.mxu0 0
    %1753 = vmatpush1.bf16.msra.mxu0 %v1748
    %1754 = vmatprep.subr.bf16.mxu0 0
    %1755 = vmatpush1.bf16.msra.mxu0 0
    %1756 = vmatprep.subr.bf16.mxu0 0
    %1757 = vmatpush1.bf16.msra.mxu0 0
    %1758 = vmatprep.subr.bf16.mxu0 0
    %1759 = vmatpush1.bf16.msra.mxu0 0
    %1760 = vmatprep.subr.bf16.mxu0 0
    %1761 = vmatpush1.bf16.msra.mxu0 0
    %1762 = vmatprep.subr.bf16.mxu0 0
    %1763 = vmatpush1.bf16.msra.mxu0 0
    %1764 = vmatprep.subr.bf16.mxu0 0
    %1765 = vmatpush1.bf16.msra.mxu0 0
    %1766 = vmatprep.subr.bf16.mxu0 0
    %1767 = vmatpush1.bf16.msra.mxu0 0
    %1768 = vmatprep.subr.bf16.mxu0 0
    %1769 = vmatpush1.bf16.msra.mxu0 0
    %1770 = vmatprep.subr.bf16.mxu0 0
    %1771 = vmatpush1.bf16.msra.mxu0 0
    %1772 = vmatprep.subr.bf16.mxu0 0
    %1773 = vmatpush1.bf16.msra.mxu0 0
    %1774 = vmatprep.subr.bf16.mxu0 0
    %1775 = vmatpush1.bf16.msra.mxu0 0
    %1776 = vmatprep.subr.bf16.mxu0 0
    %1777 = vmatpush1.bf16.msra.mxu0 0
    %1778 = vmatprep.subr.bf16.mxu0 0
    %1779 = vmatpush1.bf16.msra.mxu0 0
    %1780 = vmatprep.subr.bf16.mxu0 0
    %1781 = vmatpush1.bf16.msra.mxu0 0
    %1782 = vmatprep.mubr.bf16.mxu0 0
    %1783 = vmatmul.mubr.bf16.gmra.mrb[0].mxu0 %v1742
    %v1784 = vpop.f32.mrb[0].mxu0
    %v1785 = vadd.f32 0.0, %v1784
    %v1786 = vpop.f32.mrb[0].mxu0
    %v1787 = vpop.f32.mrb[0].mxu0
    %v1788 = vadd.f32 0.0, %v1787
    %v1789 = vpop.f32.mrb[0].mxu0
    %1790 = vmatprep.mubr.bf16.mxu0 0
    %1791 = vmatmul.mubr.bf16.gmra.mrb[0].mxu0 %v1745
    %v1792 = vpop.f32.mrb[0].mxu0
    %v1793 = vadd.f32 0.0, %v1792
    %v1794 = vpop.f32.mrb[0].mxu0
    %v1795 = vpop.f32.mrb[0].mxu0
    %v1796 = vpop.f32.mrb[0].mxu0
    %1797 = vdwg.mxu0
    %v1798 = vsel %vm194, %v1337, 0.0
    %v1799 = vsel %vm194, %v1401, 0.0
    %v1800 = vadd.f32 %v1798, %v1799
    %v1801 = vsel %vm194, %v1465, 0.0
    %v1802 = vadd.f32 %v1800, %v1801
    %v1803 = vsel %vm194, %v1529, 0.0
    %v1804 = vadd.f32 %v1802, %v1803
    %v1805 = vsel %vm194, %v1340, 0.0
    %v1806 = vsel %vm194, %v1404, 0.0
    %v1807 = vadd.f32 %v1805, %v1806
    %v1808 = vsel %vm194, %v1468, 0.0
    %v1809 = vadd.f32 %v1807, %v1808
    %v1810 = vsel %vm194, %v1532, 0.0
    %v1811 = vadd.f32 %v1809, %v1810
    %v1812 = vsel %vm194, %v1345, 0.0
    %v1813 = vsel %vm194, %v1409, 0.0
    %v1814 = vadd.f32 %v1812, %v1813
    %v1815 = vsel %vm194, %v1473, 0.0
    %v1816 = vadd.f32 %v1814, %v1815
    %v1817 = vsel %vm194, %v1537, 0.0
    %v1818 = vadd.f32 %v1816, %v1817
    %v1819 = vsel %vm194, %v1593, 0.0
    %v1820 = vsel %vm194, %v1657, 0.0
    %v1821 = vadd.f32 %v1819, %v1820
    %v1822 = vsel %vm194, %v1721, 0.0
    %v1823 = vadd.f32 %v1821, %v1822
    %v1824 = vsel %vm194, %v1785, 0.0
    %v1825 = vadd.f32 %v1823, %v1824
    %v1826 = vsel %vm194, %v1596, 0.0
    %v1827 = vsel %vm194, %v1660, 0.0
    %v1828 = vadd.f32 %v1826, %v1827
    %v1829 = vsel %vm194, %v1724, 0.0
    %v1830 = vadd.f32 %v1828, %v1829
    %v1831 = vsel %vm194, %v1788, 0.0
    %v1832 = vadd.f32 %v1830, %v1831
    %v1833 = vsel %vm194, %v1601, 0.0
    %v1834 = vsel %vm194, %v1665, 0.0
    %v1835 = vadd.f32 %v1833, %v1834
    %v1836 = vsel %vm194, %v1729, 0.0
    %v1837 = vadd.f32 %v1835, %v1836
    %v1838 = vsel %vm194, %v1793, 0.0
    %v1839 = vadd.f32 %v1837, %v1838
    %v1840 = vpack.c.bf16 %v1811, %v1804
    %v1841 = vpack.c.bf16 %v1825, %v1818
    %v1842 = vpack.c.bf16 %v1839, %v1832
    %v1843 = vld [vmem:[%s2 + $0xb] sm:$0x1]
    %v1844 = vlaneseq
    %v1845 = vshrl.u32 %v1844, 7
    %v1846 = vsub.s32 0, %v1845
    %v1847 = vrot.slane %v1843, %v1846
    %v1852 = vunpack.c.l.b16 %v176
    %v1853 = vunpack.c.l.b16 %v177
    %v1854 = vunpack.c.l.b16 %v178
    %v1855 = vunpack.c.l.b16 %v179
    %v1856 = vpack.c.b16 %v1853, %v1852
    %v1857 = vpack.c.b16 %v1855, %v1854
    %v1861 = vsel %vm194, %v1840, 0
    %v1864 = vsel %vm194, %v1841, 0
    %v1867 = vsel %vm194, %v1842, 0
    %1869 = vmatprep.subr.bf16.mxu0 0
    %1870 = vmatpush1.bf16.msra.mxu0 %v1856
    %1871 = vmatprep.subr.bf16.mxu0 0
    %1872 = vmatpush1.bf16.msra.mxu0 %v1857
    %1873 = vmatprep.subr.bf16.mxu0 0
    %1874 = vmatpush1.bf16.msra.mxu0 0
    %1875 = vmatprep.subr.bf16.mxu0 0
    %1876 = vmatpush1.bf16.msra.mxu0 0
    %1877 = vmatprep.subr.bf16.mxu0 0
    %1878 = vmatpush1.bf16.msra.mxu0 0
    %1879 = vmatprep.subr.bf16.mxu0 0
    %1880 = vmatpush1.bf16.msra.mxu0 0
    %1881 = vmatprep.subr.bf16.mxu0 0
    %1882 = vmatpush1.bf16.msra.mxu0 0
    %1883 = vmatprep.subr.bf16.mxu0 0
    %1884 = vmatpush1.bf16.msra.mxu0 0
    %1885 = vmatprep.subr.bf16.mxu0 0
    %1886 = vmatpush1.bf16.msra.mxu0 0
    %1887 = vmatprep.subr.bf16.mxu0 0
    %1888 = vmatpush1.bf16.msra.mxu0 0
    %1889 = vmatprep.subr.bf16.mxu0 0
    %1890 = vmatpush1.bf16.msra.mxu0 0
    %1891 = vmatprep.subr.bf16.mxu0 0
    %1892 = vmatpush1.bf16.msra.mxu0 0
    %1893 = vmatprep.subr.bf16.mxu0 0
    %1894 = vmatpush1.bf16.msra.mxu0 0
    %1895 = vmatprep.subr.bf16.mxu0 0
    %1896 = vmatpush1.bf16.msra.mxu0 0
    %1897 = vmatprep.subr.bf16.mxu0 0
    %1898 = vmatpush1.bf16.msra.mxu0 0
    %1899 = vmatprep.subr.bf16.mxu0 0
    %1900 = vmatpush1.bf16.msra.mxu0 0
    %1901 = vmatprep.mubr.bf16.mxu0 0
    %1902 = vmatmul.mubr.bf16.gmra.mrb[0].mxu0 %v1861
    %v1903 = vpop.f32.mrb[0].mxu0
    %v1904 = vadd.f32 %v1847, %v1903
    %v1905 = vpop.f32.mrb[0].mxu0
    %v1906 = vpop.f32.mrb[0].mxu0
    %v1907 = vadd.f32 %v1847, %v1906
    %v1908 = vpop.f32.mrb[0].mxu0
    %1909 = vmatprep.mubr.bf16.mxu0 0
    %1910 = vmatmul.mubr.bf16.gmra.mrb[0].mxu0 %v1864
    %v1911 = vpop.f32.mrb[0].mxu0
    %v1912 = vadd.f32 %v1847, %v1911
    %v1913 = vpop.f32.mrb[0].mxu0
    %v1914 = vpop.f32.mrb[0].mxu0
    %v1915 = vadd.f32 %v1847, %v1914
    %v1916 = vpop.f32.mrb[0].mxu0
    %1917 = vmatprep.mubr.bf16.mxu0 0
    %1918 = vmatmul.mubr.bf16.gmra.mrb[0].mxu0 %v1867
    %v1919 = vpop.f32.mrb[0].mxu0
    %v1920 = vadd.f32 %v1847, %v1919
    %v1921 = vpop.f32.mrb[0].mxu0
    %v1922 = vpop.f32.mrb[0].mxu0
    %v1923 = vadd.f32 %v1847, %v1922
    %v1924 = vpop.f32.mrb[0].mxu0
    %1925 = vdwg.mxu0
    %v1926 = vadd.f32 %v123, %v1904
    %v1927 = vadd.f32 %v126, %v1907
    %v1928 = vadd.f32 %v131, %v1912
    %v1929 = vadd.f32 %v134, %v1915
    %v1930 = vadd.f32 %v139, %v1920
    %v1931 = vadd.f32 %v142, %v1923
    %v1932 = vld [vmem:[%s2 + $0xc] sm:$0x1]
    %v1933 = vld [vmem:[%s2 + $0xd] sm:$0x1]
    %v1934 = vsel %vm194, %v1926, 0.0
    %1935 = vadd.xlane.f32.xlu0 %v1934
    %v1936 = vpop.xlane.xlu0 %1935
    %v1937 = vsel %vm194, %v1927, 0.0
    %1938 = vadd.xlane.f32.xlu0 %v1937
    %v1939 = vpop.xlane.xlu0 %1938
    %v1940 = vsel %vm194, %v1928, 0.0
    %1941 = vadd.xlane.f32.xlu0 %v1940
    %v1942 = vpop.xlane.xlu0 %1941
    %v1943 = vsel %vm194, %v1929, 0.0
    %1944 = vadd.xlane.f32.xlu0 %v1943
    %v1945 = vpop.xlane.xlu0 %1944
    %v1946 = vsel %vm194, %v1930, 0.0
    %1947 = vadd.xlane.f32.xlu0 %v1946
    %v1948 = vpop.xlane.xlu0 %1947
    %v1949 = vsel %vm194, %v1931, 0.0
    %1950 = vadd.xlane.f32.xlu0 %v1949
    %v1951 = vpop.xlane.xlu0 %1950
    %v1952 = vmul.f32 %v1936, %v213
    %v1953 = vmul.f32 %v1939, %v213
    %v1954 = vmul.f32 %v1942, %v213
    %v1955 = vmul.f32 %v1945, %v213
    %v1956 = vmul.f32 %v1948, %v213
    %v1957 = vmul.f32 %v1951, %v213
    %v1958 = vsub.f32 %v1926, %v1952
    %v1959 = vsub.f32 %v1927, %v1953
    %v1960 = vsub.f32 %v1928, %v1954
    %v1961 = vsub.f32 %v1929, %v1955
    %v1962 = vsub.f32 %v1930, %v1956
    %v1963 = vsub.f32 %v1931, %v1957
    %v1964 = vmul.f32 %v1958, %v1958
    %v1965 = vmul.f32 %v1959, %v1959
    %v1966 = vmul.f32 %v1960, %v1960
    %v1967 = vmul.f32 %v1961, %v1961
    %v1968 = vmul.f32 %v1962, %v1962
    %v1969 = vmul.f32 %v1963, %v1963
    %v1970 = vsel %vm194, %v1964, 0.0
    %1971 = vadd.xlane.f32.xlu0 %v1970
    %v1972 = vpop.xlane.xlu0 %1971
    %v1973 = vsel %vm194, %v1965, 0.0
    %1974 = vadd.xlane.f32.xlu0 %v1973
    %v1975 = vpop.xlane.xlu0 %1974
    %v1976 = vsel %vm194, %v1966, 0.0
    %1977 = vadd.xlane.f32.xlu0 %v1976
    %v1978 = vpop.xlane.xlu0 %1977
    %v1979 = vsel %vm194, %v1967, 0.0
    %1980 = vadd.xlane.f32.xlu0 %v1979
    %v1981 = vpop.xlane.xlu0 %1980
    %v1982 = vsel %vm194, %v1968, 0.0
    %1983 = vadd.xlane.f32.xlu0 %v1982
    %v1984 = vpop.xlane.xlu0 %1983
    %v1985 = vsel %vm194, %v1969, 0.0
    %1986 = vadd.xlane.f32.xlu0 %v1985
    %v1987 = vpop.xlane.xlu0 %1986
    %v1988 = vmul.f32 %v1972, %v213
    %v1989 = vmul.f32 %v1975, %v213
    %v1990 = vmul.f32 %v1978, %v213
    %v1991 = vmul.f32 %v1981, %v213
    %v1992 = vmul.f32 %v1984, %v213
    %v1993 = vmul.f32 %v1987, %v213
    %v1994 = vadd.f32 %v1988, 1e-05
    %v1995 = vadd.f32 %v1989, 1e-05
    %v1996 = vadd.f32 %v1990, 1e-05
    %v1997 = vadd.f32 %v1991, 1e-05
    %v1998 = vadd.f32 %v1992, 1e-05
    %v1999 = vadd.f32 %v1993, 1e-05
    %v2000 = vrsqrt.pop %v1994
    %v2001 = vrsqrt.pop %v1995
    %v2002 = vrsqrt.pop %v1996
    %v2003 = vrsqrt.pop %v1997
    %v2004 = vrsqrt.pop %v1998
    %v2005 = vrsqrt.pop %v1999
    %v2006 = vmul.f32 %v1958, %v2000
    %v2007 = vmul.f32 %v1959, %v2001
    %v2008 = vmul.f32 %v1960, %v2002
    %v2009 = vmul.f32 %v1961, %v2003
    %v2010 = vmul.f32 %v1962, %v2004
    %v2011 = vmul.f32 %v1963, %v2005
    %v2012 = vlaneseq
    %v2013 = vshrl.u32 %v2012, 7
    %v2014 = vsub.s32 0, %v2013
    %v2015 = vrot.slane %v1932, %v2014
    %v2016 = vmul.f32 %v2006, %v2015
    %v2017 = vmul.f32 %v2007, %v2015
    %v2018 = vmul.f32 %v2008, %v2015
    %v2019 = vmul.f32 %v2009, %v2015
    %v2020 = vmul.f32 %v2010, %v2015
    %v2021 = vmul.f32 %v2011, %v2015
    %v2022 = vlaneseq
    %v2023 = vshrl.u32 %v2022, 7
    %v2024 = vsub.s32 0, %v2023
    %v2025 = vrot.slane %v1933, %v2024
    %v2026 = vadd.f32 %v2016, %v2025
    %v2027 = vadd.f32 %v2017, %v2025
    %v2028 = vadd.f32 %v2018, %v2025
    %v2029 = vadd.f32 %v2019, %v2025
    %v2030 = vadd.f32 %v2020, %v2025
    %v2031 = vadd.f32 %v2021, %v2025
    %v2032 = vpack.c.bf16 %v2027, %v2026
    %v2033 = vpack.c.bf16 %v2029, %v2028
    %v2034 = vpack.c.bf16 %v2031, %v2030
    %v2035 = vld [vmem:[%s2 + $0xe] sm:$0x1]
    %v2036 = vlaneseq
    %v2037 = vshrl.u32 %v2036, 7
    %v2038 = vsub.s32 0, %v2037
    %v2039 = vrot.slane %v2035, %v2038
    %v2044 = vunpack.c.l.b16 %v180
    %v2045 = vunpack.c.l.b16 %v181
    %v2046 = vunpack.c.l.b16 %v182
    %v2047 = vunpack.c.l.b16 %v183
    %v2048 = vpack.c.b16 %v2045, %v2044
    %v2049 = vpack.c.b16 %v2047, %v2046
    %v2053 = vsel %vm194, %v2032, 0
    %v2056 = vsel %vm194, %v2033, 0
    %v2059 = vsel %vm194, %v2034, 0
    %2061 = vmatprep.subr.bf16.mxu0 0
    %2062 = vmatpush1.bf16.msra.mxu0 %v2048
    %2063 = vmatprep.subr.bf16.mxu0 0
    %2064 = vmatpush1.bf16.msra.mxu0 %v2049
    %2065 = vmatprep.subr.bf16.mxu0 0
    %2066 = vmatpush1.bf16.msra.mxu0 0
    %2067 = vmatprep.subr.bf16.mxu0 0
    %2068 = vmatpush1.bf16.msra.mxu0 0
    %2069 = vmatprep.subr.bf16.mxu0 0
    %2070 = vmatpush1.bf16.msra.mxu0 0
    %2071 = vmatprep.subr.bf16.mxu0 0
    %2072 = vmatpush1.bf16.msra.mxu0 0
    %2073 = vmatprep.subr.bf16.mxu0 0
    %2074 = vmatpush1.bf16.msra.mxu0 0
    %2075 = vmatprep.subr.bf16.mxu0 0
    %2076 = vmatpush1.bf16.msra.mxu0 0
    %2077 = vmatprep.subr.bf16.mxu0 0
    %2078 = vmatpush1.bf16.msra.mxu0 0
    %2079 = vmatprep.subr.bf16.mxu0 0
    %2080 = vmatpush1.bf16.msra.mxu0 0
    %2081 = vmatprep.subr.bf16.mxu0 0
    %2082 = vmatpush1.bf16.msra.mxu0 0
    %2083 = vmatprep.subr.bf16.mxu0 0
    %2084 = vmatpush1.bf16.msra.mxu0 0
    %2085 = vmatprep.subr.bf16.mxu0 0
    %2086 = vmatpush1.bf16.msra.mxu0 0
    %2087 = vmatprep.subr.bf16.mxu0 0
    %2088 = vmatpush1.bf16.msra.mxu0 0
    %2089 = vmatprep.subr.bf16.mxu0 0
    %2090 = vmatpush1.bf16.msra.mxu0 0
    %2091 = vmatprep.subr.bf16.mxu0 0
    %2092 = vmatpush1.bf16.msra.mxu0 0
    %2093 = vmatprep.mubr.bf16.mxu0 0
    %2094 = vmatmul.mubr.bf16.gmra.mrb[0].mxu0 %v2053
    %v2095 = vpop.f32.mrb[0].mxu0
    %v2096 = vadd.f32 %v2039, %v2095
    %v2097 = vpop.f32.mrb[0].mxu0
    %v2098 = vpop.f32.mrb[0].mxu0
    %v2099 = vadd.f32 %v2039, %v2098
    %v2100 = vpop.f32.mrb[0].mxu0
    %2101 = vmatprep.mubr.bf16.mxu0 0
    %2102 = vmatmul.mubr.bf16.gmra.mrb[0].mxu0 %v2056
    %v2103 = vpop.f32.mrb[0].mxu0
    %v2104 = vadd.f32 %v2039, %v2103
    %v2105 = vpop.f32.mrb[0].mxu0
    %v2106 = vpop.f32.mrb[0].mxu0
    %v2107 = vadd.f32 %v2039, %v2106
    %v2108 = vpop.f32.mrb[0].mxu0
    %2109 = vmatprep.mubr.bf16.mxu0 0
    %2110 = vmatmul.mubr.bf16.gmra.mrb[0].mxu0 %v2059
    %v2111 = vpop.f32.mrb[0].mxu0
    %v2112 = vadd.f32 %v2039, %v2111
    %v2113 = vpop.f32.mrb[0].mxu0
    %v2114 = vpop.f32.mrb[0].mxu0
    %v2115 = vadd.f32 %v2039, %v2114
    %v2116 = vpop.f32.mrb[0].mxu0
    %2117 = vdwg.mxu0
    %v2118 = vmul.f32 %v2096, 0.5
    %v2119 = vmul.f32 %v2099, 0.5
    %v2120 = vmul.f32 %v2104, 0.5
    %v2121 = vmul.f32 %v2107, 0.5
    %v2122 = vmul.f32 %v2112, 0.5
    %v2123 = vmul.f32 %v2115, 0.5
    %v2124 = vmul.f32 %v2096, 0.70710677
    %v2125 = vmul.f32 %v2099, 0.70710677
    %v2126 = vmul.f32 %v2104, 0.70710677
    %v2127 = vmul.f32 %v2107, 0.70710677
    %v2128 = vmul.f32 %v2112, 0.70710677
    %v2129 = vmul.f32 %v2115, 0.70710677
    %v2130 = verf.f32.pop %v2124
    %v2131 = verf.f32.pop %v2125
    %v2132 = verf.f32.pop %v2126
    %v2133 = verf.f32.pop %v2127
    %v2134 = verf.f32.pop %v2128
    %v2135 = verf.f32.pop %v2129
    %v2136 = vadd.f32 %v2130, 1.0
    %v2137 = vadd.f32 %v2131, 1.0
    %v2138 = vadd.f32 %v2132, 1.0
    %v2139 = vadd.f32 %v2133, 1.0
    %v2140 = vadd.f32 %v2134, 1.0
    %v2141 = vadd.f32 %v2135, 1.0
    %v2142 = vmul.f32 %v2118, %v2136
    %v2143 = vmul.f32 %v2119, %v2137
    %v2144 = vmul.f32 %v2120, %v2138
    %v2145 = vmul.f32 %v2121, %v2139
    %v2146 = vmul.f32 %v2122, %v2140
    %v2147 = vmul.f32 %v2123, %v2141
    %v2148 = vpack.c.bf16 %v2143, %v2142
    %v2149 = vpack.c.bf16 %v2145, %v2144
    %v2150 = vpack.c.bf16 %v2147, %v2146
    %v2159 = vunpack.c.l.b16 %v184
    %v2160 = vunpack.c.l.b16 %v185
    %v2161 = vunpack.c.l.b16 %v186
    %v2162 = vunpack.c.l.b16 %v187
    %v2163 = vunpack.c.l.b16 %v188
    %v2164 = vunpack.c.l.b16 %v189
    %v2165 = vunpack.c.l.b16 %v190
    %v2166 = vunpack.c.l.b16 %v191
    %v2167 = vpack.c.b16 %v2160, %v2159
    %v2168 = vpack.c.b16 %v2162, %v2161
    %v2169 = vpack.c.b16 %v2164, %v2163
    %v2170 = vpack.c.b16 %v2166, %v2165
    %v2176 = vsel %vm78, %v2148, 0
    %v2179 = vsel %vm78, %v2149, 0
    %v2182 = vsel %vm78, %v2150, 0
    %2184 = vmatprep.subr.bf16.mxu0 0
    %2185 = vmatpush1.bf16.msra.mxu0 %v2167
    %2186 = vmatprep.subr.bf16.mxu0 0
    %2187 = vmatpush1.bf16.msra.mxu0 %v2168
    %2188 = vmatprep.subr.bf16.mxu0 0
    %2189 = vmatpush1.bf16.msra.mxu0 %v2169
    %2190 = vmatprep.subr.bf16.mxu0 0
    %2191 = vmatpush1.bf16.msra.mxu0 %v2170
    %2192 = vmatprep.subr.bf16.mxu0 0
    %2193 = vmatpush1.bf16.msra.mxu0 0
    %2194 = vmatprep.subr.bf16.mxu0 0
    %2195 = vmatpush1.bf16.msra.mxu0 0
    %2196 = vmatprep.subr.bf16.mxu0 0
    %2197 = vmatpush1.bf16.msra.mxu0 0
    %2198 = vmatprep.subr.bf16.mxu0 0
    %2199 = vmatpush1.bf16.msra.mxu0 0
    %2200 = vmatprep.subr.bf16.mxu0 0
    %2201 = vmatpush1.bf16.msra.mxu0 0
    %2202 = vmatprep.subr.bf16.mxu0 0
    %2203 = vmatpush1.bf16.msra.mxu0 0
    %2204 = vmatprep.subr.bf16.mxu0 0
    %2205 = vmatpush1.bf16.msra.mxu0 0
    %2206 = vmatprep.subr.bf16.mxu0 0
    %2207 = vmatpush1.bf16.msra.mxu0 0
    %2208 = vmatprep.subr.bf16.mxu0 0
    %2209 = vmatpush1.bf16.msra.mxu0 0
    %2210 = vmatprep.subr.bf16.mxu0 0
    %2211 = vmatpush1.bf16.msra.mxu0 0
    %2212 = vmatprep.subr.bf16.mxu0 0
    %2213 = vmatpush1.bf16.msra.mxu0 0
    %2214 = vmatprep.subr.bf16.mxu0 0
    %2215 = vmatpush1.bf16.msra.mxu0 0
    %2216 = vmatprep.mubr.bf16.mxu0 0
    %2217 = vmatmul.mubr.bf16.gmra.mrb[0].mxu0 %v2176
    %v2218 = vpop.f32.mrb[0].mxu0
    %v2219 = vadd.f32 0.0, %v2218
    %v2220 = vpop.f32.mrb[0].mxu0
    %v2221 = vpop.f32.mrb[0].mxu0
    %v2222 = vadd.f32 0.0, %v2221
    %v2223 = vpop.f32.mrb[0].mxu0
    %2224 = vmatprep.mubr.bf16.mxu0 0
    %2225 = vmatmul.mubr.bf16.gmra.mrb[0].mxu0 %v2179
    %v2226 = vpop.f32.mrb[0].mxu0
    %v2227 = vadd.f32 0.0, %v2226
    %v2228 = vpop.f32.mrb[0].mxu0
    %v2229 = vpop.f32.mrb[0].mxu0
    %v2230 = vadd.f32 0.0, %v2229
    %v2231 = vpop.f32.mrb[0].mxu0
    %2232 = vmatprep.mubr.bf16.mxu0 0
    %2233 = vmatmul.mubr.bf16.gmra.mrb[0].mxu0 %v2182
    %v2234 = vpop.f32.mrb[0].mxu0
    %v2235 = vadd.f32 0.0, %v2234
    %v2236 = vpop.f32.mrb[0].mxu0
    %v2237 = vpop.f32.mrb[0].mxu0
    %v2238 = vadd.f32 0.0, %v2237
    %v2239 = vpop.f32.mrb[0].mxu0
    %2240 = vdwg.mxu0
    %v2241 = vadd.f32 %v1926, %v2219
    %v2242 = vadd.f32 %v1927, %v2222
    %v2243 = vadd.f32 %v1928, %v2227
    %v2244 = vadd.f32 %v1929, %v2230
    %v2245 = vadd.f32 %v1930, %v2235
    %v2246 = vadd.f32 %v1931, %v2238
    %v2247 = vld [vmem:[%s2 + $0xf] sm:$0x1]
    %v2248 = vlaneseq
    %v2249 = vshrl.u32 %v2248, 7
    %v2250 = vsub.s32 0, %v2249
    %v2251 = vrot.slane %v2247, %v2250
    %v2252 = vadd.f32 %v2241, %v2251
    %v2253 = vadd.f32 %v2242, %v2251
    %v2254 = vadd.f32 %v2243, %v2251
    %v2255 = vadd.f32 %v2244, %v2251
    %v2256 = vadd.f32 %v2245, %v2251
    %v2257 = vadd.f32 %v2246, %v2251
    %v2258 = vld [vmem:[%s3 + $0x80] sm:$0xf]
    %v2259 = vld [vmem:[%s3 + $0x84] sm:$0xf]
    %v2260 = vld [vmem:[%s3 + $0x88] sm:$0xf]
    %v2261 = vld [vmem:[%s3 + $0x8c] sm:$0xf]
    %v2262 = vld [vmem:[%s3 + $0x90] sm:$0xf]
    %v2263 = vld [vmem:[%s3 + $0x94] sm:$0xf]
    %v2264 = vld [vmem:[%s3 + $0x98] sm:$0xf]
    %v2265 = vld [vmem:[%s3 + $0x9c] sm:$0xf]
    %v2266 = vld [vmem:[%s3 + $0xa0] sm:$0xf]
    %v2267 = vld [vmem:[%s3 + $0xa4] sm:$0xf]
    %v2268 = vld [vmem:[%s3 + $0xa8] sm:$0xf]
    %v2269 = vld [vmem:[%s3 + $0xac] sm:$0xf]
    %v2270 = vld [vmem:[%s3 + $0xb0] sm:$0xf]
    %v2271 = vld [vmem:[%s3 + $0xb4] sm:$0xf]
    %v2272 = vld [vmem:[%s3 + $0xb8] sm:$0xf]
    %v2273 = vld [vmem:[%s3 + $0xbc] sm:$0xf]
    %v2274 = vld [vmem:[%s3 + $0xc0] sm:$0xf]
    %v2275 = vld [vmem:[%s3 + $0xc4] sm:$0xf]
    %v2276 = vld [vmem:[%s3 + $0xc8] sm:$0xf]
    %v2277 = vld [vmem:[%s3 + $0xcc] sm:$0xf]
    %v2278 = vld [vmem:[%s2 + $0x10] sm:$0x1]
    %v2279 = vld [vmem:[%s2 + $0x11] sm:$0x1]
    %v2280 = vsel %vm194, %v2252, 0.0
    %2281 = vadd.xlane.f32.xlu0 %v2280
    %v2282 = vpop.xlane.xlu0 %2281
    %v2283 = vsel %vm194, %v2253, 0.0
    %2284 = vadd.xlane.f32.xlu0 %v2283
    %v2285 = vpop.xlane.xlu0 %2284
    %v2286 = vsel %vm194, %v2254, 0.0
    %2287 = vadd.xlane.f32.xlu0 %v2286
    %v2288 = vpop.xlane.xlu0 %2287
    %v2289 = vsel %vm194, %v2255, 0.0
    %2290 = vadd.xlane.f32.xlu0 %v2289
    %v2291 = vpop.xlane.xlu0 %2290
    %v2292 = vsel %vm194, %v2256, 0.0
    %2293 = vadd.xlane.f32.xlu0 %v2292
    %v2294 = vpop.xlane.xlu0 %2293
    %v2295 = vsel %vm194, %v2257, 0.0
    %2296 = vadd.xlane.f32.xlu0 %v2295
    %v2297 = vpop.xlane.xlu0 %2296
    %v2298 = vmul.f32 %v2282, %v213
    %v2299 = vmul.f32 %v2285, %v213
    %v2300 = vmul.f32 %v2288, %v213
    %v2301 = vmul.f32 %v2291, %v213
    %v2302 = vmul.f32 %v2294, %v213
    %v2303 = vmul.f32 %v2297, %v213
    %v2304 = vsub.f32 %v2252, %v2298
    %v2305 = vsub.f32 %v2253, %v2299
    %v2306 = vsub.f32 %v2254, %v2300
    %v2307 = vsub.f32 %v2255, %v2301
    %v2308 = vsub.f32 %v2256, %v2302
    %v2309 = vsub.f32 %v2257, %v2303
    %v2310 = vmul.f32 %v2304, %v2304
    %v2311 = vmul.f32 %v2305, %v2305
    %v2312 = vmul.f32 %v2306, %v2306
    %v2313 = vmul.f32 %v2307, %v2307
    %v2314 = vmul.f32 %v2308, %v2308
    %v2315 = vmul.f32 %v2309, %v2309
    %v2316 = vsel %vm194, %v2310, 0.0
    %2317 = vadd.xlane.f32.xlu0 %v2316
    %v2318 = vpop.xlane.xlu0 %2317
    %v2319 = vsel %vm194, %v2311, 0.0
    %2320 = vadd.xlane.f32.xlu0 %v2319
    %v2321 = vpop.xlane.xlu0 %2320
    %v2322 = vsel %vm194, %v2312, 0.0
    %2323 = vadd.xlane.f32.xlu0 %v2322
    %v2324 = vpop.xlane.xlu0 %2323
    %v2325 = vsel %vm194, %v2313, 0.0
    %2326 = vadd.xlane.f32.xlu0 %v2325
    %v2327 = vpop.xlane.xlu0 %2326
    %v2328 = vsel %vm194, %v2314, 0.0
    %2329 = vadd.xlane.f32.xlu0 %v2328
    %v2330 = vpop.xlane.xlu0 %2329
    %v2331 = vsel %vm194, %v2315, 0.0
    %2332 = vadd.xlane.f32.xlu0 %v2331
    %v2333 = vpop.xlane.xlu0 %2332
    %v2334 = vmul.f32 %v2318, %v213
    %v2335 = vmul.f32 %v2321, %v213
    %v2336 = vmul.f32 %v2324, %v213
    %v2337 = vmul.f32 %v2327, %v213
    %v2338 = vmul.f32 %v2330, %v213
    %v2339 = vmul.f32 %v2333, %v213
    %v2340 = vadd.f32 %v2334, 1e-05
    %v2341 = vadd.f32 %v2335, 1e-05
    %v2342 = vadd.f32 %v2336, 1e-05
    %v2343 = vadd.f32 %v2337, 1e-05
    %v2344 = vadd.f32 %v2338, 1e-05
    %v2345 = vadd.f32 %v2339, 1e-05
    %v2346 = vrsqrt.pop %v2340
    %v2347 = vrsqrt.pop %v2341
    %v2348 = vrsqrt.pop %v2342
    %v2349 = vrsqrt.pop %v2343
    %v2350 = vrsqrt.pop %v2344
    %v2351 = vrsqrt.pop %v2345
    %v2352 = vmul.f32 %v2304, %v2346
    %v2353 = vmul.f32 %v2305, %v2347
    %v2354 = vmul.f32 %v2306, %v2348
    %v2355 = vmul.f32 %v2307, %v2349
    %v2356 = vmul.f32 %v2308, %v2350
    %v2357 = vmul.f32 %v2309, %v2351
    %v2358 = vlaneseq
    %v2359 = vshrl.u32 %v2358, 7
    %v2360 = vsub.s32 0, %v2359
    %v2361 = vrot.slane %v2278, %v2360
    %v2362 = vmul.f32 %v2352, %v2361
    %v2363 = vmul.f32 %v2353, %v2361
    %v2364 = vmul.f32 %v2354, %v2361
    %v2365 = vmul.f32 %v2355, %v2361
    %v2366 = vmul.f32 %v2356, %v2361
    %v2367 = vmul.f32 %v2357, %v2361
    %v2368 = vlaneseq
    %v2369 = vshrl.u32 %v2368, 7
    %v2370 = vsub.s32 0, %v2369
    %v2371 = vrot.slane %v2279, %v2370
    %v2372 = vadd.f32 %v2362, %v2371
    %v2373 = vadd.f32 %v2363, %v2371
    %v2374 = vadd.f32 %v2364, %v2371
    %v2375 = vadd.f32 %v2365, %v2371
    %v2376 = vadd.f32 %v2366, %v2371
    %v2377 = vadd.f32 %v2367, %v2371
    %v2378 = vpack.c.bf16 %v2373, %v2372
    %v2379 = vpack.c.bf16 %v2375, %v2374
    %v2380 = vpack.c.bf16 %v2377, %v2376
    %v2381 = vld [vmem:[%s2 + $0x12] sm:$0x1]
    %v2382 = vlaneseq
    %v2383 = vshrl.u32 %v2382, 7
    %v2384 = vsub.s32 0, %v2383
    %v2385 = vrot.slane %v2381, %v2384
    %v2390 = vunpack.c.l.b16 %v2258
    %v2391 = vunpack.c.l.b16 %v2259
    %v2392 = vunpack.c.l.b16 %v2260
    %v2393 = vunpack.c.l.b16 %v2261
    %v2394 = vpack.c.b16 %v2391, %v2390
    %v2395 = vpack.c.b16 %v2393, %v2392
    %v2399 = vsel %vm194, %v2378, 0
    %v2402 = vsel %vm194, %v2379, 0
    %v2405 = vsel %vm194, %v2380, 0
    %2407 = vmatprep.subr.bf16.mxu0 0
    %2408 = vmatpush1.bf16.msra.mxu0 %v2394
    %2409 = vmatprep.subr.bf16.mxu0 0
    %2410 = vmatpush1.bf16.msra.mxu0 %v2395
    %2411 = vmatprep.subr.bf16.mxu0 0
    %2412 = vmatpush1.bf16.msra.mxu0 0
    %2413 = vmatprep.subr.bf16.mxu0 0
    %2414 = vmatpush1.bf16.msra.mxu0 0
    %2415 = vmatprep.subr.bf16.mxu0 0
    %2416 = vmatpush1.bf16.msra.mxu0 0
    %2417 = vmatprep.subr.bf16.mxu0 0
    %2418 = vmatpush1.bf16.msra.mxu0 0
    %2419 = vmatprep.subr.bf16.mxu0 0
    %2420 = vmatpush1.bf16.msra.mxu0 0
    %2421 = vmatprep.subr.bf16.mxu0 0
    %2422 = vmatpush1.bf16.msra.mxu0 0
    %2423 = vmatprep.subr.bf16.mxu0 0
    %2424 = vmatpush1.bf16.msra.mxu0 0
    %2425 = vmatprep.subr.bf16.mxu0 0
    %2426 = vmatpush1.bf16.msra.mxu0 0
    %2427 = vmatprep.subr.bf16.mxu0 0
    %2428 = vmatpush1.bf16.msra.mxu0 0
    %2429 = vmatprep.subr.bf16.mxu0 0
    %2430 = vmatpush1.bf16.msra.mxu0 0
    %2431 = vmatprep.subr.bf16.mxu0 0
    %2432 = vmatpush1.bf16.msra.mxu0 0
    %2433 = vmatprep.subr.bf16.mxu0 0
    %2434 = vmatpush1.bf16.msra.mxu0 0
    %2435 = vmatprep.subr.bf16.mxu0 0
    %2436 = vmatpush1.bf16.msra.mxu0 0
    %2437 = vmatprep.subr.bf16.mxu0 0
    %2438 = vmatpush1.bf16.msra.mxu0 0
    %2439 = vmatprep.mubr.bf16.mxu0 0
    %2440 = vmatmul.mubr.bf16.gmra.mrb[0].mxu0 %v2399
    %v2441 = vpop.f32.mrb[0].mxu0
    %v2442 = vadd.f32 %v2385, %v2441
    %v2443 = vpop.f32.mrb[0].mxu0
    %v2444 = vpop.f32.mrb[0].mxu0
    %v2445 = vadd.f32 %v2385, %v2444
    %v2446 = vpop.f32.mrb[0].mxu0
    %2447 = vmatprep.mubr.bf16.mxu0 0
    %2448 = vmatmul.mubr.bf16.gmra.mrb[0].mxu0 %v2402
    %v2449 = vpop.f32.mrb[0].mxu0
    %v2450 = vadd.f32 %v2385, %v2449
    %v2451 = vpop.f32.mrb[0].mxu0
    %v2452 = vpop.f32.mrb[0].mxu0
    %v2453 = vadd.f32 %v2385, %v2452
    %v2454 = vpop.f32.mrb[0].mxu0
    %2455 = vmatprep.mubr.bf16.mxu0 0
    %2456 = vmatmul.mubr.bf16.gmra.mrb[0].mxu0 %v2405
    %v2457 = vpop.f32.mrb[0].mxu0
    %v2458 = vadd.f32 %v2385, %v2457
    %v2459 = vpop.f32.mrb[0].mxu0
    %v2460 = vpop.f32.mrb[0].mxu0
    %v2461 = vadd.f32 %v2385, %v2460
    %v2462 = vpop.f32.mrb[0].mxu0
    %2463 = vdwg.mxu0
    %v2464 = vmul.f32 %v2442, %v383
    %v2465 = vmul.f32 %v2445, %v383
    %v2466 = vmul.f32 %v2450, %v383
    %v2467 = vmul.f32 %v2442, %v387
    %v2468 = vmul.f32 %v2445, %v387
    %v2469 = vmul.f32 %v2450, %v387
    %v2470 = vmul.f32 %v2442, %v391
    %v2471 = vmul.f32 %v2445, %v391
    %v2472 = vmul.f32 %v2450, %v391
    %v2473 = vmul.f32 %v2442, %v395
    %v2474 = vmul.f32 %v2445, %v395
    %v2475 = vmul.f32 %v2450, %v395
    %v2476 = vmul.f32 %v2453, %v383
    %v2477 = vmul.f32 %v2458, %v383
    %v2478 = vmul.f32 %v2461, %v383
    %v2479 = vmul.f32 %v2453, %v387
    %v2480 = vmul.f32 %v2458, %v387
    %v2481 = vmul.f32 %v2461, %v387
    %v2482 = vmul.f32 %v2453, %v391
    %v2483 = vmul.f32 %v2458, %v391
    %v2484 = vmul.f32 %v2461, %v391
    %v2485 = vmul.f32 %v2453, %v395
    %v2486 = vmul.f32 %v2458, %v395
    %v2487 = vmul.f32 %v2461, %v395
    %v2488 = vmul.f32 %v2442, %v425
    %v2489 = vmul.f32 %v2445, %v425
    %v2490 = vmul.f32 %v2450, %v425
    %v2491 = vmul.f32 %v2442, %v427
    %v2492 = vmul.f32 %v2445, %v427
    %v2493 = vmul.f32 %v2450, %v427
    %v2494 = vmul.f32 %v2442, %v429
    %v2495 = vmul.f32 %v2445, %v429
    %v2496 = vmul.f32 %v2450, %v429
    %v2497 = vmul.f32 %v2442, %v431
    %v2498 = vmul.f32 %v2445, %v431
    %v2499 = vmul.f32 %v2450, %v431
    %v2500 = vmul.f32 %v2453, %v425
    %v2501 = vmul.f32 %v2458, %v425
    %v2502 = vmul.f32 %v2461, %v425
    %v2503 = vmul.f32 %v2453, %v427
    %v2504 = vmul.f32 %v2458, %v427
    %v2505 = vmul.f32 %v2461, %v427
    %v2506 = vmul.f32 %v2453, %v429
    %v2507 = vmul.f32 %v2458, %v429
    %v2508 = vmul.f32 %v2461, %v429
    %v2509 = vmul.f32 %v2453, %v431
    %v2510 = vmul.f32 %v2458, %v431
    %v2511 = vmul.f32 %v2461, %v431
    %v2512 = vpack.c.bf16 %v2465, %v2464
    %v2513 = vpack.c.bf16 %v2466, %v2466
    %v2514 = vpack.c.bf16 %v2468, %v2467
    %v2515 = vpack.c.bf16 %v2469, %v2469
    %v2516 = vpack.c.bf16 %v2471, %v2470
    %v2517 = vpack.c.bf16 %v2472, %v2472
    %v2518 = vpack.c.bf16 %v2474, %v2473
    %v2519 = vpack.c.bf16 %v2475, %v2475
    %v2520 = vpack.c.bf16 %v2477, %v2476
    %v2521 = vpack.c.bf16 %v2478, %v2478
    %v2522 = vpack.c.bf16 %v2480, %v2479
    %v2523 = vpack.c.bf16 %v2481, %v2481
    %v2524 = vpack.c.bf16 %v2483, %v2482
    %v2525 = vpack.c.bf16 %v2484, %v2484
    %v2526 = vpack.c.bf16 %v2486, %v2485
    %v2527 = vpack.c.bf16 %v2487, %v2487
    %v2528 = vpack.c.bf16 %v2445, %v2442
    %v2529 = vpack.c.bf16 %v2450, %v2450
    %v2530 = vpack.c.bf16 %v2458, %v2453
    %v2531 = vpack.c.bf16 %v2461, %v2461
    %2534 = vrot.lane.b32.xlu0 %v2528, 96
    %v2535 = vpop.permute.xlu0 %2534
    %2536 = vrot.lane.b32.xlu0 %v2529, 96
    %v2537 = vpop.permute.xlu0 %2536
    %v2539 = vsel %vm194, %v2512, 0
    %v2542 = vsel %vm194, %v2513, 0
    %v2545 = vsel %vm194, %v2535, 0
    %v2548 = vsel %vm194, %v2537, 0
    %2550 = vmatprep.subr.bf16.mxu0 0
    %2551 = vmatpush1.bf16.xpose.msra.mxu0 %v2545
    %2552 = vmatprep.subr.bf16.mxu0 0
    %2553 = vmatpush1.bf16.xpose.msra.mxu0 %v2548
    %2554 = vmatprep.subr.bf16.mxu0 0
    %2555 = vmatpush1.bf16.xpose.msra.mxu0 0
    %2556 = vmatprep.subr.bf16.mxu0 0
    %2557 = vmatpush1.bf16.xpose.msra.mxu0 0
    %2558 = vmatprep.subr.bf16.mxu0 0
    %2559 = vmatpush1.bf16.xpose.msra.mxu0 0
    %2560 = vmatprep.subr.bf16.mxu0 0
    %2561 = vmatpush1.bf16.xpose.msra.mxu0 0
    %2562 = vmatprep.subr.bf16.mxu0 0
    %2563 = vmatpush1.bf16.xpose.msra.mxu0 0
    %2564 = vmatprep.subr.bf16.mxu0 0
    %2565 = vmatpush1.bf16.xpose.msra.mxu0 0
    %2566 = vmatprep.subr.bf16.mxu0 0
    %2567 = vmatpush1.bf16.xpose.msra.mxu0 0
    %2568 = vmatprep.subr.bf16.mxu0 0
    %2569 = vmatpush1.bf16.xpose.msra.mxu0 0
    %2570 = vmatprep.subr.bf16.mxu0 0
    %2571 = vmatpush1.bf16.xpose.msra.mxu0 0
    %2572 = vmatprep.subr.bf16.mxu0 0
    %2573 = vmatpush1.bf16.xpose.msra.mxu0 0
    %2574 = vmatprep.subr.bf16.mxu0 0
    %2575 = vmatpush1.bf16.xpose.msra.mxu0 0
    %2576 = vmatprep.subr.bf16.mxu0 0
    %2577 = vmatpush1.bf16.xpose.msra.mxu0 0
    %2578 = vmatprep.subr.bf16.mxu0 0
    %2579 = vmatpush1.bf16.xpose.msra.mxu0 0
    %2580 = vmatprep.subr.bf16.mxu0 0
    %2581 = vmatpush1.bf16.xpose.msra.mxu0 0
    %2582 = vmatprep.mubr.bf16.mxu0 0
    %2583 = vmatmul.mubr.bf16.gmra.mrb[0].mxu0 %v2539
    %v2584 = vpop.f32.mrb[0].mxu0
    %v2585 = vadd.f32 0.0, %v2584
    %v2586 = vpop.f32.mrb[0].mxu0
    %v2587 = vpop.f32.mrb[0].mxu0
    %v2588 = vadd.f32 0.0, %v2587
    %v2589 = vpop.f32.mrb[0].mxu0
    %2590 = vmatprep.mubr.bf16.mxu0 0
    %2591 = vmatmul.mubr.bf16.gmra.mrb[0].mxu0 %v2542
    %v2592 = vpop.f32.mrb[0].mxu0
    %v2593 = vadd.f32 0.0, %v2592
    %v2594 = vpop.f32.mrb[0].mxu0
    %v2595 = vpop.f32.mrb[0].mxu0
    %v2596 = vpop.f32.mrb[0].mxu0
    %2597 = vdwg.mxu0
    %v2599 = vsel %vm194, %v2514, 0
    %v2602 = vsel %vm194, %v2515, 0
    %2604 = vmatprep.subr.bf16.mxu0 0
    %2605 = vmatpush1.bf16.xpose.msra.mxu0 %v2545
    %2606 = vmatprep.subr.bf16.mxu0 0
    %2607 = vmatpush1.bf16.xpose.msra.mxu0 %v2548
    %2608 = vmatprep.subr.bf16.mxu0 0
    %2609 = vmatpush1.bf16.xpose.msra.mxu0 0
    %2610 = vmatprep.subr.bf16.mxu0 0
    %2611 = vmatpush1.bf16.xpose.msra.mxu0 0
    %2612 = vmatprep.subr.bf16.mxu0 0
    %2613 = vmatpush1.bf16.xpose.msra.mxu0 0
    %2614 = vmatprep.subr.bf16.mxu0 0
    %2615 = vmatpush1.bf16.xpose.msra.mxu0 0
    %2616 = vmatprep.subr.bf16.mxu0 0
    %2617 = vmatpush1.bf16.xpose.msra.mxu0 0
    %2618 = vmatprep.subr.bf16.mxu0 0
    %2619 = vmatpush1.bf16.xpose.msra.mxu0 0
    %2620 = vmatprep.subr.bf16.mxu0 0
    %2621 = vmatpush1.bf16.xpose.msra.mxu0 0
    %2622 = vmatprep.subr.bf16.mxu0 0
    %2623 = vmatpush1.bf16.xpose.msra.mxu0 0
    %2624 = vmatprep.subr.bf16.mxu0 0
    %2625 = vmatpush1.bf16.xpose.msra.mxu0 0
    %2626 = vmatprep.subr.bf16.mxu0 0
    %2627 = vmatpush1.bf16.xpose.msra.mxu0 0
    %2628 = vmatprep.subr.bf16.mxu0 0
    %2629 = vmatpush1.bf16.xpose.msra.mxu0 0
    %2630 = vmatprep.subr.bf16.mxu0 0
    %2631 = vmatpush1.bf16.xpose.msra.mxu0 0
    %2632 = vmatprep.subr.bf16.mxu0 0
    %2633 = vmatpush1.bf16.xpose.msra.mxu0 0
    %2634 = vmatprep.subr.bf16.mxu0 0
    %2635 = vmatpush1.bf16.xpose.msra.mxu0 0
    %2636 = vmatprep.mubr.bf16.mxu0 0
    %2637 = vmatmul.mubr.bf16.gmra.mrb[0].mxu0 %v2599
    %v2638 = vpop.f32.mrb[0].mxu0
    %v2639 = vadd.f32 0.0, %v2638
    %v2640 = vpop.f32.mrb[0].mxu0
    %v2641 = vpop.f32.mrb[0].mxu0
    %v2642 = vadd.f32 0.0, %v2641
    %v2643 = vpop.f32.mrb[0].mxu0
    %2644 = vmatprep.mubr.bf16.mxu0 0
    %2645 = vmatmul.mubr.bf16.gmra.mrb[0].mxu0 %v2602
    %v2646 = vpop.f32.mrb[0].mxu0
    %v2647 = vadd.f32 0.0, %v2646
    %v2648 = vpop.f32.mrb[0].mxu0
    %v2649 = vpop.f32.mrb[0].mxu0
    %v2650 = vpop.f32.mrb[0].mxu0
    %2651 = vdwg.mxu0
    %v2653 = vsel %vm194, %v2516, 0
    %v2656 = vsel %vm194, %v2517, 0
    %2658 = vmatprep.subr.bf16.mxu0 0
    %2659 = vmatpush1.bf16.xpose.msra.mxu0 %v2545
    %2660 = vmatprep.subr.bf16.mxu0 0
    %2661 = vmatpush1.bf16.xpose.msra.mxu0 %v2548
    %2662 = vmatprep.subr.bf16.mxu0 0
    %2663 = vmatpush1.bf16.xpose.msra.mxu0 0
    %2664 = vmatprep.subr.bf16.mxu0 0
    %2665 = vmatpush1.bf16.xpose.msra.mxu0 0
    %2666 = vmatprep.subr.bf16.mxu0 0
    %2667 = vmatpush1.bf16.xpose.msra.mxu0 0
    %2668 = vmatprep.subr.bf16.mxu0 0
    %2669 = vmatpush1.bf16.xpose.msra.mxu0 0
    %2670 = vmatprep.subr.bf16.mxu0 0
    %2671 = vmatpush1.bf16.xpose.msra.mxu0 0
    %2672 = vmatprep.subr.bf16.mxu0 0
    %2673 = vmatpush1.bf16.xpose.msra.mxu0 0
    %2674 = vmatprep.subr.bf16.mxu0 0
    %2675 = vmatpush1.bf16.xpose.msra.mxu0 0
    %2676 = vmatprep.subr.bf16.mxu0 0
    %2677 = vmatpush1.bf16.xpose.msra.mxu0 0
    %2678 = vmatprep.subr.bf16.mxu0 0
    %2679 = vmatpush1.bf16.xpose.msra.mxu0 0
    %2680 = vmatprep.subr.bf16.mxu0 0
    %2681 = vmatpush1.bf16.xpose.msra.mxu0 0
    %2682 = vmatprep.subr.bf16.mxu0 0
    %2683 = vmatpush1.bf16.xpose.msra.mxu0 0
    %2684 = vmatprep.subr.bf16.mxu0 0
    %2685 = vmatpush1.bf16.xpose.msra.mxu0 0
    %2686 = vmatprep.subr.bf16.mxu0 0
    %2687 = vmatpush1.bf16.xpose.msra.mxu0 0
    %2688 = vmatprep.subr.bf16.mxu0 0
    %2689 = vmatpush1.bf16.xpose.msra.mxu0 0
    %2690 = vmatprep.mubr.bf16.mxu0 0
    %2691 = vmatmul.mubr.bf16.gmra.mrb[0].mxu0 %v2653
    %v2692 = vpop.f32.mrb[0].mxu0
    %v2693 = vadd.f32 0.0, %v2692
    %v2694 = vpop.f32.mrb[0].mxu0
    %v2695 = vpop.f32.mrb[0].mxu0
    %v2696 = vadd.f32 0.0, %v2695
    %v2697 = vpop.f32.mrb[0].mxu0
    %2698 = vmatprep.mubr.bf16.mxu0 0
    %2699 = vmatmul.mubr.bf16.gmra.mrb[0].mxu0 %v2656
    %v2700 = vpop.f32.mrb[0].mxu0
    %v2701 = vadd.f32 0.0, %v2700
    %v2702 = vpop.f32.mrb[0].mxu0
    %v2703 = vpop.f32.mrb[0].mxu0
    %v2704 = vpop.f32.mrb[0].mxu0
    %2705 = vdwg.mxu0
    %v2707 = vsel %vm194, %v2518, 0
    %v2710 = vsel %vm194, %v2519, 0
    %2712 = vmatprep.subr.bf16.mxu0 0
    %2713 = vmatpush1.bf16.xpose.msra.mxu0 %v2545
    %2714 = vmatprep.subr.bf16.mxu0 0
    %2715 = vmatpush1.bf16.xpose.msra.mxu0 %v2548
    %2716 = vmatprep.subr.bf16.mxu0 0
    %2717 = vmatpush1.bf16.xpose.msra.mxu0 0
    %2718 = vmatprep.subr.bf16.mxu0 0
    %2719 = vmatpush1.bf16.xpose.msra.mxu0 0
    %2720 = vmatprep.subr.bf16.mxu0 0
    %2721 = vmatpush1.bf16.xpose.msra.mxu0 0
    %2722 = vmatprep.subr.bf16.mxu0 0
    %2723 = vmatpush1.bf16.xpose.msra.mxu0 0
    %2724 = vmatprep.subr.bf16.mxu0 0
    %2725 = vmatpush1.bf16.xpose.msra.mxu0 0
    %2726 = vmatprep.subr.bf16.mxu0 0
    %2727 = vmatpush1.bf16.xpose.msra.mxu0 0
    %2728 = vmatprep.subr.bf16.mxu0 0
    %2729 = vmatpush1.bf16.xpose.msra.mxu0 0
    %2730 = vmatprep.subr.bf16.mxu0 0
    %2731 = vmatpush1.bf16.xpose.msra.mxu0 0
    %2732 = vmatprep.subr.bf16.mxu0 0
    %2733 = vmatpush1.bf16.xpose.msra.mxu0 0
    %2734 = vmatprep.subr.bf16.mxu0 0
    %2735 = vmatpush1.bf16.xpose.msra.mxu0 0
    %2736 = vmatprep.subr.bf16.mxu0 0
    %2737 = vmatpush1.bf16.xpose.msra.mxu0 0
    %2738 = vmatprep.subr.bf16.mxu0 0
    %2739 = vmatpush1.bf16.xpose.msra.mxu0 0
    %2740 = vmatprep.subr.bf16.mxu0 0
    %2741 = vmatpush1.bf16.xpose.msra.mxu0 0
    %2742 = vmatprep.subr.bf16.mxu0 0
    %2743 = vmatpush1.bf16.xpose.msra.mxu0 0
    %2744 = vmatprep.mubr.bf16.mxu0 0
    %2745 = vmatmul.mubr.bf16.gmra.mrb[0].mxu0 %v2707
    %v2746 = vpop.f32.mrb[0].mxu0
    %v2747 = vadd.f32 0.0, %v2746
    %v2748 = vpop.f32.mrb[0].mxu0
    %v2749 = vpop.f32.mrb[0].mxu0
    %v2750 = vadd.f32 0.0, %v2749
    %v2751 = vpop.f32.mrb[0].mxu0
    %2752 = vmatprep.mubr.bf16.mxu0 0
    %2753 = vmatmul.mubr.bf16.gmra.mrb[0].mxu0 %v2710
    %v2754 = vpop.f32.mrb[0].mxu0
    %v2755 = vadd.f32 0.0, %v2754
    %v2756 = vpop.f32.mrb[0].mxu0
    %v2757 = vpop.f32.mrb[0].mxu0
    %v2758 = vpop.f32.mrb[0].mxu0
    %2759 = vdwg.mxu0
    %2762 = vrot.lane.b32.xlu0 %v2530, 96
    %v2763 = vpop.permute.xlu0 %2762
    %2764 = vrot.lane.b32.xlu0 %v2531, 96
    %v2765 = vpop.permute.xlu0 %2764
    %v2767 = vsel %vm194, %v2520, 0
    %v2770 = vsel %vm194, %v2521, 0
    %v2773 = vsel %vm194, %v2763, 0
    %v2776 = vsel %vm194, %v2765, 0
    %2778 = vmatprep.subr.bf16.mxu0 0
    %2779 = vmatpush1.bf16.xpose.msra.mxu0 %v2773
    %2780 = vmatprep.subr.bf16.mxu0 0
    %2781 = vmatpush1.bf16.xpose.msra.mxu0 %v2776
    %2782 = vmatprep.subr.bf16.mxu0 0
    %2783 = vmatpush1.bf16.xpose.msra.mxu0 0
    %2784 = vmatprep.subr.bf16.mxu0 0
    %2785 = vmatpush1.bf16.xpose.msra.mxu0 0
    %2786 = vmatprep.subr.bf16.mxu0 0
    %2787 = vmatpush1.bf16.xpose.msra.mxu0 0
    %2788 = vmatprep.subr.bf16.mxu0 0
    %2789 = vmatpush1.bf16.xpose.msra.mxu0 0
    %2790 = vmatprep.subr.bf16.mxu0 0
    %2791 = vmatpush1.bf16.xpose.msra.mxu0 0
    %2792 = vmatprep.subr.bf16.mxu0 0
    %2793 = vmatpush1.bf16.xpose.msra.mxu0 0
    %2794 = vmatprep.subr.bf16.mxu0 0
    %2795 = vmatpush1.bf16.xpose.msra.mxu0 0
    %2796 = vmatprep.subr.bf16.mxu0 0
    %2797 = vmatpush1.bf16.xpose.msra.mxu0 0
    %2798 = vmatprep.subr.bf16.mxu0 0
    %2799 = vmatpush1.bf16.xpose.msra.mxu0 0
    %2800 = vmatprep.subr.bf16.mxu0 0
    %2801 = vmatpush1.bf16.xpose.msra.mxu0 0
    %2802 = vmatprep.subr.bf16.mxu0 0
    %2803 = vmatpush1.bf16.xpose.msra.mxu0 0
    %2804 = vmatprep.subr.bf16.mxu0 0
    %2805 = vmatpush1.bf16.xpose.msra.mxu0 0
    %2806 = vmatprep.subr.bf16.mxu0 0
    %2807 = vmatpush1.bf16.xpose.msra.mxu0 0
    %2808 = vmatprep.subr.bf16.mxu0 0
    %2809 = vmatpush1.bf16.xpose.msra.mxu0 0
    %2810 = vmatprep.mubr.bf16.mxu0 0
    %2811 = vmatmul.mubr.bf16.gmra.mrb[0].mxu0 %v2767
    %v2812 = vpop.f32.mrb[0].mxu0
    %v2813 = vadd.f32 0.0, %v2812
    %v2814 = vpop.f32.mrb[0].mxu0
    %v2815 = vpop.f32.mrb[0].mxu0
    %v2816 = vadd.f32 0.0, %v2815
    %v2817 = vpop.f32.mrb[0].mxu0
    %2818 = vmatprep.mubr.bf16.mxu0 0
    %2819 = vmatmul.mubr.bf16.gmra.mrb[0].mxu0 %v2770
    %v2820 = vpop.f32.mrb[0].mxu0
    %v2821 = vadd.f32 0.0, %v2820
    %v2822 = vpop.f32.mrb[0].mxu0
    %v2823 = vpop.f32.mrb[0].mxu0
    %v2824 = vpop.f32.mrb[0].mxu0
    %2825 = vdwg.mxu0
    %v2827 = vsel %vm194, %v2522, 0
    %v2830 = vsel %vm194, %v2523, 0
    %2832 = vmatprep.subr.bf16.mxu0 0
    %2833 = vmatpush1.bf16.xpose.msra.mxu0 %v2773
    %2834 = vmatprep.subr.bf16.mxu0 0
    %2835 = vmatpush1.bf16.xpose.msra.mxu0 %v2776
    %2836 = vmatprep.subr.bf16.mxu0 0
    %2837 = vmatpush1.bf16.xpose.msra.mxu0 0
    %2838 = vmatprep.subr.bf16.mxu0 0
    %2839 = vmatpush1.bf16.xpose.msra.mxu0 0
    %2840 = vmatprep.subr.bf16.mxu0 0
    %2841 = vmatpush1.bf16.xpose.msra.mxu0 0
    %2842 = vmatprep.subr.bf16.mxu0 0
    %2843 = vmatpush1.bf16.xpose.msra.mxu0 0
    %2844 = vmatprep.subr.bf16.mxu0 0
    %2845 = vmatpush1.bf16.xpose.msra.mxu0 0
    %2846 = vmatprep.subr.bf16.mxu0 0
    %2847 = vmatpush1.bf16.xpose.msra.mxu0 0
    %2848 = vmatprep.subr.bf16.mxu0 0
    %2849 = vmatpush1.bf16.xpose.msra.mxu0 0
    %2850 = vmatprep.subr.bf16.mxu0 0
    %2851 = vmatpush1.bf16.xpose.msra.mxu0 0
    %2852 = vmatprep.subr.bf16.mxu0 0
    %2853 = vmatpush1.bf16.xpose.msra.mxu0 0
    %2854 = vmatprep.subr.bf16.mxu0 0
    %2855 = vmatpush1.bf16.xpose.msra.mxu0 0
    %2856 = vmatprep.subr.bf16.mxu0 0
    %2857 = vmatpush1.bf16.xpose.msra.mxu0 0
    %2858 = vmatprep.subr.bf16.mxu0 0
    %2859 = vmatpush1.bf16.xpose.msra.mxu0 0
    %2860 = vmatprep.subr.bf16.mxu0 0
    %2861 = vmatpush1.bf16.xpose.msra.mxu0 0
    %2862 = vmatprep.subr.bf16.mxu0 0
    %2863 = vmatpush1.bf16.xpose.msra.mxu0 0
    %2864 = vmatprep.mubr.bf16.mxu0 0
    %2865 = vmatmul.mubr.bf16.gmra.mrb[0].mxu0 %v2827
    %v2866 = vpop.f32.mrb[0].mxu0
    %v2867 = vadd.f32 0.0, %v2866
    %v2868 = vpop.f32.mrb[0].mxu0
    %v2869 = vpop.f32.mrb[0].mxu0
    %v2870 = vadd.f32 0.0, %v2869
    %v2871 = vpop.f32.mrb[0].mxu0
    %2872 = vmatprep.mubr.bf16.mxu0 0
    %2873 = vmatmul.mubr.bf16.gmra.mrb[0].mxu0 %v2830
    %v2874 = vpop.f32.mrb[0].mxu0
    %v2875 = vadd.f32 0.0, %v2874
    %v2876 = vpop.f32.mrb[0].mxu0
    %v2877 = vpop.f32.mrb[0].mxu0
    %v2878 = vpop.f32.mrb[0].mxu0
    %2879 = vdwg.mxu0
    %v2881 = vsel %vm194, %v2524, 0
    %v2884 = vsel %vm194, %v2525, 0
    %2886 = vmatprep.subr.bf16.mxu0 0
    %2887 = vmatpush1.bf16.xpose.msra.mxu0 %v2773
    %2888 = vmatprep.subr.bf16.mxu0 0
    %2889 = vmatpush1.bf16.xpose.msra.mxu0 %v2776
    %2890 = vmatprep.subr.bf16.mxu0 0
    %2891 = vmatpush1.bf16.xpose.msra.mxu0 0
    %2892 = vmatprep.subr.bf16.mxu0 0
    %2893 = vmatpush1.bf16.xpose.msra.mxu0 0
    %2894 = vmatprep.subr.bf16.mxu0 0
    %2895 = vmatpush1.bf16.xpose.msra.mxu0 0
    %2896 = vmatprep.subr.bf16.mxu0 0
    %2897 = vmatpush1.bf16.xpose.msra.mxu0 0
    %2898 = vmatprep.subr.bf16.mxu0 0
    %2899 = vmatpush1.bf16.xpose.msra.mxu0 0
    %2900 = vmatprep.subr.bf16.mxu0 0
    %2901 = vmatpush1.bf16.xpose.msra.mxu0 0
    %2902 = vmatprep.subr.bf16.mxu0 0
    %2903 = vmatpush1.bf16.xpose.msra.mxu0 0
    %2904 = vmatprep.subr.bf16.mxu0 0
    %2905 = vmatpush1.bf16.xpose.msra.mxu0 0
    %2906 = vmatprep.subr.bf16.mxu0 0
    %2907 = vmatpush1.bf16.xpose.msra.mxu0 0
    %2908 = vmatprep.subr.bf16.mxu0 0
    %2909 = vmatpush1.bf16.xpose.msra.mxu0 0
    %2910 = vmatprep.subr.bf16.mxu0 0
    %2911 = vmatpush1.bf16.xpose.msra.mxu0 0
    %2912 = vmatprep.subr.bf16.mxu0 0
    %2913 = vmatpush1.bf16.xpose.msra.mxu0 0
    %2914 = vmatprep.subr.bf16.mxu0 0
    %2915 = vmatpush1.bf16.xpose.msra.mxu0 0
    %2916 = vmatprep.subr.bf16.mxu0 0
    %2917 = vmatpush1.bf16.xpose.msra.mxu0 0
    %2918 = vmatprep.mubr.bf16.mxu0 0
    %2919 = vmatmul.mubr.bf16.gmra.mrb[0].mxu0 %v2881
    %v2920 = vpop.f32.mrb[0].mxu0
    %v2921 = vadd.f32 0.0, %v2920
    %v2922 = vpop.f32.mrb[0].mxu0
    %v2923 = vpop.f32.mrb[0].mxu0
    %v2924 = vadd.f32 0.0, %v2923
    %v2925 = vpop.f32.mrb[0].mxu0
    %2926 = vmatprep.mubr.bf16.mxu0 0
    %2927 = vmatmul.mubr.bf16.gmra.mrb[0].mxu0 %v2884
    %v2928 = vpop.f32.mrb[0].mxu0
    %v2929 = vadd.f32 0.0, %v2928
    %v2930 = vpop.f32.mrb[0].mxu0
    %v2931 = vpop.f32.mrb[0].mxu0
    %v2932 = vpop.f32.mrb[0].mxu0
    %2933 = vdwg.mxu0
    %v2935 = vsel %vm194, %v2526, 0
    %v2938 = vsel %vm194, %v2527, 0
    %2940 = vmatprep.subr.bf16.mxu0 0
    %2941 = vmatpush1.bf16.xpose.msra.mxu0 %v2773
    %2942 = vmatprep.subr.bf16.mxu0 0
    %2943 = vmatpush1.bf16.xpose.msra.mxu0 %v2776
    %2944 = vmatprep.subr.bf16.mxu0 0
    %2945 = vmatpush1.bf16.xpose.msra.mxu0 0
    %2946 = vmatprep.subr.bf16.mxu0 0
    %2947 = vmatpush1.bf16.xpose.msra.mxu0 0
    %2948 = vmatprep.subr.bf16.mxu0 0
    %2949 = vmatpush1.bf16.xpose.msra.mxu0 0
    %2950 = vmatprep.subr.bf16.mxu0 0
    %2951 = vmatpush1.bf16.xpose.msra.mxu0 0
    %2952 = vmatprep.subr.bf16.mxu0 0
    %2953 = vmatpush1.bf16.xpose.msra.mxu0 0
    %2954 = vmatprep.subr.bf16.mxu0 0
    %2955 = vmatpush1.bf16.xpose.msra.mxu0 0
    %2956 = vmatprep.subr.bf16.mxu0 0
    %2957 = vmatpush1.bf16.xpose.msra.mxu0 0
    %2958 = vmatprep.subr.bf16.mxu0 0
    %2959 = vmatpush1.bf16.xpose.msra.mxu0 0
    %2960 = vmatprep.subr.bf16.mxu0 0
    %2961 = vmatpush1.bf16.xpose.msra.mxu0 0
    %2962 = vmatprep.subr.bf16.mxu0 0
    %2963 = vmatpush1.bf16.xpose.msra.mxu0 0
    %2964 = vmatprep.subr.bf16.mxu0 0
    %2965 = vmatpush1.bf16.xpose.msra.mxu0 0
    %2966 = vmatprep.subr.bf16.mxu0 0
    %2967 = vmatpush1.bf16.xpose.msra.mxu0 0
    %2968 = vmatprep.subr.bf16.mxu0 0
    %2969 = vmatpush1.bf16.xpose.msra.mxu0 0
    %2970 = vmatprep.subr.bf16.mxu0 0
    %2971 = vmatpush1.bf16.xpose.msra.mxu0 0
    %2972 = vmatprep.mubr.bf16.mxu0 0
    %2973 = vmatmul.mubr.bf16.gmra.mrb[0].mxu0 %v2935
    %v2974 = vpop.f32.mrb[0].mxu0
    %v2975 = vadd.f32 0.0, %v2974
    %v2976 = vpop.f32.mrb[0].mxu0
    %v2977 = vpop.f32.mrb[0].mxu0
    %v2978 = vadd.f32 0.0, %v2977
    %v2979 = vpop.f32.mrb[0].mxu0
    %2980 = vmatprep.mubr.bf16.mxu0 0
    %2981 = vmatmul.mubr.bf16.gmra.mrb[0].mxu0 %v2938
    %v2982 = vpop.f32.mrb[0].mxu0
    %v2983 = vadd.f32 0.0, %v2982
    %v2984 = vpop.f32.mrb[0].mxu0
    %v2985 = vpop.f32.mrb[0].mxu0
    %v2986 = vpop.f32.mrb[0].mxu0
    %2987 = vdwg.mxu0
    %v2988 = vmul.f32 %v2585, 0.35355338
    %v2989 = vmul.f32 %v2588, 0.35355338
    %v2990 = vmul.f32 %v2593, 0.35355338
    %v2991 = vmul.f32 %v2639, 0.35355338
    %v2992 = vmul.f32 %v2642, 0.35355338
    %v2993 = vmul.f32 %v2647, 0.35355338
    %v2994 = vmul.f32 %v2693, 0.35355338
    %v2995 = vmul.f32 %v2696, 0.35355338
    %v2996 = vmul.f32 %v2701, 0.35355338
    %v2997 = vmul.f32 %v2747, 0.35355338
    %v2998 = vmul.f32 %v2750, 0.35355338
    %v2999 = vmul.f32 %v2755, 0.35355338
    %v3000 = vmul.f32 %v2813, 0.35355338
    %v3001 = vmul.f32 %v2816, 0.35355338
    %v3002 = vmul.f32 %v2821, 0.35355338
    %v3003 = vmul.f32 %v2867, 0.35355338
    %v3004 = vmul.f32 %v2870, 0.35355338
    %v3005 = vmul.f32 %v2875, 0.35355338
    %v3006 = vmul.f32 %v2921, 0.35355338
    %v3007 = vmul.f32 %v2924, 0.35355338
    %v3008 = vmul.f32 %v2929, 0.35355338
    %v3009 = vmul.f32 %v2975, 0.35355338
    %v3010 = vmul.f32 %v2978, 0.35355338
    %v3011 = vmul.f32 %v2983, 0.35355338
    %v3012 = vadd.f32 %v2988, %v963
    %v3013 = vadd.f32 %v2989, %v963
    %v3014 = vadd.f32 %v2990, %v963
    %v3015 = vadd.f32 %v2991, %v963
    %v3016 = vadd.f32 %v2992, %v963
    %v3017 = vadd.f32 %v2993, %v963
    %v3018 = vadd.f32 %v2994, %v963
    %v3019 = vadd.f32 %v2995, %v963
    %v3020 = vadd.f32 %v2996, %v963
    %v3021 = vadd.f32 %v2997, %v963
    %v3022 = vadd.f32 %v2998, %v963
    %v3023 = vadd.f32 %v2999, %v963
    %v3024 = vadd.f32 %v3000, %v963
    %v3025 = vadd.f32 %v3001, %v963
    %v3026 = vadd.f32 %v3002, %v963
    %v3027 = vadd.f32 %v3003, %v963
    %v3028 = vadd.f32 %v3004, %v963
    %v3029 = vadd.f32 %v3005, %v963
    %v3030 = vadd.f32 %v3006, %v963
    %v3031 = vadd.f32 %v3007, %v963
    %v3032 = vadd.f32 %v3008, %v963
    %v3033 = vadd.f32 %v3009, %v963
    %v3034 = vadd.f32 %v3010, %v963
    %v3035 = vadd.f32 %v3011, %v963
    %v3036 = vsel %vm988, %v3012, -inf
    %3037 = vmax.xlane.f32.xlu0 %v3036
    %v3038 = vpop.xlane.xlu0 %3037
    %v3039 = vsel %vm988, %v3013, -inf
    %3040 = vmax.xlane.f32.xlu0 %v3039
    %v3041 = vpop.xlane.xlu0 %3040
    %v3042 = vsel %vm988, %v3014, -inf
    %3043 = vmax.xlane.f32.xlu0 %v3042
    %v3044 = vpop.xlane.xlu0 %3043
    %v3045 = vsel %vm988, %v3015, -inf
    %3046 = vmax.xlane.f32.xlu0 %v3045
    %v3047 = vpop.xlane.xlu0 %3046
    %v3048 = vsel %vm988, %v3016, -inf
    %3049 = vmax.xlane.f32.xlu0 %v3048
    %v3050 = vpop.xlane.xlu0 %3049
    %v3051 = vsel %vm988, %v3017, -inf
    %3052 = vmax.xlane.f32.xlu0 %v3051
    %v3053 = vpop.xlane.xlu0 %3052
    %v3054 = vsel %vm988, %v3018, -inf
    %3055 = vmax.xlane.f32.xlu0 %v3054
    %v3056 = vpop.xlane.xlu0 %3055
    %v3057 = vsel %vm988, %v3019, -inf
    %3058 = vmax.xlane.f32.xlu0 %v3057
    %v3059 = vpop.xlane.xlu0 %3058
    %v3060 = vsel %vm988, %v3020, -inf
    %3061 = vmax.xlane.f32.xlu0 %v3060
    %v3062 = vpop.xlane.xlu0 %3061
    %v3063 = vsel %vm988, %v3021, -inf
    %3064 = vmax.xlane.f32.xlu0 %v3063
    %v3065 = vpop.xlane.xlu0 %3064
    %v3066 = vsel %vm988, %v3022, -inf
    %3067 = vmax.xlane.f32.xlu0 %v3066
    %v3068 = vpop.xlane.xlu0 %3067
    %v3069 = vsel %vm988, %v3023, -inf
    %3070 = vmax.xlane.f32.xlu0 %v3069
    %v3071 = vpop.xlane.xlu0 %3070
    %v3072 = vsel %vm988, %v3024, -inf
    %3073 = vmax.xlane.f32.xlu0 %v3072
    %v3074 = vpop.xlane.xlu0 %3073
    %v3075 = vsel %vm988, %v3025, -inf
    %3076 = vmax.xlane.f32.xlu0 %v3075
    %v3077 = vpop.xlane.xlu0 %3076
    %v3078 = vsel %vm988, %v3026, -inf
    %3079 = vmax.xlane.f32.xlu0 %v3078
    %v3080 = vpop.xlane.xlu0 %3079
    %v3081 = vsel %vm988, %v3027, -inf
    %3082 = vmax.xlane.f32.xlu0 %v3081
    %v3083 = vpop.xlane.xlu0 %3082
    %v3084 = vsel %vm988, %v3028, -inf
    %3085 = vmax.xlane.f32.xlu0 %v3084
    %v3086 = vpop.xlane.xlu0 %3085
    %v3087 = vsel %vm988, %v3029, -inf
    %3088 = vmax.xlane.f32.xlu0 %v3087
    %v3089 = vpop.xlane.xlu0 %3088
    %v3090 = vsel %vm988, %v3030, -inf
    %3091 = vmax.xlane.f32.xlu0 %v3090
    %v3092 = vpop.xlane.xlu0 %3091
    %v3093 = vsel %vm988, %v3031, -inf
    %3094 = vmax.xlane.f32.xlu0 %v3093
    %v3095 = vpop.xlane.xlu0 %3094
    %v3096 = vsel %vm988, %v3032, -inf
    %3097 = vmax.xlane.f32.xlu0 %v3096
    %v3098 = vpop.xlane.xlu0 %3097
    %v3099 = vsel %vm988, %v3033, -inf
    %3100 = vmax.xlane.f32.xlu0 %v3099
    %v3101 = vpop.xlane.xlu0 %3100
    %v3102 = vsel %vm988, %v3034, -inf
    %3103 = vmax.xlane.f32.xlu0 %v3102
    %v3104 = vpop.xlane.xlu0 %3103
    %v3105 = vsel %vm988, %v3035, -inf
    %3106 = vmax.xlane.f32.xlu0 %v3105
    %v3107 = vpop.xlane.xlu0 %3106
    %v3108 = vsub.f32 %v3012, %v3038
    %v3109 = vsub.f32 %v3013, %v3041
    %v3110 = vsub.f32 %v3014, %v3044
    %v3111 = vsub.f32 %v3015, %v3047
    %v3112 = vsub.f32 %v3016, %v3050
    %v3113 = vsub.f32 %v3017, %v3053
    %v3114 = vsub.f32 %v3018, %v3056
    %v3115 = vsub.f32 %v3019, %v3059
    %v3116 = vsub.f32 %v3020, %v3062
    %v3117 = vsub.f32 %v3021, %v3065
    %v3118 = vsub.f32 %v3022, %v3068
    %v3119 = vsub.f32 %v3023, %v3071
    %v3120 = vsub.f32 %v3024, %v3074
    %v3121 = vsub.f32 %v3025, %v3077
    %v3122 = vsub.f32 %v3026, %v3080
    %v3123 = vsub.f32 %v3027, %v3083
    %v3124 = vsub.f32 %v3028, %v3086
    %v3125 = vsub.f32 %v3029, %v3089
    %v3126 = vsub.f32 %v3030, %v3092
    %v3127 = vsub.f32 %v3031, %v3095
    %v3128 = vsub.f32 %v3032, %v3098
    %v3129 = vsub.f32 %v3033, %v3101
    %v3130 = vsub.f32 %v3034, %v3104
    %v3131 = vsub.f32 %v3035, %v3107
    %v3132 = vmul.f32 %v3108, 1.442695
    %v3133 = vpow.pop %v3132
    %v3134 = vmul.f32 %v3109, 1.442695
    %v3135 = vpow.pop %v3134
    %v3136 = vmul.f32 %v3110, 1.442695
    %v3137 = vpow.pop %v3136
    %v3138 = vmul.f32 %v3111, 1.442695
    %v3139 = vpow.pop %v3138
    %v3140 = vmul.f32 %v3112, 1.442695
    %v3141 = vpow.pop %v3140
    %v3142 = vmul.f32 %v3113, 1.442695
    %v3143 = vpow.pop %v3142
    %v3144 = vmul.f32 %v3114, 1.442695
    %v3145 = vpow.pop %v3144
    %v3146 = vmul.f32 %v3115, 1.442695
    %v3147 = vpow.pop %v3146
    %v3148 = vmul.f32 %v3116, 1.442695
    %v3149 = vpow.pop %v3148
    %v3150 = vmul.f32 %v3117, 1.442695
    %v3151 = vpow.pop %v3150
    %v3152 = vmul.f32 %v3118, 1.442695
    %v3153 = vpow.pop %v3152
    %v3154 = vmul.f32 %v3119, 1.442695
    %v3155 = vpow.pop %v3154
    %v3156 = vmul.f32 %v3120, 1.442695
    %v3157 = vpow.pop %v3156
    %v3158 = vmul.f32 %v3121, 1.442695
    %v3159 = vpow.pop %v3158
    %v3160 = vmul.f32 %v3122, 1.442695
    %v3161 = vpow.pop %v3160
    %v3162 = vmul.f32 %v3123, 1.442695
    %v3163 = vpow.pop %v3162
    %v3164 = vmul.f32 %v3124, 1.442695
    %v3165 = vpow.pop %v3164
    %v3166 = vmul.f32 %v3125, 1.442695
    %v3167 = vpow.pop %v3166
    %v3168 = vmul.f32 %v3126, 1.442695
    %v3169 = vpow.pop %v3168
    %v3170 = vmul.f32 %v3127, 1.442695
    %v3171 = vpow.pop %v3170
    %v3172 = vmul.f32 %v3128, 1.442695
    %v3173 = vpow.pop %v3172
    %v3174 = vmul.f32 %v3129, 1.442695
    %v3175 = vpow.pop %v3174
    %v3176 = vmul.f32 %v3130, 1.442695
    %v3177 = vpow.pop %v3176
    %v3178 = vmul.f32 %v3131, 1.442695
    %v3179 = vpow.pop %v3178
    %v3180 = vsel %vm988, %v3133, 0.0
    %3181 = vadd.xlane.f32.xlu0 %v3180
    %v3182 = vpop.xlane.xlu0 %3181
    %v3183 = vsel %vm988, %v3135, 0.0
    %3184 = vadd.xlane.f32.xlu0 %v3183
    %v3185 = vpop.xlane.xlu0 %3184
    %v3186 = vsel %vm988, %v3137, 0.0
    %3187 = vadd.xlane.f32.xlu0 %v3186
    %v3188 = vpop.xlane.xlu0 %3187
    %v3189 = vsel %vm988, %v3139, 0.0
    %3190 = vadd.xlane.f32.xlu0 %v3189
    %v3191 = vpop.xlane.xlu0 %3190
    %v3192 = vsel %vm988, %v3141, 0.0
    %3193 = vadd.xlane.f32.xlu0 %v3192
    %v3194 = vpop.xlane.xlu0 %3193
    %v3195 = vsel %vm988, %v3143, 0.0
    %3196 = vadd.xlane.f32.xlu0 %v3195
    %v3197 = vpop.xlane.xlu0 %3196
    %v3198 = vsel %vm988, %v3145, 0.0
    %3199 = vadd.xlane.f32.xlu0 %v3198
    %v3200 = vpop.xlane.xlu0 %3199
    %v3201 = vsel %vm988, %v3147, 0.0
    %3202 = vadd.xlane.f32.xlu0 %v3201
    %v3203 = vpop.xlane.xlu0 %3202
    %v3204 = vsel %vm988, %v3149, 0.0
    %3205 = vadd.xlane.f32.xlu0 %v3204
    %v3206 = vpop.xlane.xlu0 %3205
    %v3207 = vsel %vm988, %v3151, 0.0
    %3208 = vadd.xlane.f32.xlu0 %v3207
    %v3209 = vpop.xlane.xlu0 %3208
    %v3210 = vsel %vm988, %v3153, 0.0
    %3211 = vadd.xlane.f32.xlu0 %v3210
    %v3212 = vpop.xlane.xlu0 %3211
    %v3213 = vsel %vm988, %v3155, 0.0
    %3214 = vadd.xlane.f32.xlu0 %v3213
    %v3215 = vpop.xlane.xlu0 %3214
    %v3216 = vsel %vm988, %v3157, 0.0
    %3217 = vadd.xlane.f32.xlu0 %v3216
    %v3218 = vpop.xlane.xlu0 %3217
    %v3219 = vsel %vm988, %v3159, 0.0
    %3220 = vadd.xlane.f32.xlu0 %v3219
    %v3221 = vpop.xlane.xlu0 %3220
    %v3222 = vsel %vm988, %v3161, 0.0
    %3223 = vadd.xlane.f32.xlu0 %v3222
    %v3224 = vpop.xlane.xlu0 %3223
    %v3225 = vsel %vm988, %v3163, 0.0
    %3226 = vadd.xlane.f32.xlu0 %v3225
    %v3227 = vpop.xlane.xlu0 %3226
    %v3228 = vsel %vm988, %v3165, 0.0
    %3229 = vadd.xlane.f32.xlu0 %v3228
    %v3230 = vpop.xlane.xlu0 %3229
    %v3231 = vsel %vm988, %v3167, 0.0
    %3232 = vadd.xlane.f32.xlu0 %v3231
    %v3233 = vpop.xlane.xlu0 %3232
    %v3234 = vsel %vm988, %v3169, 0.0
    %3235 = vadd.xlane.f32.xlu0 %v3234
    %v3236 = vpop.xlane.xlu0 %3235
    %v3237 = vsel %vm988, %v3171, 0.0
    %3238 = vadd.xlane.f32.xlu0 %v3237
    %v3239 = vpop.xlane.xlu0 %3238
    %v3240 = vsel %vm988, %v3173, 0.0
    %3241 = vadd.xlane.f32.xlu0 %v3240
    %v3242 = vpop.xlane.xlu0 %3241
    %v3243 = vsel %vm988, %v3175, 0.0
    %3244 = vadd.xlane.f32.xlu0 %v3243
    %v3245 = vpop.xlane.xlu0 %3244
    %v3246 = vsel %vm988, %v3177, 0.0
    %3247 = vadd.xlane.f32.xlu0 %v3246
    %v3248 = vpop.xlane.xlu0 %3247
    %v3249 = vsel %vm988, %v3179, 0.0
    %3250 = vadd.xlane.f32.xlu0 %v3249
    %v3251 = vpop.xlane.xlu0 %3250
    %v3252 = vrcp.pop %v3182
    %v3253 = vrcp.pop %v3185
    %v3254 = vrcp.pop %v3188
    %v3255 = vrcp.pop %v3191
    %v3256 = vrcp.pop %v3194
    %v3257 = vrcp.pop %v3197
    %v3258 = vrcp.pop %v3200
    %v3259 = vrcp.pop %v3203
    %v3260 = vrcp.pop %v3206
    %v3261 = vrcp.pop %v3209
    %v3262 = vrcp.pop %v3212
    %v3263 = vrcp.pop %v3215
    %v3264 = vrcp.pop %v3218
    %v3265 = vrcp.pop %v3221
    %v3266 = vrcp.pop %v3224
    %v3267 = vrcp.pop %v3227
    %v3268 = vrcp.pop %v3230
    %v3269 = vrcp.pop %v3233
    %v3270 = vrcp.pop %v3236
    %v3271 = vrcp.pop %v3239
    %v3272 = vrcp.pop %v3242
    %v3273 = vrcp.pop %v3245
    %v3274 = vrcp.pop %v3248
    %v3275 = vrcp.pop %v3251
    %v3276 = vmul.f32 %v3133, %v3252
    %v3277 = vmul.f32 %v3135, %v3253
    %v3278 = vmul.f32 %v3137, %v3254
    %v3279 = vmul.f32 %v3139, %v3255
    %v3280 = vmul.f32 %v3141, %v3256
    %v3281 = vmul.f32 %v3143, %v3257
    %v3282 = vmul.f32 %v3145, %v3258
    %v3283 = vmul.f32 %v3147, %v3259
    %v3284 = vmul.f32 %v3149, %v3260
    %v3285 = vmul.f32 %v3151, %v3261
    %v3286 = vmul.f32 %v3153, %v3262
    %v3287 = vmul.f32 %v3155, %v3263
    %v3288 = vmul.f32 %v3157, %v3264
    %v3289 = vmul.f32 %v3159, %v3265
    %v3290 = vmul.f32 %v3161, %v3266
    %v3291 = vmul.f32 %v3163, %v3267
    %v3292 = vmul.f32 %v3165, %v3268
    %v3293 = vmul.f32 %v3167, %v3269
    %v3294 = vmul.f32 %v3169, %v3270
    %v3295 = vmul.f32 %v3171, %v3271
    %v3296 = vmul.f32 %v3173, %v3272
    %v3297 = vmul.f32 %v3175, %v3273
    %v3298 = vmul.f32 %v3177, %v3274
    %v3299 = vmul.f32 %v3179, %v3275
    %v3300 = vpack.c.bf16 %v3277, %v3276
    %v3301 = vpack.c.bf16 %v3278, %v3278
    %v3302 = vpack.c.bf16 %v3280, %v3279
    %v3303 = vpack.c.bf16 %v3281, %v3281
    %v3304 = vpack.c.bf16 %v3283, %v3282
    %v3305 = vpack.c.bf16 %v3284, %v3284
    %v3306 = vpack.c.bf16 %v3286, %v3285
    %v3307 = vpack.c.bf16 %v3287, %v3287
    %v3308 = vpack.c.bf16 %v3289, %v3288
    %v3309 = vpack.c.bf16 %v3290, %v3290
    %v3310 = vpack.c.bf16 %v3292, %v3291
    %v3311 = vpack.c.bf16 %v3293, %v3293
    %v3312 = vpack.c.bf16 %v3295, %v3294
    %v3313 = vpack.c.bf16 %v3296, %v3296
    %v3314 = vpack.c.bf16 %v3298, %v3297
    %v3315 = vpack.c.bf16 %v3299, %v3299
    %v3316 = vpack.c.bf16 %v2489, %v2488
    %v3317 = vpack.c.bf16 %v2490, %v2490
    %v3318 = vpack.c.bf16 %v2492, %v2491
    %v3319 = vpack.c.bf16 %v2493, %v2493
    %v3320 = vpack.c.bf16 %v2495, %v2494
    %v3321 = vpack.c.bf16 %v2496, %v2496
    %v3322 = vpack.c.bf16 %v2498, %v2497
    %v3323 = vpack.c.bf16 %v2499, %v2499
    %v3324 = vpack.c.bf16 %v2501, %v2500
    %v3325 = vpack.c.bf16 %v2502, %v2502
    %v3326 = vpack.c.bf16 %v2504, %v2503
    %v3327 = vpack.c.bf16 %v2505, %v2505
    %v3328 = vpack.c.bf16 %v2507, %v2506
    %v3329 = vpack.c.bf16 %v2508, %v2508
    %v3330 = vpack.c.bf16 %v2510, %v2509
    %v3331 = vpack.c.bf16 %v2511, %v2511
    %3334 = vrot.lane.b32.xlu0 %v3316, 64
    %v3335 = vpop.permute.xlu0 %3334
    %3336 = vrot.lane.b32.xlu0 %v3317, 64
    %v3337 = vpop.permute.xlu0 %3336
    %v3340 = vsel %vm988, %v3300, 0
    %v3343 = vsel %vm988, %v3301, 0
    %v3346 = vsel %vm1298, %v3337, 0
    %3348 = vmatprep.subr.bf16.mxu0 0
    %3349 = vmatpush1.bf16.msra.mxu0 %v3335
    %3350 = vmatprep.subr.bf16.mxu0 0
    %3351 = vmatpush1.bf16.msra.mxu0 %v3346
    %3352 = vmatprep.subr.bf16.mxu0 0
    %3353 = vmatpush1.bf16.msra.mxu0 0
    %3354 = vmatprep.subr.bf16.mxu0 0
    %3355 = vmatpush1.bf16.msra.mxu0 0
    %3356 = vmatprep.subr.bf16.mxu0 0
    %3357 = vmatpush1.bf16.msra.mxu0 0
    %3358 = vmatprep.subr.bf16.mxu0 0
    %3359 = vmatpush1.bf16.msra.mxu0 0
    %3360 = vmatprep.subr.bf16.mxu0 0
    %3361 = vmatpush1.bf16.msra.mxu0 0
    %3362 = vmatprep.subr.bf16.mxu0 0
    %3363 = vmatpush1.bf16.msra.mxu0 0
    %3364 = vmatprep.subr.bf16.mxu0 0
    %3365 = vmatpush1.bf16.msra.mxu0 0
    %3366 = vmatprep.subr.bf16.mxu0 0
    %3367 = vmatpush1.bf16.msra.mxu0 0
    %3368 = vmatprep.subr.bf16.mxu0 0
    %3369 = vmatpush1.bf16.msra.mxu0 0
    %3370 = vmatprep.subr.bf16.mxu0 0
    %3371 = vmatpush1.bf16.msra.mxu0 0
    %3372 = vmatprep.subr.bf16.mxu0 0
    %3373 = vmatpush1.bf16.msra.mxu0 0
    %3374 = vmatprep.subr.bf16.mxu0 0
    %3375 = vmatpush1.bf16.msra.mxu0 0
    %3376 = vmatprep.subr.bf16.mxu0 0
    %3377 = vmatpush1.bf16.msra.mxu0 0
    %3378 = vmatprep.subr.bf16.mxu0 0
    %3379 = vmatpush1.bf16.msra.mxu0 0
    %3380 = vmatprep.mubr.bf16.mxu0 0
    %3381 = vmatmul.mubr.bf16.gmra.mrb[0].mxu0 %v3340
    %v3382 = vpop.f32.mrb[0].mxu0
    %v3383 = vadd.f32 0.0, %v3382
    %v3384 = vpop.f32.mrb[0].mxu0
    %v3385 = vpop.f32.mrb[0].mxu0
    %v3386 = vadd.f32 0.0, %v3385
    %v3387 = vpop.f32.mrb[0].mxu0
    %3388 = vmatprep.mubr.bf16.mxu0 0
    %3389 = vmatmul.mubr.bf16.gmra.mrb[0].mxu0 %v3343
    %v3390 = vpop.f32.mrb[0].mxu0
    %v3391 = vadd.f32 0.0, %v3390
    %v3392 = vpop.f32.mrb[0].mxu0
    %v3393 = vpop.f32.mrb[0].mxu0
    %v3394 = vpop.f32.mrb[0].mxu0
    %3395 = vdwg.mxu0
    %3398 = vrot.lane.b32.xlu0 %v3318, 64
    %v3399 = vpop.permute.xlu0 %3398
    %3400 = vrot.lane.b32.xlu0 %v3319, 64
    %v3401 = vpop.permute.xlu0 %3400
    %v3404 = vsel %vm988, %v3302, 0
    %v3407 = vsel %vm988, %v3303, 0
    %v3410 = vsel %vm1298, %v3401, 0
    %3412 = vmatprep.subr.bf16.mxu0 0
    %3413 = vmatpush1.bf16.msra.mxu0 %v3399
    %3414 = vmatprep.subr.bf16.mxu0 0
    %3415 = vmatpush1.bf16.msra.mxu0 %v3410
    %3416 = vmatprep.subr.bf16.mxu0 0
    %3417 = vmatpush1.bf16.msra.mxu0 0
    %3418 = vmatprep.subr.bf16.mxu0 0
    %3419 = vmatpush1.bf16.msra.mxu0 0
    %3420 = vmatprep.subr.bf16.mxu0 0
    %3421 = vmatpush1.bf16.msra.mxu0 0
    %3422 = vmatprep.subr.bf16.mxu0 0
    %3423 = vmatpush1.bf16.msra.mxu0 0
    %3424 = vmatprep.subr.bf16.mxu0 0
    %3425 = vmatpush1.bf16.msra.mxu0 0
    %3426 = vmatprep.subr.bf16.mxu0 0
    %3427 = vmatpush1.bf16.msra.mxu0 0
    %3428 = vmatprep.subr.bf16.mxu0 0
    %3429 = vmatpush1.bf16.msra.mxu0 0
    %3430 = vmatprep.subr.bf16.mxu0 0
    %3431 = vmatpush1.bf16.msra.mxu0 0
    %3432 = vmatprep.subr.bf16.mxu0 0
    %3433 = vmatpush1.bf16.msra.mxu0 0
    %3434 = vmatprep.subr.bf16.mxu0 0
    %3435 = vmatpush1.bf16.msra.mxu0 0
    %3436 = vmatprep.subr.bf16.mxu0 0
    %3437 = vmatpush1.bf16.msra.mxu0 0
    %3438 = vmatprep.subr.bf16.mxu0 0
    %3439 = vmatpush1.bf16.msra.mxu0 0
    %3440 = vmatprep.subr.bf16.mxu0 0
    %3441 = vmatpush1.bf16.msra.mxu0 0
    %3442 = vmatprep.subr.bf16.mxu0 0
    %3443 = vmatpush1.bf16.msra.mxu0 0
    %3444 = vmatprep.mubr.bf16.mxu0 0
    %3445 = vmatmul.mubr.bf16.gmra.mrb[0].mxu0 %v3404
    %v3446 = vpop.f32.mrb[0].mxu0
    %v3447 = vadd.f32 0.0, %v3446
    %v3448 = vpop.f32.mrb[0].mxu0
    %v3449 = vpop.f32.mrb[0].mxu0
    %v3450 = vadd.f32 0.0, %v3449
    %v3451 = vpop.f32.mrb[0].mxu0
    %3452 = vmatprep.mubr.bf16.mxu0 0
    %3453 = vmatmul.mubr.bf16.gmra.mrb[0].mxu0 %v3407
    %v3454 = vpop.f32.mrb[0].mxu0
    %v3455 = vadd.f32 0.0, %v3454
    %v3456 = vpop.f32.mrb[0].mxu0
    %v3457 = vpop.f32.mrb[0].mxu0
    %v3458 = vpop.f32.mrb[0].mxu0
    %3459 = vdwg.mxu0
    %3462 = vrot.lane.b32.xlu0 %v3320, 64
    %v3463 = vpop.permute.xlu0 %3462
    %3464 = vrot.lane.b32.xlu0 %v3321, 64
    %v3465 = vpop.permute.xlu0 %3464
    %v3468 = vsel %vm988, %v3304, 0
    %v3471 = vsel %vm988, %v3305, 0
    %v3474 = vsel %vm1298, %v3465, 0
    %3476 = vmatprep.subr.bf16.mxu0 0
    %3477 = vmatpush1.bf16.msra.mxu0 %v3463
    %3478 = vmatprep.subr.bf16.mxu0 0
    %3479 = vmatpush1.bf16.msra.mxu0 %v3474
    %3480 = vmatprep.subr.bf16.mxu0 0
    %3481 = vmatpush1.bf16.msra.mxu0 0
    %3482 = vmatprep.subr.bf16.mxu0 0
    %3483 = vmatpush1.bf16.msra.mxu0 0
    %3484 = vmatprep.subr.bf16.mxu0 0
    %3485 = vmatpush1.bf16.msra.mxu0 0
    %3486 = vmatprep.subr.bf16.mxu0 0
    %3487 = vmatpush1.bf16.msra.mxu0 0
    %3488 = vmatprep.subr.bf16.mxu0 0
    %3489 = vmatpush1.bf16.msra.mxu0 0
    %3490 = vmatprep.subr.bf16.mxu0 0
    %3491 = vmatpush1.bf16.msra.mxu0 0
    %3492 = vmatprep.subr.bf16.mxu0 0
    %3493 = vmatpush1.bf16.msra.mxu0 0
    %3494 = vmatprep.subr.bf16.mxu0 0
    %3495 = vmatpush1.bf16.msra.mxu0 0
    %3496 = vmatprep.subr.bf16.mxu0 0
    %3497 = vmatpush1.bf16.msra.mxu0 0
    %3498 = vmatprep.subr.bf16.mxu0 0
    %3499 = vmatpush1.bf16.msra.mxu0 0
    %3500 = vmatprep.subr.bf16.mxu0 0
    %3501 = vmatpush1.bf16.msra.mxu0 0
    %3502 = vmatprep.subr.bf16.mxu0 0
    %3503 = vmatpush1.bf16.msra.mxu0 0
    %3504 = vmatprep.subr.bf16.mxu0 0
    %3505 = vmatpush1.bf16.msra.mxu0 0
    %3506 = vmatprep.subr.bf16.mxu0 0
    %3507 = vmatpush1.bf16.msra.mxu0 0
    %3508 = vmatprep.mubr.bf16.mxu0 0
    %3509 = vmatmul.mubr.bf16.gmra.mrb[0].mxu0 %v3468
    %v3510 = vpop.f32.mrb[0].mxu0
    %v3511 = vadd.f32 0.0, %v3510
    %v3512 = vpop.f32.mrb[0].mxu0
    %v3513 = vpop.f32.mrb[0].mxu0
    %v3514 = vadd.f32 0.0, %v3513
    %v3515 = vpop.f32.mrb[0].mxu0
    %3516 = vmatprep.mubr.bf16.mxu0 0
    %3517 = vmatmul.mubr.bf16.gmra.mrb[0].mxu0 %v3471
    %v3518 = vpop.f32.mrb[0].mxu0
    %v3519 = vadd.f32 0.0, %v3518
    %v3520 = vpop.f32.mrb[0].mxu0
    %v3521 = vpop.f32.mrb[0].mxu0
    %v3522 = vpop.f32.mrb[0].mxu0
    %3523 = vdwg.mxu0
    %3526 = vrot.lane.b32.xlu0 %v3322, 64
    %v3527 = vpop.permute.xlu0 %3526
    %3528 = vrot.lane.b32.xlu0 %v3323, 64
    %v3529 = vpop.permute.xlu0 %3528
    %v3532 = vsel %vm988, %v3306, 0
    %v3535 = vsel %vm988, %v3307, 0
    %v3538 = vsel %vm1298, %v3529, 0
    %3540 = vmatprep.subr.bf16.mxu0 0
    %3541 = vmatpush1.bf16.msra.mxu0 %v3527
    %3542 = vmatprep.subr.bf16.mxu0 0
    %3543 = vmatpush1.bf16.msra.mxu0 %v3538
    %3544 = vmatprep.subr.bf16.mxu0 0
    %3545 = vmatpush1.bf16.msra.mxu0 0
    %3546 = vmatprep.subr.bf16.mxu0 0
    %3547 = vmatpush1.bf16.msra.mxu0 0
    %3548 = vmatprep.subr.bf16.mxu0 0
    %3549 = vmatpush1.bf16.msra.mxu0 0
    %3550 = vmatprep.subr.bf16.mxu0 0
    %3551 = vmatpush1.bf16.msra.mxu0 0
    %3552 = vmatprep.subr.bf16.mxu0 0
    %3553 = vmatpush1.bf16.msra.mxu0 0
    %3554 = vmatprep.subr.bf16.mxu0 0
    %3555 = vmatpush1.bf16.msra.mxu0 0
    %3556 = vmatprep.subr.bf16.mxu0 0
    %3557 = vmatpush1.bf16.msra.mxu0 0
    %3558 = vmatprep.subr.bf16.mxu0 0
    %3559 = vmatpush1.bf16.msra.mxu0 0
    %3560 = vmatprep.subr.bf16.mxu0 0
    %3561 = vmatpush1.bf16.msra.mxu0 0
    %3562 = vmatprep.subr.bf16.mxu0 0
    %3563 = vmatpush1.bf16.msra.mxu0 0
    %3564 = vmatprep.subr.bf16.mxu0 0
    %3565 = vmatpush1.bf16.msra.mxu0 0
    %3566 = vmatprep.subr.bf16.mxu0 0
    %3567 = vmatpush1.bf16.msra.mxu0 0
    %3568 = vmatprep.subr.bf16.mxu0 0
    %3569 = vmatpush1.bf16.msra.mxu0 0
    %3570 = vmatprep.subr.bf16.mxu0 0
    %3571 = vmatpush1.bf16.msra.mxu0 0
    %3572 = vmatprep.mubr.bf16.mxu0 0
    %3573 = vmatmul.mubr.bf16.gmra.mrb[0].mxu0 %v3532
    %v3574 = vpop.f32.mrb[0].mxu0
    %v3575 = vadd.f32 0.0, %v3574
    %v3576 = vpop.f32.mrb[0].mxu0
    %v3577 = vpop.f32.mrb[0].mxu0
    %v3578 = vadd.f32 0.0, %v3577
    %v3579 = vpop.f32.mrb[0].mxu0
    %3580 = vmatprep.mubr.bf16.mxu0 0
    %3581 = vmatmul.mubr.bf16.gmra.mrb[0].mxu0 %v3535
    %v3582 = vpop.f32.mrb[0].mxu0
    %v3583 = vadd.f32 0.0, %v3582
    %v3584 = vpop.f32.mrb[0].mxu0
    %v3585 = vpop.f32.mrb[0].mxu0
    %v3586 = vpop.f32.mrb[0].mxu0
    %3587 = vdwg.mxu0
    %3590 = vrot.lane.b32.xlu0 %v3324, 64
    %v3591 = vpop.permute.xlu0 %3590
    %3592 = vrot.lane.b32.xlu0 %v3325, 64
    %v3593 = vpop.permute.xlu0 %3592
    %v3596 = vsel %vm988, %v3308, 0
    %v3599 = vsel %vm988, %v3309, 0
    %v3602 = vsel %vm1298, %v3593, 0
    %3604 = vmatprep.subr.bf16.mxu0 0
    %3605 = vmatpush1.bf16.msra.mxu0 %v3591
    %3606 = vmatprep.subr.bf16.mxu0 0
    %3607 = vmatpush1.bf16.msra.mxu0 %v3602
    %3608 = vmatprep.subr.bf16.mxu0 0
    %3609 = vmatpush1.bf16.msra.mxu0 0
    %3610 = vmatprep.subr.bf16.mxu0 0
    %3611 = vmatpush1.bf16.msra.mxu0 0
    %3612 = vmatprep.subr.bf16.mxu0 0
    %3613 = vmatpush1.bf16.msra.mxu0 0
    %3614 = vmatprep.subr.bf16.mxu0 0
    %3615 = vmatpush1.bf16.msra.mxu0 0
    %3616 = vmatprep.subr.bf16.mxu0 0
    %3617 = vmatpush1.bf16.msra.mxu0 0
    %3618 = vmatprep.subr.bf16.mxu0 0
    %3619 = vmatpush1.bf16.msra.mxu0 0
    %3620 = vmatprep.subr.bf16.mxu0 0
    %3621 = vmatpush1.bf16.msra.mxu0 0
    %3622 = vmatprep.subr.bf16.mxu0 0
    %3623 = vmatpush1.bf16.msra.mxu0 0
    %3624 = vmatprep.subr.bf16.mxu0 0
    %3625 = vmatpush1.bf16.msra.mxu0 0
    %3626 = vmatprep.subr.bf16.mxu0 0
    %3627 = vmatpush1.bf16.msra.mxu0 0
    %3628 = vmatprep.subr.bf16.mxu0 0
    %3629 = vmatpush1.bf16.msra.mxu0 0
    %3630 = vmatprep.subr.bf16.mxu0 0
    %3631 = vmatpush1.bf16.msra.mxu0 0
    %3632 = vmatprep.subr.bf16.mxu0 0
    %3633 = vmatpush1.bf16.msra.mxu0 0
    %3634 = vmatprep.subr.bf16.mxu0 0
    %3635 = vmatpush1.bf16.msra.mxu0 0
    %3636 = vmatprep.mubr.bf16.mxu0 0
    %3637 = vmatmul.mubr.bf16.gmra.mrb[0].mxu0 %v3596
    %v3638 = vpop.f32.mrb[0].mxu0
    %v3639 = vadd.f32 0.0, %v3638
    %v3640 = vpop.f32.mrb[0].mxu0
    %v3641 = vpop.f32.mrb[0].mxu0
    %v3642 = vadd.f32 0.0, %v3641
    %v3643 = vpop.f32.mrb[0].mxu0
    %3644 = vmatprep.mubr.bf16.mxu0 0
    %3645 = vmatmul.mubr.bf16.gmra.mrb[0].mxu0 %v3599
    %v3646 = vpop.f32.mrb[0].mxu0
    %v3647 = vadd.f32 0.0, %v3646
    %v3648 = vpop.f32.mrb[0].mxu0
    %v3649 = vpop.f32.mrb[0].mxu0
    %v3650 = vpop.f32.mrb[0].mxu0
    %3651 = vdwg.mxu0
    %3654 = vrot.lane.b32.xlu0 %v3326, 64
    %v3655 = vpop.permute.xlu0 %3654
    %3656 = vrot.lane.b32.xlu0 %v3327, 64
    %v3657 = vpop.permute.xlu0 %3656
    %v3660 = vsel %vm988, %v3310, 0
    %v3663 = vsel %vm988, %v3311, 0
    %v3666 = vsel %vm1298, %v3657, 0
    %3668 = vmatprep.subr.bf16.mxu0 0
    %3669 = vmatpush1.bf16.msra.mxu0 %v3655
    %3670 = vmatprep.subr.bf16.mxu0 0
    %3671 = vmatpush1.bf16.msra.mxu0 %v3666
    %3672 = vmatprep.subr.bf16.mxu0 0
    %3673 = vmatpush1.bf16.msra.mxu0 0
    %3674 = vmatprep.subr.bf16.mxu0 0
    %3675 = vmatpush1.bf16.msra.mxu0 0
    %3676 = vmatprep.subr.bf16.mxu0 0
    %3677 = vmatpush1.bf16.msra.mxu0 0
    %3678 = vmatprep.subr.bf16.mxu0 0
    %3679 = vmatpush1.bf16.msra.mxu0 0
    %3680 = vmatprep.subr.bf16.mxu0 0
    %3681 = vmatpush1.bf16.msra.mxu0 0
    %3682 = vmatprep.subr.bf16.mxu0 0
    %3683 = vmatpush1.bf16.msra.mxu0 0
    %3684 = vmatprep.subr.bf16.mxu0 0
    %3685 = vmatpush1.bf16.msra.mxu0 0
    %3686 = vmatprep.subr.bf16.mxu0 0
    %3687 = vmatpush1.bf16.msra.mxu0 0
    %3688 = vmatprep.subr.bf16.mxu0 0
    %3689 = vmatpush1.bf16.msra.mxu0 0
    %3690 = vmatprep.subr.bf16.mxu0 0
    %3691 = vmatpush1.bf16.msra.mxu0 0
    %3692 = vmatprep.subr.bf16.mxu0 0
    %3693 = vmatpush1.bf16.msra.mxu0 0
    %3694 = vmatprep.subr.bf16.mxu0 0
    %3695 = vmatpush1.bf16.msra.mxu0 0
    %3696 = vmatprep.subr.bf16.mxu0 0
    %3697 = vmatpush1.bf16.msra.mxu0 0
    %3698 = vmatprep.subr.bf16.mxu0 0
    %3699 = vmatpush1.bf16.msra.mxu0 0
    %3700 = vmatprep.mubr.bf16.mxu0 0
    %3701 = vmatmul.mubr.bf16.gmra.mrb[0].mxu0 %v3660
    %v3702 = vpop.f32.mrb[0].mxu0
    %v3703 = vadd.f32 0.0, %v3702
    %v3704 = vpop.f32.mrb[0].mxu0
    %v3705 = vpop.f32.mrb[0].mxu0
    %v3706 = vadd.f32 0.0, %v3705
    %v3707 = vpop.f32.mrb[0].mxu0
    %3708 = vmatprep.mubr.bf16.mxu0 0
    %3709 = vmatmul.mubr.bf16.gmra.mrb[0].mxu0 %v3663
    %v3710 = vpop.f32.mrb[0].mxu0
    %v3711 = vadd.f32 0.0, %v3710
    %v3712 = vpop.f32.mrb[0].mxu0
    %v3713 = vpop.f32.mrb[0].mxu0
    %v3714 = vpop.f32.mrb[0].mxu0
    %3715 = vdwg.mxu0
    %3718 = vrot.lane.b32.xlu0 %v3328, 64
    %v3719 = vpop.permute.xlu0 %3718
    %3720 = vrot.lane.b32.xlu0 %v3329, 64
    %v3721 = vpop.permute.xlu0 %3720
    %v3724 = vsel %vm988, %v3312, 0
    %v3727 = vsel %vm988, %v3313, 0
    %v3730 = vsel %vm1298, %v3721, 0
    %3732 = vmatprep.subr.bf16.mxu0 0
    %3733 = vmatpush1.bf16.msra.mxu0 %v3719
    %3734 = vmatprep.subr.bf16.mxu0 0
    %3735 = vmatpush1.bf16.msra.mxu0 %v3730
    %3736 = vmatprep.subr.bf16.mxu0 0
    %3737 = vmatpush1.bf16.msra.mxu0 0
    %3738 = vmatprep.subr.bf16.mxu0 0
    %3739 = vmatpush1.bf16.msra.mxu0 0
    %3740 = vmatprep.subr.bf16.mxu0 0
    %3741 = vmatpush1.bf16.msra.mxu0 0
    %3742 = vmatprep.subr.bf16.mxu0 0
    %3743 = vmatpush1.bf16.msra.mxu0 0
    %3744 = vmatprep.subr.bf16.mxu0 0
    %3745 = vmatpush1.bf16.msra.mxu0 0
    %3746 = vmatprep.subr.bf16.mxu0 0
    %3747 = vmatpush1.bf16.msra.mxu0 0
    %3748 = vmatprep.subr.bf16.mxu0 0
    %3749 = vmatpush1.bf16.msra.mxu0 0
    %3750 = vmatprep.subr.bf16.mxu0 0
    %3751 = vmatpush1.bf16.msra.mxu0 0
    %3752 = vmatprep.subr.bf16.mxu0 0
    %3753 = vmatpush1.bf16.msra.mxu0 0
    %3754 = vmatprep.subr.bf16.mxu0 0
    %3755 = vmatpush1.bf16.msra.mxu0 0
    %3756 = vmatprep.subr.bf16.mxu0 0
    %3757 = vmatpush1.bf16.msra.mxu0 0
    %3758 = vmatprep.subr.bf16.mxu0 0
    %3759 = vmatpush1.bf16.msra.mxu0 0
    %3760 = vmatprep.subr.bf16.mxu0 0
    %3761 = vmatpush1.bf16.msra.mxu0 0
    %3762 = vmatprep.subr.bf16.mxu0 0
    %3763 = vmatpush1.bf16.msra.mxu0 0
    %3764 = vmatprep.mubr.bf16.mxu0 0
    %3765 = vmatmul.mubr.bf16.gmra.mrb[0].mxu0 %v3724
    %v3766 = vpop.f32.mrb[0].mxu0
    %v3767 = vadd.f32 0.0, %v3766
    %v3768 = vpop.f32.mrb[0].mxu0
    %v3769 = vpop.f32.mrb[0].mxu0
    %v3770 = vadd.f32 0.0, %v3769
    %v3771 = vpop.f32.mrb[0].mxu0
    %3772 = vmatprep.mubr.bf16.mxu0 0
    %3773 = vmatmul.mubr.bf16.gmra.mrb[0].mxu0 %v3727
    %v3774 = vpop.f32.mrb[0].mxu0
    %v3775 = vadd.f32 0.0, %v3774
    %v3776 = vpop.f32.mrb[0].mxu0
    %v3777 = vpop.f32.mrb[0].mxu0
    %v3778 = vpop.f32.mrb[0].mxu0
    %3779 = vdwg.mxu0
    %3782 = vrot.lane.b32.xlu0 %v3330, 64
    %v3783 = vpop.permute.xlu0 %3782
    %3784 = vrot.lane.b32.xlu0 %v3331, 64
    %v3785 = vpop.permute.xlu0 %3784
    %v3788 = vsel %vm988, %v3314, 0
    %v3791 = vsel %vm988, %v3315, 0
    %v3794 = vsel %vm1298, %v3785, 0
    %3796 = vmatprep.subr.bf16.mxu0 0
    %3797 = vmatpush1.bf16.msra.mxu0 %v3783
    %3798 = vmatprep.subr.bf16.mxu0 0
    %3799 = vmatpush1.bf16.msra.mxu0 %v3794
    %3800 = vmatprep.subr.bf16.mxu0 0
    %3801 = vmatpush1.bf16.msra.mxu0 0
    %3802 = vmatprep.subr.bf16.mxu0 0
    %3803 = vmatpush1.bf16.msra.mxu0 0
    %3804 = vmatprep.subr.bf16.mxu0 0
    %3805 = vmatpush1.bf16.msra.mxu0 0
    %3806 = vmatprep.subr.bf16.mxu0 0
    %3807 = vmatpush1.bf16.msra.mxu0 0
    %3808 = vmatprep.subr.bf16.mxu0 0
    %3809 = vmatpush1.bf16.msra.mxu0 0
    %3810 = vmatprep.subr.bf16.mxu0 0
    %3811 = vmatpush1.bf16.msra.mxu0 0
    %3812 = vmatprep.subr.bf16.mxu0 0
    %3813 = vmatpush1.bf16.msra.mxu0 0
    %3814 = vmatprep.subr.bf16.mxu0 0
    %3815 = vmatpush1.bf16.msra.mxu0 0
    %3816 = vmatprep.subr.bf16.mxu0 0
    %3817 = vmatpush1.bf16.msra.mxu0 0
    %3818 = vmatprep.subr.bf16.mxu0 0
    %3819 = vmatpush1.bf16.msra.mxu0 0
    %3820 = vmatprep.subr.bf16.mxu0 0
    %3821 = vmatpush1.bf16.msra.mxu0 0
    %3822 = vmatprep.subr.bf16.mxu0 0
    %3823 = vmatpush1.bf16.msra.mxu0 0
    %3824 = vmatprep.subr.bf16.mxu0 0
    %3825 = vmatpush1.bf16.msra.mxu0 0
    %3826 = vmatprep.subr.bf16.mxu0 0
    %3827 = vmatpush1.bf16.msra.mxu0 0
    %3828 = vmatprep.mubr.bf16.mxu0 0
    %3829 = vmatmul.mubr.bf16.gmra.mrb[0].mxu0 %v3788
    %v3830 = vpop.f32.mrb[0].mxu0
    %v3831 = vadd.f32 0.0, %v3830
    %v3832 = vpop.f32.mrb[0].mxu0
    %v3833 = vpop.f32.mrb[0].mxu0
    %v3834 = vadd.f32 0.0, %v3833
    %v3835 = vpop.f32.mrb[0].mxu0
    %3836 = vmatprep.mubr.bf16.mxu0 0
    %3837 = vmatmul.mubr.bf16.gmra.mrb[0].mxu0 %v3791
    %v3838 = vpop.f32.mrb[0].mxu0
    %v3839 = vadd.f32 0.0, %v3838
    %v3840 = vpop.f32.mrb[0].mxu0
    %v3841 = vpop.f32.mrb[0].mxu0
    %v3842 = vpop.f32.mrb[0].mxu0
    %3843 = vdwg.mxu0
    %v3844 = vsel %vm194, %v3383, 0.0
    %v3845 = vsel %vm194, %v3447, 0.0
    %v3846 = vadd.f32 %v3844, %v3845
    %v3847 = vsel %vm194, %v3511, 0.0
    %v3848 = vadd.f32 %v3846, %v3847
    %v3849 = vsel %vm194, %v3575, 0.0
    %v3850 = vadd.f32 %v3848, %v3849
    %v3851 = vsel %vm194, %v3386, 0.0
    %v3852 = vsel %vm194, %v3450, 0.0
    %v3853 = vadd.f32 %v3851, %v3852
    %v3854 = vsel %vm194, %v3514, 0.0
    %v3855 = vadd.f32 %v3853, %v3854
    %v3856 = vsel %vm194, %v3578, 0.0
    %v3857 = vadd.f32 %v3855, %v3856
    %v3858 = vsel %vm194, %v3391, 0.0
    %v3859 = vsel %vm194, %v3455, 0.0
    %v3860 = vadd.f32 %v3858, %v3859
    %v3861 = vsel %vm194, %v3519, 0.0
    %v3862 = vadd.f32 %v3860, %v3861
    %v3863 = vsel %vm194, %v3583, 0.0
    %v3864 = vadd.f32 %v3862, %v3863
    %v3865 = vsel %vm194, %v3639, 0.0
    %v3866 = vsel %vm194, %v3703, 0.0
    %v3867 = vadd.f32 %v3865, %v3866
    %v3868 = vsel %vm194, %v3767, 0.0
    %v3869 = vadd.f32 %v3867, %v3868
    %v3870 = vsel %vm194, %v3831, 0.0
    %v3871 = vadd.f32 %v3869, %v3870
    %v3872 = vsel %vm194, %v3642, 0.0
    %v3873 = vsel %vm194, %v3706, 0.0
    %v3874 = vadd.f32 %v3872, %v3873
    %v3875 = vsel %vm194, %v3770, 0.0
    %v3876 = vadd.f32 %v3874, %v3875
    %v3877 = vsel %vm194, %v3834, 0.0
    %v3878 = vadd.f32 %v3876, %v3877
    %v3879 = vsel %vm194, %v3647, 0.0
    %v3880 = vsel %vm194, %v3711, 0.0
    %v3881 = vadd.f32 %v3879, %v3880
    %v3882 = vsel %vm194, %v3775, 0.0
    %v3883 = vadd.f32 %v3881, %v3882
    %v3884 = vsel %vm194, %v3839, 0.0
    %v3885 = vadd.f32 %v3883, %v3884
    %v3886 = vpack.c.bf16 %v3857, %v3850
    %v3887 = vpack.c.bf16 %v3871, %v3864
    %v3888 = vpack.c.bf16 %v3885, %v3878
    %v3889 = vld [vmem:[%s2 + $0x13] sm:$0x1]
    %v3890 = vlaneseq
    %v3891 = vshrl.u32 %v3890, 7
    %v3892 = vsub.s32 0, %v3891
    %v3893 = vrot.slane %v3889, %v3892
    %v3898 = vunpack.c.l.b16 %v2262
    %v3899 = vunpack.c.l.b16 %v2263
    %v3900 = vunpack.c.l.b16 %v2264
    %v3901 = vunpack.c.l.b16 %v2265
    %v3902 = vpack.c.b16 %v3899, %v3898
    %v3903 = vpack.c.b16 %v3901, %v3900
    %v3907 = vsel %vm194, %v3886, 0
    %v3910 = vsel %vm194, %v3887, 0
    %v3913 = vsel %vm194, %v3888, 0
    %3915 = vmatprep.subr.bf16.mxu0 0
    %3916 = vmatpush1.bf16.msra.mxu0 %v3902
    %3917 = vmatprep.subr.bf16.mxu0 0
    %3918 = vmatpush1.bf16.msra.mxu0 %v3903
    %3919 = vmatprep.subr.bf16.mxu0 0
    %3920 = vmatpush1.bf16.msra.mxu0 0
    %3921 = vmatprep.subr.bf16.mxu0 0
    %3922 = vmatpush1.bf16.msra.mxu0 0
    %3923 = vmatprep.subr.bf16.mxu0 0
    %3924 = vmatpush1.bf16.msra.mxu0 0
    %3925 = vmatprep.subr.bf16.mxu0 0
    %3926 = vmatpush1.bf16.msra.mxu0 0
    %3927 = vmatprep.subr.bf16.mxu0 0
    %3928 = vmatpush1.bf16.msra.mxu0 0
    %3929 = vmatprep.subr.bf16.mxu0 0
    %3930 = vmatpush1.bf16.msra.mxu0 0
    %3931 = vmatprep.subr.bf16.mxu0 0
    %3932 = vmatpush1.bf16.msra.mxu0 0
    %3933 = vmatprep.subr.bf16.mxu0 0
    %3934 = vmatpush1.bf16.msra.mxu0 0
    %3935 = vmatprep.subr.bf16.mxu0 0
    %3936 = vmatpush1.bf16.msra.mxu0 0
    %3937 = vmatprep.subr.bf16.mxu0 0
    %3938 = vmatpush1.bf16.msra.mxu0 0
    %3939 = vmatprep.subr.bf16.mxu0 0
    %3940 = vmatpush1.bf16.msra.mxu0 0
    %3941 = vmatprep.subr.bf16.mxu0 0
    %3942 = vmatpush1.bf16.msra.mxu0 0
    %3943 = vmatprep.subr.bf16.mxu0 0
    %3944 = vmatpush1.bf16.msra.mxu0 0
    %3945 = vmatprep.subr.bf16.mxu0 0
    %3946 = vmatpush1.bf16.msra.mxu0 0
    %3947 = vmatprep.mubr.bf16.mxu0 0
    %3948 = vmatmul.mubr.bf16.gmra.mrb[0].mxu0 %v3907
    %v3949 = vpop.f32.mrb[0].mxu0
    %v3950 = vadd.f32 %v3893, %v3949
    %v3951 = vpop.f32.mrb[0].mxu0
    %v3952 = vpop.f32.mrb[0].mxu0
    %v3953 = vadd.f32 %v3893, %v3952
    %v3954 = vpop.f32.mrb[0].mxu0
    %3955 = vmatprep.mubr.bf16.mxu0 0
    %3956 = vmatmul.mubr.bf16.gmra.mrb[0].mxu0 %v3910
    %v3957 = vpop.f32.mrb[0].mxu0
    %v3958 = vadd.f32 %v3893, %v3957
    %v3959 = vpop.f32.mrb[0].mxu0
    %v3960 = vpop.f32.mrb[0].mxu0
    %v3961 = vadd.f32 %v3893, %v3960
    %v3962 = vpop.f32.mrb[0].mxu0
    %3963 = vmatprep.mubr.bf16.mxu0 0
    %3964 = vmatmul.mubr.bf16.gmra.mrb[0].mxu0 %v3913
    %v3965 = vpop.f32.mrb[0].mxu0
    %v3966 = vadd.f32 %v3893, %v3965
    %v3967 = vpop.f32.mrb[0].mxu0
    %v3968 = vpop.f32.mrb[0].mxu0
    %v3969 = vadd.f32 %v3893, %v3968
    %v3970 = vpop.f32.mrb[0].mxu0
    %3971 = vdwg.mxu0
    %v3972 = vadd.f32 %v2252, %v3950
    %v3973 = vadd.f32 %v2253, %v3953
    %v3974 = vadd.f32 %v2254, %v3958
    %v3975 = vadd.f32 %v2255, %v3961
    %v3976 = vadd.f32 %v2256, %v3966
    %v3977 = vadd.f32 %v2257, %v3969
    %v3978 = vld [vmem:[%s2 + $0x14] sm:$0x1]
    %v3979 = vld [vmem:[%s2 + $0x15] sm:$0x1]
    %v3980 = vsel %vm194, %v3972, 0.0
    %3981 = vadd.xlane.f32.xlu0 %v3980
    %v3982 = vpop.xlane.xlu0 %3981
    %v3983 = vsel %vm194, %v3973, 0.0
    %3984 = vadd.xlane.f32.xlu0 %v3983
    %v3985 = vpop.xlane.xlu0 %3984
    %v3986 = vsel %vm194, %v3974, 0.0
    %3987 = vadd.xlane.f32.xlu0 %v3986
    %v3988 = vpop.xlane.xlu0 %3987
    %v3989 = vsel %vm194, %v3975, 0.0
    %3990 = vadd.xlane.f32.xlu0 %v3989
    %v3991 = vpop.xlane.xlu0 %3990
    %v3992 = vsel %vm194, %v3976, 0.0
    %3993 = vadd.xlane.f32.xlu0 %v3992
    %v3994 = vpop.xlane.xlu0 %3993
    %v3995 = vsel %vm194, %v3977, 0.0
    %3996 = vadd.xlane.f32.xlu0 %v3995
    %v3997 = vpop.xlane.xlu0 %3996
    %v3998 = vmul.f32 %v3982, %v213
    %v3999 = vmul.f32 %v3985, %v213
    %v4000 = vmul.f32 %v3988, %v213
    %v4001 = vmul.f32 %v3991, %v213
    %v4002 = vmul.f32 %v3994, %v213
    %v4003 = vmul.f32 %v3997, %v213
    %v4004 = vsub.f32 %v3972, %v3998
    %v4005 = vsub.f32 %v3973, %v3999
    %v4006 = vsub.f32 %v3974, %v4000
    %v4007 = vsub.f32 %v3975, %v4001
    %v4008 = vsub.f32 %v3976, %v4002
    %v4009 = vsub.f32 %v3977, %v4003
    %v4010 = vmul.f32 %v4004, %v4004
    %v4011 = vmul.f32 %v4005, %v4005
    %v4012 = vmul.f32 %v4006, %v4006
    %v4013 = vmul.f32 %v4007, %v4007
    %v4014 = vmul.f32 %v4008, %v4008
    %v4015 = vmul.f32 %v4009, %v4009
    %v4016 = vsel %vm194, %v4010, 0.0
    %4017 = vadd.xlane.f32.xlu0 %v4016
    %v4018 = vpop.xlane.xlu0 %4017
    %v4019 = vsel %vm194, %v4011, 0.0
    %4020 = vadd.xlane.f32.xlu0 %v4019
    %v4021 = vpop.xlane.xlu0 %4020
    %v4022 = vsel %vm194, %v4012, 0.0
    %4023 = vadd.xlane.f32.xlu0 %v4022
    %v4024 = vpop.xlane.xlu0 %4023
    %v4025 = vsel %vm194, %v4013, 0.0
    %4026 = vadd.xlane.f32.xlu0 %v4025
    %v4027 = vpop.xlane.xlu0 %4026
    %v4028 = vsel %vm194, %v4014, 0.0
    %4029 = vadd.xlane.f32.xlu0 %v4028
    %v4030 = vpop.xlane.xlu0 %4029
    %v4031 = vsel %vm194, %v4015, 0.0
    %4032 = vadd.xlane.f32.xlu0 %v4031
    %v4033 = vpop.xlane.xlu0 %4032
    %v4034 = vmul.f32 %v4018, %v213
    %v4035 = vmul.f32 %v4021, %v213
    %v4036 = vmul.f32 %v4024, %v213
    %v4037 = vmul.f32 %v4027, %v213
    %v4038 = vmul.f32 %v4030, %v213
    %v4039 = vmul.f32 %v4033, %v213
    %v4040 = vadd.f32 %v4034, 1e-05
    %v4041 = vadd.f32 %v4035, 1e-05
    %v4042 = vadd.f32 %v4036, 1e-05
    %v4043 = vadd.f32 %v4037, 1e-05
    %v4044 = vadd.f32 %v4038, 1e-05
    %v4045 = vadd.f32 %v4039, 1e-05
    %v4046 = vrsqrt.pop %v4040
    %v4047 = vrsqrt.pop %v4041
    %v4048 = vrsqrt.pop %v4042
    %v4049 = vrsqrt.pop %v4043
    %v4050 = vrsqrt.pop %v4044
    %v4051 = vrsqrt.pop %v4045
    %v4052 = vmul.f32 %v4004, %v4046
    %v4053 = vmul.f32 %v4005, %v4047
    %v4054 = vmul.f32 %v4006, %v4048
    %v4055 = vmul.f32 %v4007, %v4049
    %v4056 = vmul.f32 %v4008, %v4050
    %v4057 = vmul.f32 %v4009, %v4051
    %v4058 = vlaneseq
    %v4059 = vshrl.u32 %v4058, 7
    %v4060 = vsub.s32 0, %v4059
    %v4061 = vrot.slane %v3978, %v4060
    %v4062 = vmul.f32 %v4052, %v4061
    %v4063 = vmul.f32 %v4053, %v4061
    %v4064 = vmul.f32 %v4054, %v4061
    %v4065 = vmul.f32 %v4055, %v4061
    %v4066 = vmul.f32 %v4056, %v4061
    %v4067 = vmul.f32 %v4057, %v4061
    %v4068 = vlaneseq
    %v4069 = vshrl.u32 %v4068, 7
    %v4070 = vsub.s32 0, %v4069
    %v4071 = vrot.slane %v3979, %v4070
    %v4072 = vadd.f32 %v4062, %v4071
    %v4073 = vadd.f32 %v4063, %v4071
    %v4074 = vadd.f32 %v4064, %v4071
    %v4075 = vadd.f32 %v4065, %v4071
    %v4076 = vadd.f32 %v4066, %v4071
    %v4077 = vadd.f32 %v4067, %v4071
    %v4078 = vpack.c.bf16 %v4073, %v4072
    %v4079 = vpack.c.bf16 %v4075, %v4074
    %v4080 = vpack.c.bf16 %v4077, %v4076
    %v4081 = vld [vmem:[%s2 + $0x16] sm:$0x1]
    %v4082 = vlaneseq
    %v4083 = vshrl.u32 %v4082, 7
    %v4084 = vsub.s32 0, %v4083
    %v4085 = vrot.slane %v4081, %v4084
    %v4090 = vunpack.c.l.b16 %v2266
    %v4091 = vunpack.c.l.b16 %v2267
    %v4092 = vunpack.c.l.b16 %v2268
    %v4093 = vunpack.c.l.b16 %v2269
    %v4094 = vpack.c.b16 %v4091, %v4090
    %v4095 = vpack.c.b16 %v4093, %v4092
    %v4099 = vsel %vm194, %v4078, 0
    %v4102 = vsel %vm194, %v4079, 0
    %v4105 = vsel %vm194, %v4080, 0
    %4107 = vmatprep.subr.bf16.mxu0 0
    %4108 = vmatpush1.bf16.msra.mxu0 %v4094
    %4109 = vmatprep.subr.bf16.mxu0 0
    %4110 = vmatpush1.bf16.msra.mxu0 %v4095
    %4111 = vmatprep.subr.bf16.mxu0 0
    %4112 = vmatpush1.bf16.msra.mxu0 0
    %4113 = vmatprep.subr.bf16.mxu0 0
    %4114 = vmatpush1.bf16.msra.mxu0 0
    %4115 = vmatprep.subr.bf16.mxu0 0
    %4116 = vmatpush1.bf16.msra.mxu0 0
    %4117 = vmatprep.subr.bf16.mxu0 0
    %4118 = vmatpush1.bf16.msra.mxu0 0
    %4119 = vmatprep.subr.bf16.mxu0 0
    %4120 = vmatpush1.bf16.msra.mxu0 0
    %4121 = vmatprep.subr.bf16.mxu0 0
    %4122 = vmatpush1.bf16.msra.mxu0 0
    %4123 = vmatprep.subr.bf16.mxu0 0
    %4124 = vmatpush1.bf16.msra.mxu0 0
    %4125 = vmatprep.subr.bf16.mxu0 0
    %4126 = vmatpush1.bf16.msra.mxu0 0
    %4127 = vmatprep.subr.bf16.mxu0 0
    %4128 = vmatpush1.bf16.msra.mxu0 0
    %4129 = vmatprep.subr.bf16.mxu0 0
    %4130 = vmatpush1.bf16.msra.mxu0 0
    %4131 = vmatprep.subr.bf16.mxu0 0
    %4132 = vmatpush1.bf16.msra.mxu0 0
    %4133 = vmatprep.subr.bf16.mxu0 0
    %4134 = vmatpush1.bf16.msra.mxu0 0
    %4135 = vmatprep.subr.bf16.mxu0 0
    %4136 = vmatpush1.bf16.msra.mxu0 0
    %4137 = vmatprep.subr.bf16.mxu0 0
    %4138 = vmatpush1.bf16.msra.mxu0 0
    %4139 = vmatprep.mubr.bf16.mxu0 0
    %4140 = vmatmul.mubr.bf16.gmra.mrb[0].mxu0 %v4099
    %v4141 = vpop.f32.mrb[0].mxu0
    %v4142 = vadd.f32 %v4085, %v4141
    %v4143 = vpop.f32.mrb[0].mxu0
    %v4144 = vpop.f32.mrb[0].mxu0
    %v4145 = vadd.f32 %v4085, %v4144
    %v4146 = vpop.f32.mrb[0].mxu0
    %4147 = vmatprep.mubr.bf16.mxu0 0
    %4148 = vmatmul.mubr.bf16.gmra.mrb[0].mxu0 %v4102
    %v4149 = vpop.f32.mrb[0].mxu0
    %v4150 = vadd.f32 %v4085, %v4149
    %v4151 = vpop.f32.mrb[0].mxu0
    %v4152 = vpop.f32.mrb[0].mxu0
    %v4153 = vadd.f32 %v4085, %v4152
    %v4154 = vpop.f32.mrb[0].mxu0
    %4155 = vmatprep.mubr.bf16.mxu0 0
    %4156 = vmatmul.mubr.bf16.gmra.mrb[0].mxu0 %v4105
    %v4157 = vpop.f32.mrb[0].mxu0
    %v4158 = vadd.f32 %v4085, %v4157
    %v4159 = vpop.f32.mrb[0].mxu0
    %v4160 = vpop.f32.mrb[0].mxu0
    %v4161 = vadd.f32 %v4085, %v4160
    %v4162 = vpop.f32.mrb[0].mxu0
    %4163 = vdwg.mxu0
    %v4164 = vmul.f32 %v4142, 0.5
    %v4165 = vmul.f32 %v4145, 0.5
    %v4166 = vmul.f32 %v4150, 0.5
    %v4167 = vmul.f32 %v4153, 0.5
    %v4168 = vmul.f32 %v4158, 0.5
    %v4169 = vmul.f32 %v4161, 0.5
    %v4170 = vmul.f32 %v4142, 0.70710677
    %v4171 = vmul.f32 %v4145, 0.70710677
    %v4172 = vmul.f32 %v4150, 0.70710677
    %v4173 = vmul.f32 %v4153, 0.70710677
    %v4174 = vmul.f32 %v4158, 0.70710677
    %v4175 = vmul.f32 %v4161, 0.70710677
    %v4176 = verf.f32.pop %v4170
    %v4177 = verf.f32.pop %v4171
    %v4178 = verf.f32.pop %v4172
    %v4179 = verf.f32.pop %v4173
    %v4180 = verf.f32.pop %v4174
    %v4181 = verf.f32.pop %v4175
    %v4182 = vadd.f32 %v4176, 1.0
    %v4183 = vadd.f32 %v4177, 1.0
    %v4184 = vadd.f32 %v4178, 1.0
    %v4185 = vadd.f32 %v4179, 1.0
    %v4186 = vadd.f32 %v4180, 1.0
    %v4187 = vadd.f32 %v4181, 1.0
    %v4188 = vmul.f32 %v4164, %v4182
    %v4189 = vmul.f32 %v4165, %v4183
    %v4190 = vmul.f32 %v4166, %v4184
    %v4191 = vmul.f32 %v4167, %v4185
    %v4192 = vmul.f32 %v4168, %v4186
    %v4193 = vmul.f32 %v4169, %v4187
    %v4194 = vpack.c.bf16 %v4189, %v4188
    %v4195 = vpack.c.bf16 %v4191, %v4190
    %v4196 = vpack.c.bf16 %v4193, %v4192
    %v4205 = vunpack.c.l.b16 %v2270
    %v4206 = vunpack.c.l.b16 %v2271
    %v4207 = vunpack.c.l.b16 %v2272
    %v4208 = vunpack.c.l.b16 %v2273
    %v4209 = vunpack.c.l.b16 %v2274
    %v4210 = vunpack.c.l.b16 %v2275
    %v4211 = vunpack.c.l.b16 %v2276
    %v4212 = vunpack.c.l.b16 %v2277
    %v4213 = vpack.c.b16 %v4206, %v4205
    %v4214 = vpack.c.b16 %v4208, %v4207
    %v4215 = vpack.c.b16 %v4210, %v4209
    %v4216 = vpack.c.b16 %v4212, %v4211
    %v4222 = vsel %vm78, %v4194, 0
    %v4225 = vsel %vm78, %v4195, 0
    %v4228 = vsel %vm78, %v4196, 0
    %4230 = vmatprep.subr.bf16.mxu0 0
    %4231 = vmatpush1.bf16.msra.mxu0 %v4213
    %4232 = vmatprep.subr.bf16.mxu0 0
    %4233 = vmatpush1.bf16.msra.mxu0 %v4214
    %4234 = vmatprep.subr.bf16.mxu0 0
    %4235 = vmatpush1.bf16.msra.mxu0 %v4215
    %4236 = vmatprep.subr.bf16.mxu0 0
    %4237 = vmatpush1.bf16.msra.mxu0 %v4216
    %4238 = vmatprep.subr.bf16.mxu0 0
    %4239 = vmatpush1.bf16.msra.mxu0 0
    %4240 = vmatprep.subr.bf16.mxu0 0
    %4241 = vmatpush1.bf16.msra.mxu0 0
    %4242 = vmatprep.subr.bf16.mxu0 0
    %4243 = vmatpush1.bf16.msra.mxu0 0
    %4244 = vmatprep.subr.bf16.mxu0 0
    %4245 = vmatpush1.bf16.msra.mxu0 0
    %4246 = vmatprep.subr.bf16.mxu0 0
    %4247 = vmatpush1.bf16.msra.mxu0 0
    %4248 = vmatprep.subr.bf16.mxu0 0
    %4249 = vmatpush1.bf16.msra.mxu0 0
    %4250 = vmatprep.subr.bf16.mxu0 0
    %4251 = vmatpush1.bf16.msra.mxu0 0
    %4252 = vmatprep.subr.bf16.mxu0 0
    %4253 = vmatpush1.bf16.msra.mxu0 0
    %4254 = vmatprep.subr.bf16.mxu0 0
    %4255 = vmatpush1.bf16.msra.mxu0 0
    %4256 = vmatprep.subr.bf16.mxu0 0
    %4257 = vmatpush1.bf16.msra.mxu0 0
    %4258 = vmatprep.subr.bf16.mxu0 0
    %4259 = vmatpush1.bf16.msra.mxu0 0
    %4260 = vmatprep.subr.bf16.mxu0 0
    %4261 = vmatpush1.bf16.msra.mxu0 0
    %4262 = vmatprep.mubr.bf16.mxu0 0
    %4263 = vmatmul.mubr.bf16.gmra.mrb[0].mxu0 %v4222
    %v4264 = vpop.f32.mrb[0].mxu0
    %v4265 = vpop.f32.mrb[0].mxu0
    %v4266 = vpop.f32.mrb[0].mxu0
    %v4267 = vpop.f32.mrb[0].mxu0
    %4268 = vmatprep.mubr.bf16.mxu0 0
    %4269 = vmatmul.mubr.bf16.gmra.mrb[0].mxu0 %v4225
    %v4270 = vpop.f32.mrb[0].mxu0
    %v4271 = vadd.f32 0.0, %v4270
    %v4272 = vpop.f32.mrb[0].mxu0
    %v4273 = vpop.f32.mrb[0].mxu0
    %v4274 = vpop.f32.mrb[0].mxu0
    %4275 = vmatprep.mubr.bf16.mxu0 0
    %4276 = vmatmul.mubr.bf16.gmra.mrb[0].mxu0 %v4228
    %v4277 = vpop.f32.mrb[0].mxu0
    %v4278 = vpop.f32.mrb[0].mxu0
    %v4279 = vpop.f32.mrb[0].mxu0
    %v4280 = vadd.f32 0.0, %v4279
    %v4281 = vpop.f32.mrb[0].mxu0
    %4282 = vdwg.mxu0
    %v4283 = vadd.f32 %v3974, %v4271
    %v4284 = vadd.f32 %v3977, %v4280
    %v4285 = vld [vmem:[%s2 + $0x17] sm:$0x1]
    %v4286 = vlaneseq
    %v4287 = vshrl.u32 %v4286, 7
    %v4288 = vsub.s32 0, %v4287
    %v4289 = vrot.slane %v4285, %v4288
    %v4290 = vadd.f32 %v4283, %v4289
    %v4291 = vadd.f32 %v4284, %v4289
    %v4292 = vld [vmem:[%s2] sm:$0x1]
    %v4293 = vld [vmem:[%s2 + $0x1] sm:$0x1]
    %v4296 = vrot.slane %v4291, 7
    %vm4297 = vcmask 1041409
    %v4298 = vsel %vm4297, %v4296, %v4290
    %vm4300 = vcmask 254976
    %v4301 = vsel %vm4300, %v4298, 0.0
    %4302 = vadd.xlane.f32.xlu0 %v4301
    %v4303 = vpop.xlane.xlu0 %4302
    %v4304 = vmul.f32 %v4303, %v213
    %v4306 = vrot.slane %v4304, 1
    %v4309 = vsub.f32 %v4290, %v4304
    %v4310 = vsub.f32 %v4291, %v4306
    %v4311 = vmul.f32 %v4309, %v4309
    %v4312 = vmul.f32 %v4310, %v4310
    %v4315 = vrot.slane %v4312, 7
    %v4316 = vsel %vm4297, %v4315, %v4311
    %v4318 = vsel %vm4300, %v4316, 0.0
    %4319 = vadd.xlane.f32.xlu0 %v4318
    %v4320 = vpop.xlane.xlu0 %4319
    %v4321 = vmul.f32 %v4320, %v213
    %v4322 = vadd.f32 %v4321, 1e-05
    %v4323 = vrsqrt.pop %v4322
    %v4325 = vrot.slane %v4323, 1
    %v4328 = vmul.f32 %v4309, %v4323
    %v4329 = vmul.f32 %v4310, %v4325
    %v4330 = vlaneseq
    %v4331 = vshrl.u32 %v4330, 7
    %v4332 = vsub.s32 0, %v4331
    %v4333 = vrot.slane %v4292, %v4332
    %v4334 = vmul.f32 %v4328, %v4333
    %v4335 = vmul.f32 %v4329, %v4333
    %v4336 = vlaneseq
    %v4337 = vshrl.u32 %v4336, 7
    %v4338 = vsub.s32 0, %v4337
    %v4339 = vrot.slane %v4293, %v4338
    %v4340 = vadd.f32 %v4334, %v4339
    %v4341 = vadd.f32 %v4335, %v4339
    %v4342 = vld [vmem:[%s3 + $0x20] sm:$0xf]
    %v4343 = vld [vmem:[%s3 + $0x24] sm:$0xf]
    %v4344 = vld [vmem:[%s3 + $0x28] sm:$0xf]
    %v4345 = vld [vmem:[%s3 + $0x2c] sm:$0xf]
    %v4346 = vpack.c.bf16 %v4340, %v4340
    %v4347 = vpack.c.bf16 %v4341, %v4341
    %v4348 = vld [vmem:[%s2 + $0x2] sm:$0x1]
    %v4349 = vlaneseq
    %v4350 = vshrl.u32 %v4349, 7
    %v4351 = vsub.s32 0, %v4350
    %v4352 = vrot.slane %v4348, %v4351
    %v4355 = vunpack.c.l.b16 %v4346
    %v4356 = vunpack.c.l.b16 %v4347
    %v4357 = vrot.slane %v4356, 7
    %v4358 = vsel %vm4297, %v4357, %v4355
    %v4359 = vpack.c.b16 %v4358, %v4358
    %v4364 = vunpack.c.l.b16 %v4342
    %v4365 = vunpack.c.l.b16 %v4343
    %v4366 = vunpack.c.l.b16 %v4344
    %v4367 = vunpack.c.l.b16 %v4345
    %v4368 = vpack.c.b16 %v4365, %v4364
    %v4369 = vpack.c.b16 %v4367, %v4366
    %v4373 = vsel %vm194, %v4359, 0
    %4375 = vmatprep.subr.bf16.mxu0 0
    %4376 = vmatpush1.bf16.msra.mxu0 %v4368
    %4377 = vmatprep.subr.bf16.mxu0 0
    %4378 = vmatpush1.bf16.msra.mxu0 %v4369
    %4379 = vmatprep.subr.bf16.mxu0 0
    %4380 = vmatpush1.bf16.msra.mxu0 0
    %4381 = vmatprep.subr.bf16.mxu0 0
    %4382 = vmatpush1.bf16.msra.mxu0 0
    %4383 = vmatprep.subr.bf16.mxu0 0
    %4384 = vmatpush1.bf16.msra.mxu0 0
    %4385 = vmatprep.subr.bf16.mxu0 0
    %4386 = vmatpush1.bf16.msra.mxu0 0
    %4387 = vmatprep.subr.bf16.mxu0 0
    %4388 = vmatpush1.bf16.msra.mxu0 0
    %4389 = vmatprep.subr.bf16.mxu0 0
    %4390 = vmatpush1.bf16.msra.mxu0 0
    %4391 = vmatprep.subr.bf16.mxu0 0
    %4392 = vmatpush1.bf16.msra.mxu0 0
    %4393 = vmatprep.subr.bf16.mxu0 0
    %4394 = vmatpush1.bf16.msra.mxu0 0
    %4395 = vmatprep.subr.bf16.mxu0 0
    %4396 = vmatpush1.bf16.msra.mxu0 0
    %4397 = vmatprep.subr.bf16.mxu0 0
    %4398 = vmatpush1.bf16.msra.mxu0 0
    %4399 = vmatprep.subr.bf16.mxu0 0
    %4400 = vmatpush1.bf16.msra.mxu0 0
    %4401 = vmatprep.subr.bf16.mxu0 0
    %4402 = vmatpush1.bf16.msra.mxu0 0
    %4403 = vmatprep.subr.bf16.mxu0 0
    %4404 = vmatpush1.bf16.msra.mxu0 0
    %4405 = vmatprep.subr.bf16.mxu0 0
    %4406 = vmatpush1.bf16.msra.mxu0 0
    %4407 = vmatprep.mubr.bf16.mxu0 0
    %4408 = vmatmul.mubr.bf16.gmra.mrb[0].mxu0 %v4373
    %v4409 = vpop.f32.mrb[0].mxu0
    %v4410 = vadd.f32 %v4352, %v4409
    %v4411 = vpop.f32.mrb[0].mxu0
    %v4412 = vpop.f32.mrb[0].mxu0
    %v4413 = vpop.f32.mrb[0].mxu0
    %4414 = vdwg.mxu0
    %4415 = vst [vmem:[#allocation2] sm:$0x3] %v4410
    // Predicated region
    $region18: #{vit_forward.1} parent=1 // pred_check
      _
    $region19: #{vit_forward.1} parent=1 // pred_check_branch
      %4417 = sbr.rel (0) target = $region21
    $region20: #{vit_forward.1} parent=1 // pred_region
      %s4419 = ssub.s32 32, 32
      %4420 = vsyncadd [#allocation3], %s4419
      %s4422 = sshll.u32 [#allocation2], 4
      %s4423 = int_to_ptr.vmem [resolvable:$true] %s4422
      %4425 = dma.vmem_to_hbm [thread:$0]  %s4423, 32, %s4, [#allocation3]
    $region21: #{vit_forward.1} parent=1 // pred_fallthru
      _
    // Predicated region
    $region22: #{vit_forward.1} parent=1 // pred_check
      _
    $region23: #{vit_forward.1} parent=1 // pred_check_branch
      %4427 = sbr.rel (0) target = $region25
    $region24: #{vit_forward.1} parent=1 // pred_region
      %4428 = dma.done [#allocation3], 32
    $region25: #{vit_forward.1} parent=1 // pred_fallthru
      _
    %4429 = vsyncpa [#allocation3], 1

</llo_original>
